<compile_context>
chip_gen: v5e
topology: v5e:2x2
jax: 0.10.0
libtpu: 0.0.40
codegen_flags: <defaults>
</compile_context>

<pallas_src>
import functools

import jax
import jax.numpy as jnp
from jax.experimental import pallas as pl
from jax.experimental.pallas import tpu as pltpu

_BLOCK_BYTES = 4 * 1024 * 1024   # ~4 MiB per block; x2 buffers x (in+out) = 16 MiB
_SMALL_BYTES = 256 * 1024        # below this, XLA's fused elementwise wins (launch overhead)

_CORE_PARALLEL_OK = True         # flipped off if CORE_PARALLEL fails to lower on this chip


def _sigmoid_monotonic_kernel(x_ref, o_ref, *, scale_factor):
    # x_ref / o_ref: (block_rows, lanes) VMEM tiles in the input's native dtype.
    x = x_ref[...]
    # Promote to f32 for the EUP sigmoid (v5e has no bf16 VPU/EUP); store back native.
    y = jax.nn.sigmoid(x.astype(jnp.float32))
    if scale_factor != 1.0:
        y = y * jnp.float32(scale_factor)
    o_ref[...] = y.astype(o_ref.dtype)


def _reference(x, scale_factor):
    # Plain XLA path (tiny tensors / non-lane-alignable shapes). Python-float
    # scale keeps the input dtype (no promotion).
    y = jax.nn.sigmoid(x)
    if scale_factor != 1.0:
        y = y * scale_factor
    return y


def _pick_lanes(n):
    # Widest lane-dense width (multiple of 128) that divides the element count.
    for lanes in (1024, 512, 256, 128):
        if n % lanes == 0:
            return lanes
    return None


def sigmoid_monotonic(x, scale_factor=1.0, *, block_bytes=_BLOCK_BYTES):
    """Elementwise scale_factor * sigmoid(x), matching the torch module."""
    scale_factor = float(scale_factor)
    n = x.size
    itemsize = jnp.dtype(x.dtype).itemsize

    if n == 0 or n * itemsize < _SMALL_BYTES:
        # Small-size fallback: pallas_call launch overhead dominates here.
        return _reference(x, scale_factor)

    lanes = _pick_lanes(n)
    if lanes is None:
        # Not reshapeable into a lane-dense slab without a padded copy + output
        # slice (two extra full HBM passes); plain XLA elementwise is already at
        # HBM roofline for this memory-bound op, so it is strictly cheaper.
        return _reference(x, scale_factor)

    rows = n // lanes
    # Rows per block from a byte budget: bf16 gets 2x the rows, not half the bytes.
    budget_rows = max(block_bytes // (lanes * itemsize), 8)
    budget_rows -= budget_rows % 8                       # keep sublane multiple of 8
    rows_up8 = -(-rows // 8) * 8
    block_rows = min(budget_rows, rows_up8)              # don't over-allocate VMEM
    grid = (pl.cdiv(rows, block_rows),)                  # ragged last block is masked

    slab = x.reshape(rows, lanes)                        # contiguous reshape: free

    kernel = functools.partial(_sigmoid_monotonic_kernel, scale_factor=scale_factor)
    cost = pl.CostEstimate(
        flops=4 * n, transcendentals=n, bytes_accessed=2 * n * itemsize)

    def run(row_semantics):
        return pl.pallas_call(
            kernel,
            out_shape=jax.ShapeDtypeStruct(slab.shape, slab.dtype),
            grid=grid,
            in_specs=[pl.BlockSpec((block_rows, lanes), lambda i: (i, 0))],
            out_specs=pl.BlockSpec((block_rows, lanes), lambda i: (i, 0)),
            compiler_params=pltpu.CompilerParams(
                dimension_semantics=(row_semantics,),
                vmem_limit_bytes=32 * 1024 * 1024,       # v5e scoped default is 16 MiB
            ),
            cost_estimate=cost,
        )(slab)

    global _CORE_PARALLEL_OK
    core_parallel = getattr(pltpu, "CORE_PARALLEL", None)
    if _CORE_PARALLEL_OK and core_parallel is not None:
        try:
            out = run(core_parallel)     # v7x: shard the row stream across both TCs
        except Exception:                # single-TC chips / unsupported builds
            _CORE_PARALLEL_OK = False
            out = run("parallel")
    else:
        out = run("parallel")

    return out.reshape(x.shape)


if __name__ == "__main__":
    key = jax.random.PRNGKey(0)
    k1, k2, k3, k4, k5 = jax.random.split(key, 5)

    # 1) Module-consistent small NCHW input -> small-size fallback path.
    x1 = jax.random.normal(k1, (2, 4, 16, 16), dtype=jnp.float32)
    y1 = sigmoid_monotonic(x1, scale_factor=1.0)
    jax.block_until_ready(y1)
    assert y1.shape == x1.shape and y1.dtype == x1.dtype
    assert jnp.max(jnp.abs(y1 - jax.nn.sigmoid(x1))) < 1e-6

    # 2) Single-block Pallas path (lane-aligned, 512 KiB), non-default scale.
    x2 = jax.random.normal(k2, (2, 4, 128, 128), dtype=jnp.float32)
    y2 = sigmoid_monotonic(x2, scale_factor=2.5)
    jax.block_until_ready(y2)
    assert jnp.max(jnp.abs(y2 - 2.5 * jax.nn.sigmoid(x2))) < 1e-5

    # 3) Multi-block streaming + ragged (masked) last row-block: 300 rows with a
    #    128-row block (block_bytes shrunk so the test tensor stays small).
    x3 = jax.random.normal(k3, (300, 1024), dtype=jnp.float32)
    y3 = sigmoid_monotonic(x3, scale_factor=1.0, block_bytes=512 * 1024)
    jax.block_until_ready(y3)
    assert jnp.max(jnp.abs(y3 - jax.nn.sigmoid(x3))) < 1e-6

    # 4) bf16 input stays bf16 in HBM (f32 compute inside the kernel).
    x4 = jax.random.normal(k4, (2, 8, 128, 128), dtype=jnp.bfloat16)
    y4 = sigmoid_monotonic(x4, scale_factor=1.0)
    jax.block_until_ready(y4)
    assert y4.dtype == jnp.bfloat16
    assert jnp.max(jnp.abs(y4.astype(jnp.float32)
                           - jax.nn.sigmoid(x4.astype(jnp.float32)))) < 1e-2

    # 5) Element count not a multiple of 128 -> XLA elementwise fallback.
    x5 = jax.random.normal(k5, (3, 5, 7), dtype=jnp.float32)
    y5 = sigmoid_monotonic(x5, scale_factor=2.5)
    jax.block_until_ready(y5)
    assert jnp.max(jnp.abs(y5 - 2.5 * jax.nn.sigmoid(x5))) < 1e-5

    print("KERNEL_OK")
</pallas_src>

<mosaic_0001>
module attributes {stable_mosaic.version = 11 : i64} {
  func.func @_sigmoid_monotonic_kernel(%arg0: i32, %arg1: memref<128x1024xf32, #tpu.memory_space<vmem>>, %arg2: memref<128x1024xf32, #tpu.memory_space<vmem>>) attributes {dimension_semantics = [#tpu.dimension_semantics<core_parallel>], iteration_bounds = array<i64: 1>, scalar_prefetch = 0 : i64, scratch_operands = 0 : i64, tpu.core_type = #tpu.core_type<tc>, window_params = [{transform_indices = @transform_0, window_bounds = array<i64: 128, 1024>}, {transform_indices = @transform_1, window_bounds = array<i64: 128, 1024>}]} {
    %c0 = arith.constant 0 : index
    %c0_0 = arith.constant 0 : index
    %0 = vector.load %arg1[%c0, %c0_0] : memref<128x1024xf32, #tpu.memory_space<vmem>>, vector<128x1024xf32>
    %1 = arith.negf %0 : vector<128x1024xf32>
    %2 = math.exp %1 : vector<128x1024xf32>
    %cst = arith.constant 1.000000e+00 : f32
    %3 = vector.broadcast %cst : f32 to vector<128x1024xf32>
    %4 = arith.addf %3, %2 : vector<128x1024xf32>
    %5 = arith.divf %3, %4 : vector<128x1024xf32>
    %cst_1 = arith.constant 2.500000e+00 : f32
    %6 = vector.broadcast %cst_1 : f32 to vector<128x1024xf32>
    %7 = arith.mulf %5, %6 : vector<128x1024xf32>
    %c0_2 = arith.constant 0 : index
    %c0_3 = arith.constant 0 : index
    %8 = vector.load %arg2[%c0_2, %c0_3] : memref<128x1024xf32, #tpu.memory_space<vmem>>, vector<128x1024xf32>
    tpu.vector_store %arg2[%c0_2, %c0_3], %7 {strides = array<i32>} : memref<128x1024xf32, #tpu.memory_space<vmem>>, vector<128x1024xf32>,
    return
  }
  func.func @transform_0(%arg0: i32) -> (i32, i32) {
    %c0_i32 = arith.constant 0 : i32
    %c0_i32_0 = arith.constant 0 : i32
    return %arg0, %c0_i32 : i32, i32
  }
  func.func @transform_1(%arg0: i32) -> (i32, i32) {
    %c0_i32 = arith.constant 0 : i32
    %c0_i32_0 = arith.constant 0 : i32
    return %arg0, %c0_i32 : i32, i32
  }
}

module attributes {stable_mosaic.version = 11 : i64} {
  func.func @_sigmoid_monotonic_kernel(%arg0: i32, %arg1: memref<128x1024xf32, #tpu.memory_space<vmem>>, %arg2: memref<128x1024xf32, #tpu.memory_space<vmem>>) attributes {dimension_semantics = [#tpu.dimension_semantics<parallel>], iteration_bounds = array<i64: 1>, scalar_prefetch = 0 : i64, scratch_operands = 0 : i64, tpu.core_type = #tpu.core_type<tc>, window_params = [{transform_indices = @transform_0, window_bounds = array<i64: 128, 1024>}, {transform_indices = @transform_1, window_bounds = array<i64: 128, 1024>}]} {
    %c0 = arith.constant 0 : index
    %c0_0 = arith.constant 0 : index
    %0 = vector.load %arg1[%c0, %c0_0] : memref<128x1024xf32, #tpu.memory_space<vmem>>, vector<128x1024xf32>
    %1 = arith.negf %0 : vector<128x1024xf32>
    %2 = math.exp %1 : vector<128x1024xf32>
    %cst = arith.constant 1.000000e+00 : f32
    %3 = vector.broadcast %cst : f32 to vector<128x1024xf32>
    %4 = arith.addf %3, %2 : vector<128x1024xf32>
    %5 = arith.divf %3, %4 : vector<128x1024xf32>
    %cst_1 = arith.constant 2.500000e+00 : f32
    %6 = vector.broadcast %cst_1 : f32 to vector<128x1024xf32>
    %7 = arith.mulf %5, %6 : vector<128x1024xf32>
    %c0_2 = arith.constant 0 : index
    %c0_3 = arith.constant 0 : index
    %8 = vector.load %arg2[%c0_2, %c0_3] : memref<128x1024xf32, #tpu.memory_space<vmem>>, vector<128x1024xf32>
    tpu.vector_store %arg2[%c0_2, %c0_3], %7 {strides = array<i32>} : memref<128x1024xf32, #tpu.memory_space<vmem>>, vector<128x1024xf32>,
    return
  }
  func.func @transform_0(%arg0: i32) -> (i32, i32) {
    %c0_i32 = arith.constant 0 : i32
    %c0_i32_0 = arith.constant 0 : i32
    return %arg0, %c0_i32 : i32, i32
  }
  func.func @transform_1(%arg0: i32) -> (i32, i32) {
    %c0_i32 = arith.constant 0 : i32
    %c0_i32_0 = arith.constant 0 : i32
    return %arg0, %c0_i32 : i32, i32
  }
}

</mosaic_0001>

<llo_original>
// kernel: tpu_custom_call.1
$region0: #{tpu_custom_call.1}
  #allocation0 [shape = 'u32[]', space=smem, size = 0x4, offset = 0x4, fixed_abs, tag = 'smem constant byte address 0x4 - core index']
  #allocation1 [shape = 'u32[72,128]{1,0:T(1,128)}', space=vmem, size = 0x9000, scoped, tag = 'internal scratch']
  %s0 = inlined_call_operand.hbm [shape: f32[128,1024], index: 0, kind: input, shape index: {}]
  %s1 = inlined_call_operand.hbm [shape: f32[128,1024], index: 1, kind: output, shape index: {}]
  %s2 = sld [smem:[#allocation0]]
  $region18: #{tpu_custom_call.1} parent=0
    _
  %s4 = ssub.s32 1, %s2
  %s5 = scalar_select 0, %s4, %s2
  $region1: #{tpu_custom_call.1} parent=0
    #allocation2 [shape = 'u8[524288]{0}', space=vmem, size = 0x80000, scoped, tag = 'input window, operand 0, single buffered']
    #allocation3 [shape = 's32[1]{0}', space=sflag, size = 0x4, scoped, tag = 'scoped memory for tpu_custom_call.1']
    #allocation4 [shape = 's32[1]{0}', space=sflag, size = 0x4, scoped, tag = 'scoped memory for tpu_custom_call.1']
    #allocation5 [shape = 'u8[524288]{0}', space=vmem, size = 0x80000, scoped, tag = 'output window, operand 0, single buffered']
    %6 = vsyncpa [#allocation3], 0
    %7 = vsyncpa [#allocation4], 0
    // Predicated region
    $region2: #{tpu_custom_call.1} parent=1 // pred_check
      _
    $region3: #{tpu_custom_call.1} parent=1 // pred_check_branch
      %9 = sbr.rel (0) target = $region5
    $region4: #{tpu_custom_call.1} parent=1 // pred_region
      %s10 = smul.u32 16, %s5
      %12 = vsyncadd [#allocation3], 0
      %s13 = smul.addr %s10, 8
      %s14 = smul.addr %s13, 8
      %s15 = scalar_lea.hbm %s0, %s14
      %s16 = sshll.u32 %s15, 4
      %s17 = int_to_ptr.hbm [resolvable:$true] %s16
      %s18 = sshll.u32 [#allocation2], 4
      %s19 = int_to_ptr.vmem [resolvable:$true] %s18
      %24 = dma.hbm_to_vmem [thread:$0]  %s17, 16384, %s19, [#allocation3], 1024, 1024, 64
    $region5: #{tpu_custom_call.1} parent=1 // pred_fallthru
      _
    // Predicated region
    $region6: #{tpu_custom_call.1} parent=1 // pred_check
      _
    $region7: #{tpu_custom_call.1} parent=1 // pred_check_branch
      %26 = sbr.rel (0) target = $region9
    $region8: #{tpu_custom_call.1} parent=1 // pred_region
      %28 = dma.done [#allocation3], 16384
    $region9: #{tpu_custom_call.1} parent=1 // pred_fallthru
      _
    %s29 = smul.u32 16, %s5
    %s30 = smul.u32 16, %s5
    %v31 = vld [vmem:[#allocation2] sm:$0xff]
    %v32 = vld [vmem:[#allocation2 + $0x8] sm:$0xff]
    %v33 = vld [vmem:[#allocation2 + $0x10] sm:$0xff]
    %v34 = vld [vmem:[#allocation2 + $0x18] sm:$0xff]
    %v35 = vld [vmem:[#allocation2 + $0x20] sm:$0xff]
    %v36 = vld [vmem:[#allocation2 + $0x28] sm:$0xff]
    %v37 = vld [vmem:[#allocation2 + $0x30] sm:$0xff]
    %v38 = vld [vmem:[#allocation2 + $0x38] sm:$0xff]
    %v39 = vld [vmem:[#allocation2 + $0x40] sm:$0xff]
    %v40 = vld [vmem:[#allocation2 + $0x48] sm:$0xff]
    %v41 = vld [vmem:[#allocation2 + $0x50] sm:$0xff]
    %v42 = vld [vmem:[#allocation2 + $0x58] sm:$0xff]
    %v43 = vld [vmem:[#allocation2 + $0x60] sm:$0xff]
    %v44 = vld [vmem:[#allocation2 + $0x68] sm:$0xff]
    %v45 = vld [vmem:[#allocation2 + $0x70] sm:$0xff]
    %v46 = vld [vmem:[#allocation2 + $0x78] sm:$0xff]
    %v47 = vld [vmem:[#allocation2 + $0x80] sm:$0xff]
    %v48 = vld [vmem:[#allocation2 + $0x88] sm:$0xff]
    %v49 = vld [vmem:[#allocation2 + $0x90] sm:$0xff]
    %v50 = vld [vmem:[#allocation2 + $0x98] sm:$0xff]
    %v51 = vld [vmem:[#allocation2 + $0xa0] sm:$0xff]
    %v52 = vld [vmem:[#allocation2 + $0xa8] sm:$0xff]
    %v53 = vld [vmem:[#allocation2 + $0xb0] sm:$0xff]
    %v54 = vld [vmem:[#allocation2 + $0xb8] sm:$0xff]
    %v55 = vld [vmem:[#allocation2 + $0xc0] sm:$0xff]
    %v56 = vld [vmem:[#allocation2 + $0xc8] sm:$0xff]
    %v57 = vld [vmem:[#allocation2 + $0xd0] sm:$0xff]
    %v58 = vld [vmem:[#allocation2 + $0xd8] sm:$0xff]
    %v59 = vld [vmem:[#allocation2 + $0xe0] sm:$0xff]
    %v60 = vld [vmem:[#allocation2 + $0xe8] sm:$0xff]
    %v61 = vld [vmem:[#allocation2 + $0xf0] sm:$0xff]
    %v62 = vld [vmem:[#allocation2 + $0xf8] sm:$0xff]
    %v63 = vld [vmem:[#allocation2 + $0x100] sm:$0xff]
    %v64 = vld [vmem:[#allocation2 + $0x108] sm:$0xff]
    %v65 = vld [vmem:[#allocation2 + $0x110] sm:$0xff]
    %v66 = vld [vmem:[#allocation2 + $0x118] sm:$0xff]
    %v67 = vld [vmem:[#allocation2 + $0x120] sm:$0xff]
    %v68 = vld [vmem:[#allocation2 + $0x128] sm:$0xff]
    %v69 = vld [vmem:[#allocation2 + $0x130] sm:$0xff]
    %v70 = vld [vmem:[#allocation2 + $0x138] sm:$0xff]
    %v71 = vld [vmem:[#allocation2 + $0x140] sm:$0xff]
    %v72 = vld [vmem:[#allocation2 + $0x148] sm:$0xff]
    %v73 = vld [vmem:[#allocation2 + $0x150] sm:$0xff]
    %v74 = vld [vmem:[#allocation2 + $0x158] sm:$0xff]
    %v75 = vld [vmem:[#allocation2 + $0x160] sm:$0xff]
    %v76 = vld [vmem:[#allocation2 + $0x168] sm:$0xff]
    %v77 = vld [vmem:[#allocation2 + $0x170] sm:$0xff]
    %v78 = vld [vmem:[#allocation2 + $0x178] sm:$0xff]
    %v79 = vld [vmem:[#allocation2 + $0x180] sm:$0xff]
    %v80 = vld [vmem:[#allocation2 + $0x188] sm:$0xff]
    %v81 = vld [vmem:[#allocation2 + $0x190] sm:$0xff]
    %v82 = vld [vmem:[#allocation2 + $0x198] sm:$0xff]
    %v83 = vld [vmem:[#allocation2 + $0x1a0] sm:$0xff]
    %v84 = vld [vmem:[#allocation2 + $0x1a8] sm:$0xff]
    %v85 = vld [vmem:[#allocation2 + $0x1b0] sm:$0xff]
    %v86 = vld [vmem:[#allocation2 + $0x1b8] sm:$0xff]
    %v87 = vld [vmem:[#allocation2 + $0x1c0] sm:$0xff]
    %v88 = vld [vmem:[#allocation2 + $0x1c8] sm:$0xff]
    %v89 = vld [vmem:[#allocation2 + $0x1d0] sm:$0xff]
    %v90 = vld [vmem:[#allocation2 + $0x1d8] sm:$0xff]
    %v91 = vld [vmem:[#allocation2 + $0x1e0] sm:$0xff]
    %v92 = vld [vmem:[#allocation2 + $0x1e8] sm:$0xff]
    %v93 = vld [vmem:[#allocation2 + $0x1f0] sm:$0xff]
    %v94 = vld [vmem:[#allocation2 + $0x1f8] sm:$0xff]
    %v95 = vld [vmem:[#allocation2 + $0x200] sm:$0xff]
    %v96 = vld [vmem:[#allocation2 + $0x208] sm:$0xff]
    %v97 = vld [vmem:[#allocation2 + $0x210] sm:$0xff]
    %v98 = vld [vmem:[#allocation2 + $0x218] sm:$0xff]
    %v99 = vld [vmem:[#allocation2 + $0x220] sm:$0xff]
    %v100 = vld [vmem:[#allocation2 + $0x228] sm:$0xff]
    %v101 = vld [vmem:[#allocation2 + $0x230] sm:$0xff]
    %v102 = vld [vmem:[#allocation2 + $0x238] sm:$0xff]
    %v103 = vld [vmem:[#allocation2 + $0x240] sm:$0xff]
    %v104 = vld [vmem:[#allocation2 + $0x248] sm:$0xff]
    %v105 = vld [vmem:[#allocation2 + $0x250] sm:$0xff]
    %v106 = vld [vmem:[#allocation2 + $0x258] sm:$0xff]
    %v107 = vld [vmem:[#allocation2 + $0x260] sm:$0xff]
    %v108 = vld [vmem:[#allocation2 + $0x268] sm:$0xff]
    %v109 = vld [vmem:[#allocation2 + $0x270] sm:$0xff]
    %v110 = vld [vmem:[#allocation2 + $0x278] sm:$0xff]
    %v111 = vld [vmem:[#allocation2 + $0x280] sm:$0xff]
    %v112 = vld [vmem:[#allocation2 + $0x288] sm:$0xff]
    %v113 = vld [vmem:[#allocation2 + $0x290] sm:$0xff]
    %v114 = vld [vmem:[#allocation2 + $0x298] sm:$0xff]
    %v115 = vld [vmem:[#allocation2 + $0x2a0] sm:$0xff]
    %v116 = vld [vmem:[#allocation2 + $0x2a8] sm:$0xff]
    %v117 = vld [vmem:[#allocation2 + $0x2b0] sm:$0xff]
    %v118 = vld [vmem:[#allocation2 + $0x2b8] sm:$0xff]
    %v119 = vld [vmem:[#allocation2 + $0x2c0] sm:$0xff]
    %v120 = vld [vmem:[#allocation2 + $0x2c8] sm:$0xff]
    %v121 = vld [vmem:[#allocation2 + $0x2d0] sm:$0xff]
    %v122 = vld [vmem:[#allocation2 + $0x2d8] sm:$0xff]
    %v123 = vld [vmem:[#allocation2 + $0x2e0] sm:$0xff]
    %v124 = vld [vmem:[#allocation2 + $0x2e8] sm:$0xff]
    %v125 = vld [vmem:[#allocation2 + $0x2f0] sm:$0xff]
    %v126 = vld [vmem:[#allocation2 + $0x2f8] sm:$0xff]
    %v127 = vld [vmem:[#allocation2 + $0x300] sm:$0xff]
    %v128 = vld [vmem:[#allocation2 + $0x308] sm:$0xff]
    %v129 = vld [vmem:[#allocation2 + $0x310] sm:$0xff]
    %v130 = vld [vmem:[#allocation2 + $0x318] sm:$0xff]
    %v131 = vld [vmem:[#allocation2 + $0x320] sm:$0xff]
    %v132 = vld [vmem:[#allocation2 + $0x328] sm:$0xff]
    %v133 = vld [vmem:[#allocation2 + $0x330] sm:$0xff]
    %v134 = vld [vmem:[#allocation2 + $0x338] sm:$0xff]
    %v135 = vld [vmem:[#allocation2 + $0x340] sm:$0xff]
    %v136 = vld [vmem:[#allocation2 + $0x348] sm:$0xff]
    %v137 = vld [vmem:[#allocation2 + $0x350] sm:$0xff]
    %v138 = vld [vmem:[#allocation2 + $0x358] sm:$0xff]
    %v139 = vld [vmem:[#allocation2 + $0x360] sm:$0xff]
    %v140 = vld [vmem:[#allocation2 + $0x368] sm:$0xff]
    %v141 = vld [vmem:[#allocation2 + $0x370] sm:$0xff]
    %v142 = vld [vmem:[#allocation2 + $0x378] sm:$0xff]
    %v143 = vld [vmem:[#allocation2 + $0x380] sm:$0xff]
    %v144 = vld [vmem:[#allocation2 + $0x388] sm:$0xff]
    %v145 = vld [vmem:[#allocation2 + $0x390] sm:$0xff]
    %v146 = vld [vmem:[#allocation2 + $0x398] sm:$0xff]
    %v147 = vld [vmem:[#allocation2 + $0x3a0] sm:$0xff]
    %v148 = vld [vmem:[#allocation2 + $0x3a8] sm:$0xff]
    %v149 = vld [vmem:[#allocation2 + $0x3b0] sm:$0xff]
    %v150 = vld [vmem:[#allocation2 + $0x3b8] sm:$0xff]
    %v151 = vld [vmem:[#allocation2 + $0x3c0] sm:$0xff]
    %v152 = vld [vmem:[#allocation2 + $0x3c8] sm:$0xff]
    %v153 = vld [vmem:[#allocation2 + $0x3d0] sm:$0xff]
    %v154 = vld [vmem:[#allocation2 + $0x3d8] sm:$0xff]
    %v155 = vld [vmem:[#allocation2 + $0x3e0] sm:$0xff]
    %v156 = vld [vmem:[#allocation2 + $0x3e8] sm:$0xff]
    %v157 = vld [vmem:[#allocation2 + $0x3f0] sm:$0xff]
    %v158 = vld [vmem:[#allocation2 + $0x3f8] sm:$0xff]
    %v159 = vxor.u32 %v31, 2147483648
    %v160 = vxor.u32 %v32, 2147483648
    %v161 = vxor.u32 %v33, 2147483648
    %v162 = vxor.u32 %v34, 2147483648
    %v163 = vxor.u32 %v35, 2147483648
    %v164 = vxor.u32 %v36, 2147483648
    %v165 = vxor.u32 %v37, 2147483648
    %v166 = vxor.u32 %v38, 2147483648
    %v167 = vxor.u32 %v39, 2147483648
    %v168 = vxor.u32 %v40, 2147483648
    %v169 = vxor.u32 %v41, 2147483648
    %v170 = vxor.u32 %v42, 2147483648
    %v171 = vxor.u32 %v43, 2147483648
    %v172 = vxor.u32 %v44, 2147483648
    %v173 = vxor.u32 %v45, 2147483648
    %v174 = vxor.u32 %v46, 2147483648
    %v175 = vxor.u32 %v47, 2147483648
    %v176 = vxor.u32 %v48, 2147483648
    %v177 = vxor.u32 %v49, 2147483648
    %v178 = vxor.u32 %v50, 2147483648
    %v179 = vxor.u32 %v51, 2147483648
    %v180 = vxor.u32 %v52, 2147483648
    %v181 = vxor.u32 %v53, 2147483648
    %v182 = vxor.u32 %v54, 2147483648
    %v183 = vxor.u32 %v55, 2147483648
    %v184 = vxor.u32 %v56, 2147483648
    %v185 = vxor.u32 %v57, 2147483648
    %v186 = vxor.u32 %v58, 2147483648
    %v187 = vxor.u32 %v59, 2147483648
    %v188 = vxor.u32 %v60, 2147483648
    %v189 = vxor.u32 %v61, 2147483648
    %v190 = vxor.u32 %v62, 2147483648
    %v191 = vxor.u32 %v63, 2147483648
    %v192 = vxor.u32 %v64, 2147483648
    %v193 = vxor.u32 %v65, 2147483648
    %v194 = vxor.u32 %v66, 2147483648
    %v195 = vxor.u32 %v67, 2147483648
    %v196 = vxor.u32 %v68, 2147483648
    %v197 = vxor.u32 %v69, 2147483648
    %v198 = vxor.u32 %v70, 2147483648
    %v199 = vxor.u32 %v71, 2147483648
    %v200 = vxor.u32 %v72, 2147483648
    %v201 = vxor.u32 %v73, 2147483648
    %v202 = vxor.u32 %v74, 2147483648
    %v203 = vxor.u32 %v75, 2147483648
    %v204 = vxor.u32 %v76, 2147483648
    %v205 = vxor.u32 %v77, 2147483648
    %v206 = vxor.u32 %v78, 2147483648
    %v207 = vxor.u32 %v79, 2147483648
    %v208 = vxor.u32 %v80, 2147483648
    %v209 = vxor.u32 %v81, 2147483648
    %v210 = vxor.u32 %v82, 2147483648
    %v211 = vxor.u32 %v83, 2147483648
    %v212 = vxor.u32 %v84, 2147483648
    %v213 = vxor.u32 %v85, 2147483648
    %v214 = vxor.u32 %v86, 2147483648
    %v215 = vxor.u32 %v87, 2147483648
    %v216 = vxor.u32 %v88, 2147483648
    %v217 = vxor.u32 %v89, 2147483648
    %v218 = vxor.u32 %v90, 2147483648
    %v219 = vxor.u32 %v91, 2147483648
    %v220 = vxor.u32 %v92, 2147483648
    %v221 = vxor.u32 %v93, 2147483648
    %v222 = vxor.u32 %v94, 2147483648
    %v223 = vxor.u32 %v95, 2147483648
    %v224 = vxor.u32 %v96, 2147483648
    %v225 = vxor.u32 %v97, 2147483648
    %v226 = vxor.u32 %v98, 2147483648
    %v227 = vxor.u32 %v99, 2147483648
    %v228 = vxor.u32 %v100, 2147483648
    %v229 = vxor.u32 %v101, 2147483648
    %v230 = vxor.u32 %v102, 2147483648
    %v231 = vxor.u32 %v103, 2147483648
    %v232 = vxor.u32 %v104, 2147483648
    %v233 = vxor.u32 %v105, 2147483648
    %v234 = vxor.u32 %v106, 2147483648
    %v235 = vxor.u32 %v107, 2147483648
    %v236 = vxor.u32 %v108, 2147483648
    %v237 = vxor.u32 %v109, 2147483648
    %v238 = vxor.u32 %v110, 2147483648
    %v239 = vxor.u32 %v111, 2147483648
    %v240 = vxor.u32 %v112, 2147483648
    %v241 = vxor.u32 %v113, 2147483648
    %v242 = vxor.u32 %v114, 2147483648
    %v243 = vxor.u32 %v115, 2147483648
    %v244 = vxor.u32 %v116, 2147483648
    %v245 = vxor.u32 %v117, 2147483648
    %v246 = vxor.u32 %v118, 2147483648
    %v247 = vxor.u32 %v119, 2147483648
    %v248 = vxor.u32 %v120, 2147483648
    %v249 = vxor.u32 %v121, 2147483648
    %v250 = vxor.u32 %v122, 2147483648
    %v251 = vxor.u32 %v123, 2147483648
    %v252 = vxor.u32 %v124, 2147483648
    %v253 = vxor.u32 %v125, 2147483648
    %v254 = vxor.u32 %v126, 2147483648
    %v255 = vxor.u32 %v127, 2147483648
    %v256 = vxor.u32 %v128, 2147483648
    %v257 = vxor.u32 %v129, 2147483648
    %v258 = vxor.u32 %v130, 2147483648
    %v259 = vxor.u32 %v131, 2147483648
    %v260 = vxor.u32 %v132, 2147483648
    %v261 = vxor.u32 %v133, 2147483648
    %v262 = vxor.u32 %v134, 2147483648
    %v263 = vxor.u32 %v135, 2147483648
    %v264 = vxor.u32 %v136, 2147483648
    %v265 = vxor.u32 %v137, 2147483648
    %v266 = vxor.u32 %v138, 2147483648
    %v267 = vxor.u32 %v139, 2147483648
    %v268 = vxor.u32 %v140, 2147483648
    %v269 = vxor.u32 %v141, 2147483648
    %v270 = vxor.u32 %v142, 2147483648
    %v271 = vxor.u32 %v143, 2147483648
    %v272 = vxor.u32 %v144, 2147483648
    %v273 = vxor.u32 %v145, 2147483648
    %v274 = vxor.u32 %v146, 2147483648
    %v275 = vxor.u32 %v147, 2147483648
    %v276 = vxor.u32 %v148, 2147483648
    %v277 = vxor.u32 %v149, 2147483648
    %v278 = vxor.u32 %v150, 2147483648
    %v279 = vxor.u32 %v151, 2147483648
    %v280 = vxor.u32 %v152, 2147483648
    %v281 = vxor.u32 %v153, 2147483648
    %v282 = vxor.u32 %v154, 2147483648
    %v283 = vxor.u32 %v155, 2147483648
    %v284 = vxor.u32 %v156, 2147483648
    %v285 = vxor.u32 %v157, 2147483648
    %v286 = vxor.u32 %v158, 2147483648
    %v287 = vmul.f32 %v159, 1.442695
    %v288 = vpow.pop %v287
    %v289 = vmul.f32 %v160, 1.442695
    %v290 = vpow.pop %v289
    %v291 = vmul.f32 %v161, 1.442695
    %v292 = vpow.pop %v291
    %v293 = vmul.f32 %v162, 1.442695
    %v294 = vpow.pop %v293
    %v295 = vmul.f32 %v163, 1.442695
    %v296 = vpow.pop %v295
    %v297 = vmul.f32 %v164, 1.442695
    %v298 = vpow.pop %v297
    %v299 = vmul.f32 %v165, 1.442695
    %v300 = vpow.pop %v299
    %v301 = vmul.f32 %v166, 1.442695
    %v302 = vpow.pop %v301
    %v303 = vmul.f32 %v167, 1.442695
    %v304 = vpow.pop %v303
    %v305 = vmul.f32 %v168, 1.442695
    %v306 = vpow.pop %v305
    %v307 = vmul.f32 %v169, 1.442695
    %v308 = vpow.pop %v307
    %v309 = vmul.f32 %v170, 1.442695
    %v310 = vpow.pop %v309
    %v311 = vmul.f32 %v171, 1.442695
    %v312 = vpow.pop %v311
    %v313 = vmul.f32 %v172, 1.442695
    %v314 = vpow.pop %v313
    %v315 = vmul.f32 %v173, 1.442695
    %v316 = vpow.pop %v315
    %v317 = vmul.f32 %v174, 1.442695
    %v318 = vpow.pop %v317
    %v319 = vmul.f32 %v175, 1.442695
    %v320 = vpow.pop %v319
    %v321 = vmul.f32 %v176, 1.442695
    %v322 = vpow.pop %v321
    %v323 = vmul.f32 %v177, 1.442695
    %v324 = vpow.pop %v323
    %v325 = vmul.f32 %v178, 1.442695
    %v326 = vpow.pop %v325
    %v327 = vmul.f32 %v179, 1.442695
    %v328 = vpow.pop %v327
    %v329 = vmul.f32 %v180, 1.442695
    %v330 = vpow.pop %v329
    %v331 = vmul.f32 %v181, 1.442695
    %v332 = vpow.pop %v331
    %v333 = vmul.f32 %v182, 1.442695
    %v334 = vpow.pop %v333
    %v335 = vmul.f32 %v183, 1.442695
    %v336 = vpow.pop %v335
    %v337 = vmul.f32 %v184, 1.442695
    %v338 = vpow.pop %v337
    %v339 = vmul.f32 %v185, 1.442695
    %v340 = vpow.pop %v339
    %v341 = vmul.f32 %v186, 1.442695
    %v342 = vpow.pop %v341
    %v343 = vmul.f32 %v187, 1.442695
    %v344 = vpow.pop %v343
    %v345 = vmul.f32 %v188, 1.442695
    %v346 = vpow.pop %v345
    %v347 = vmul.f32 %v189, 1.442695
    %v348 = vpow.pop %v347
    %v349 = vmul.f32 %v190, 1.442695
    %v350 = vpow.pop %v349
    %v351 = vmul.f32 %v191, 1.442695
    %v352 = vpow.pop %v351
    %v353 = vmul.f32 %v192, 1.442695
    %v354 = vpow.pop %v353
    %v355 = vmul.f32 %v193, 1.442695
    %v356 = vpow.pop %v355
    %v357 = vmul.f32 %v194, 1.442695
    %v358 = vpow.pop %v357
    %v359 = vmul.f32 %v195, 1.442695
    %v360 = vpow.pop %v359
    %v361 = vmul.f32 %v196, 1.442695
    %v362 = vpow.pop %v361
    %v363 = vmul.f32 %v197, 1.442695
    %v364 = vpow.pop %v363
    %v365 = vmul.f32 %v198, 1.442695
    %v366 = vpow.pop %v365
    %v367 = vmul.f32 %v199, 1.442695
    %v368 = vpow.pop %v367
    %v369 = vmul.f32 %v200, 1.442695
    %v370 = vpow.pop %v369
    %v371 = vmul.f32 %v201, 1.442695
    %v372 = vpow.pop %v371
    %v373 = vmul.f32 %v202, 1.442695
    %v374 = vpow.pop %v373
    %v375 = vmul.f32 %v203, 1.442695
    %v376 = vpow.pop %v375
    %v377 = vmul.f32 %v204, 1.442695
    %v378 = vpow.pop %v377
    %v379 = vmul.f32 %v205, 1.442695
    %v380 = vpow.pop %v379
    %v381 = vmul.f32 %v206, 1.442695
    %v382 = vpow.pop %v381
    %v383 = vmul.f32 %v207, 1.442695
    %v384 = vpow.pop %v383
    %v385 = vmul.f32 %v208, 1.442695
    %v386 = vpow.pop %v385
    %v387 = vmul.f32 %v209, 1.442695
    %v388 = vpow.pop %v387
    %v389 = vmul.f32 %v210, 1.442695
    %v390 = vpow.pop %v389
    %v391 = vmul.f32 %v211, 1.442695
    %v392 = vpow.pop %v391
    %v393 = vmul.f32 %v212, 1.442695
    %v394 = vpow.pop %v393
    %v395 = vmul.f32 %v213, 1.442695
    %v396 = vpow.pop %v395
    %v397 = vmul.f32 %v214, 1.442695
    %v398 = vpow.pop %v397
    %v399 = vmul.f32 %v215, 1.442695
    %v400 = vpow.pop %v399
    %v401 = vmul.f32 %v216, 1.442695
    %v402 = vpow.pop %v401
    %v403 = vmul.f32 %v217, 1.442695
    %v404 = vpow.pop %v403
    %v405 = vmul.f32 %v218, 1.442695
    %v406 = vpow.pop %v405
    %v407 = vmul.f32 %v219, 1.442695
    %v408 = vpow.pop %v407
    %v409 = vmul.f32 %v220, 1.442695
    %v410 = vpow.pop %v409
    %v411 = vmul.f32 %v221, 1.442695
    %v412 = vpow.pop %v411
    %v413 = vmul.f32 %v222, 1.442695
    %v414 = vpow.pop %v413
    %v415 = vmul.f32 %v223, 1.442695
    %v416 = vpow.pop %v415
    %v417 = vmul.f32 %v224, 1.442695
    %v418 = vpow.pop %v417
    %v419 = vmul.f32 %v225, 1.442695
    %v420 = vpow.pop %v419
    %v421 = vmul.f32 %v226, 1.442695
    %v422 = vpow.pop %v421
    %v423 = vmul.f32 %v227, 1.442695
    %v424 = vpow.pop %v423
    %v425 = vmul.f32 %v228, 1.442695
    %v426 = vpow.pop %v425
    %v427 = vmul.f32 %v229, 1.442695
    %v428 = vpow.pop %v427
    %v429 = vmul.f32 %v230, 1.442695
    %v430 = vpow.pop %v429
    %v431 = vmul.f32 %v231, 1.442695
    %v432 = vpow.pop %v431
    %v433 = vmul.f32 %v232, 1.442695
    %v434 = vpow.pop %v433
    %v435 = vmul.f32 %v233, 1.442695
    %v436 = vpow.pop %v435
    %v437 = vmul.f32 %v234, 1.442695
    %v438 = vpow.pop %v437
    %v439 = vmul.f32 %v235, 1.442695
    %v440 = vpow.pop %v439
    %v441 = vmul.f32 %v236, 1.442695
    %v442 = vpow.pop %v441
    %v443 = vmul.f32 %v237, 1.442695
    %v444 = vpow.pop %v443
    %v445 = vmul.f32 %v238, 1.442695
    %v446 = vpow.pop %v445
    %v447 = vmul.f32 %v239, 1.442695
    %v448 = vpow.pop %v447
    %v449 = vmul.f32 %v240, 1.442695
    %v450 = vpow.pop %v449
    %v451 = vmul.f32 %v241, 1.442695
    %v452 = vpow.pop %v451
    %v453 = vmul.f32 %v242, 1.442695
    %v454 = vpow.pop %v453
    %v455 = vmul.f32 %v243, 1.442695
    %v456 = vpow.pop %v455
    %v457 = vmul.f32 %v244, 1.442695
    %v458 = vpow.pop %v457
    %v459 = vmul.f32 %v245, 1.442695
    %v460 = vpow.pop %v459
    %v461 = vmul.f32 %v246, 1.442695
    %v462 = vpow.pop %v461
    %v463 = vmul.f32 %v247, 1.442695
    %v464 = vpow.pop %v463
    %v465 = vmul.f32 %v248, 1.442695
    %v466 = vpow.pop %v465
    %v467 = vmul.f32 %v249, 1.442695
    %v468 = vpow.pop %v467
    %v469 = vmul.f32 %v250, 1.442695
    %v470 = vpow.pop %v469
    %v471 = vmul.f32 %v251, 1.442695
    %v472 = vpow.pop %v471
    %v473 = vmul.f32 %v252, 1.442695
    %v474 = vpow.pop %v473
    %v475 = vmul.f32 %v253, 1.442695
    %v476 = vpow.pop %v475
    %v477 = vmul.f32 %v254, 1.442695
    %v478 = vpow.pop %v477
    %v479 = vmul.f32 %v255, 1.442695
    %v480 = vpow.pop %v479
    %v481 = vmul.f32 %v256, 1.442695
    %v482 = vpow.pop %v481
    %v483 = vmul.f32 %v257, 1.442695
    %v484 = vpow.pop %v483
    %v485 = vmul.f32 %v258, 1.442695
    %v486 = vpow.pop %v485
    %v487 = vmul.f32 %v259, 1.442695
    %v488 = vpow.pop %v487
    %v489 = vmul.f32 %v260, 1.442695
    %v490 = vpow.pop %v489
    %v491 = vmul.f32 %v261, 1.442695
    %v492 = vpow.pop %v491
    %v493 = vmul.f32 %v262, 1.442695
    %v494 = vpow.pop %v493
    %v495 = vmul.f32 %v263, 1.442695
    %v496 = vpow.pop %v495
    %v497 = vmul.f32 %v264, 1.442695
    %v498 = vpow.pop %v497
    %v499 = vmul.f32 %v265, 1.442695
    %v500 = vpow.pop %v499
    %v501 = vmul.f32 %v266, 1.442695
    %v502 = vpow.pop %v501
    %v503 = vmul.f32 %v267, 1.442695
    %v504 = vpow.pop %v503
    %v505 = vmul.f32 %v268, 1.442695
    %v506 = vpow.pop %v505
    %v507 = vmul.f32 %v269, 1.442695
    %v508 = vpow.pop %v507
    %v509 = vmul.f32 %v270, 1.442695
    %v510 = vpow.pop %v509
    %v511 = vmul.f32 %v271, 1.442695
    %v512 = vpow.pop %v511
    %v513 = vmul.f32 %v272, 1.442695
    %v514 = vpow.pop %v513
    %v515 = vmul.f32 %v273, 1.442695
    %v516 = vpow.pop %v515
    %v517 = vmul.f32 %v274, 1.442695
    %v518 = vpow.pop %v517
    %v519 = vmul.f32 %v275, 1.442695
    %v520 = vpow.pop %v519
    %v521 = vmul.f32 %v276, 1.442695
    %v522 = vpow.pop %v521
    %v523 = vmul.f32 %v277, 1.442695
    %v524 = vpow.pop %v523
    %v525 = vmul.f32 %v278, 1.442695
    %v526 = vpow.pop %v525
    %v527 = vmul.f32 %v279, 1.442695
    %v528 = vpow.pop %v527
    %v529 = vmul.f32 %v280, 1.442695
    %v530 = vpow.pop %v529
    %v531 = vmul.f32 %v281, 1.442695
    %v532 = vpow.pop %v531
    %v533 = vmul.f32 %v282, 1.442695
    %v534 = vpow.pop %v533
    %v535 = vmul.f32 %v283, 1.442695
    %v536 = vpow.pop %v535
    %v537 = vmul.f32 %v284, 1.442695
    %v538 = vpow.pop %v537
    %v539 = vmul.f32 %v285, 1.442695
    %v540 = vpow.pop %v539
    %v541 = vmul.f32 %v286, 1.442695
    %v542 = vpow.pop %v541
    %v543 = vadd.f32 %v288, 1.0
    %v544 = vadd.f32 %v290, 1.0
    %v545 = vadd.f32 %v292, 1.0
    %v546 = vadd.f32 %v294, 1.0
    %v547 = vadd.f32 %v296, 1.0
    %v548 = vadd.f32 %v298, 1.0
    %v549 = vadd.f32 %v300, 1.0
    %v550 = vadd.f32 %v302, 1.0
    %v551 = vadd.f32 %v304, 1.0
    %v552 = vadd.f32 %v306, 1.0
    %v553 = vadd.f32 %v308, 1.0
    %v554 = vadd.f32 %v310, 1.0
    %v555 = vadd.f32 %v312, 1.0
    %v556 = vadd.f32 %v314, 1.0
    %v557 = vadd.f32 %v316, 1.0
    %v558 = vadd.f32 %v318, 1.0
    %v559 = vadd.f32 %v320, 1.0
    %v560 = vadd.f32 %v322, 1.0
    %v561 = vadd.f32 %v324, 1.0
    %v562 = vadd.f32 %v326, 1.0
    %v563 = vadd.f32 %v328, 1.0
    %v564 = vadd.f32 %v330, 1.0
    %v565 = vadd.f32 %v332, 1.0
    %v566 = vadd.f32 %v334, 1.0
    %v567 = vadd.f32 %v336, 1.0
    %v568 = vadd.f32 %v338, 1.0
    %v569 = vadd.f32 %v340, 1.0
    %v570 = vadd.f32 %v342, 1.0
    %v571 = vadd.f32 %v344, 1.0
    %v572 = vadd.f32 %v346, 1.0
    %v573 = vadd.f32 %v348, 1.0
    %v574 = vadd.f32 %v350, 1.0
    %v575 = vadd.f32 %v352, 1.0
    %v576 = vadd.f32 %v354, 1.0
    %v577 = vadd.f32 %v356, 1.0
    %v578 = vadd.f32 %v358, 1.0
    %v579 = vadd.f32 %v360, 1.0
    %v580 = vadd.f32 %v362, 1.0
    %v581 = vadd.f32 %v364, 1.0
    %v582 = vadd.f32 %v366, 1.0
    %v583 = vadd.f32 %v368, 1.0
    %v584 = vadd.f32 %v370, 1.0
    %v585 = vadd.f32 %v372, 1.0
    %v586 = vadd.f32 %v374, 1.0
    %v587 = vadd.f32 %v376, 1.0
    %v588 = vadd.f32 %v378, 1.0
    %v589 = vadd.f32 %v380, 1.0
    %v590 = vadd.f32 %v382, 1.0
    %v591 = vadd.f32 %v384, 1.0
    %v592 = vadd.f32 %v386, 1.0
    %v593 = vadd.f32 %v388, 1.0
    %v594 = vadd.f32 %v390, 1.0
    %v595 = vadd.f32 %v392, 1.0
    %v596 = vadd.f32 %v394, 1.0
    %v597 = vadd.f32 %v396, 1.0
    %v598 = vadd.f32 %v398, 1.0
    %v599 = vadd.f32 %v400, 1.0
    %v600 = vadd.f32 %v402, 1.0
    %v601 = vadd.f32 %v404, 1.0
    %v602 = vadd.f32 %v406, 1.0
    %v603 = vadd.f32 %v408, 1.0
    %v604 = vadd.f32 %v410, 1.0
    %v605 = vadd.f32 %v412, 1.0
    %v606 = vadd.f32 %v414, 1.0
    %v607 = vadd.f32 %v416, 1.0
    %v608 = vadd.f32 %v418, 1.0
    %v609 = vadd.f32 %v420, 1.0
    %v610 = vadd.f32 %v422, 1.0
    %v611 = vadd.f32 %v424, 1.0
    %v612 = vadd.f32 %v426, 1.0
    %v613 = vadd.f32 %v428, 1.0
    %v614 = vadd.f32 %v430, 1.0
    %v615 = vadd.f32 %v432, 1.0
    %v616 = vadd.f32 %v434, 1.0
    %v617 = vadd.f32 %v436, 1.0
    %v618 = vadd.f32 %v438, 1.0
    %v619 = vadd.f32 %v440, 1.0
    %v620 = vadd.f32 %v442, 1.0
    %v621 = vadd.f32 %v444, 1.0
    %v622 = vadd.f32 %v446, 1.0
    %v623 = vadd.f32 %v448, 1.0
    %v624 = vadd.f32 %v450, 1.0
    %v625 = vadd.f32 %v452, 1.0
    %v626 = vadd.f32 %v454, 1.0
    %v627 = vadd.f32 %v456, 1.0
    %v628 = vadd.f32 %v458, 1.0
    %v629 = vadd.f32 %v460, 1.0
    %v630 = vadd.f32 %v462, 1.0
    %v631 = vadd.f32 %v464, 1.0
    %v632 = vadd.f32 %v466, 1.0
    %v633 = vadd.f32 %v468, 1.0
    %v634 = vadd.f32 %v470, 1.0
    %v635 = vadd.f32 %v472, 1.0
    %v636 = vadd.f32 %v474, 1.0
    %v637 = vadd.f32 %v476, 1.0
    %v638 = vadd.f32 %v478, 1.0
    %v639 = vadd.f32 %v480, 1.0
    %v640 = vadd.f32 %v482, 1.0
    %v641 = vadd.f32 %v484, 1.0
    %v642 = vadd.f32 %v486, 1.0
    %v643 = vadd.f32 %v488, 1.0
    %v644 = vadd.f32 %v490, 1.0
    %v645 = vadd.f32 %v492, 1.0
    %v646 = vadd.f32 %v494, 1.0
    %v647 = vadd.f32 %v496, 1.0
    %v648 = vadd.f32 %v498, 1.0
    %v649 = vadd.f32 %v500, 1.0
    %v650 = vadd.f32 %v502, 1.0
    %v651 = vadd.f32 %v504, 1.0
    %v652 = vadd.f32 %v506, 1.0
    %v653 = vadd.f32 %v508, 1.0
    %v654 = vadd.f32 %v510, 1.0
    %v655 = vadd.f32 %v512, 1.0
    %v656 = vadd.f32 %v514, 1.0
    %v657 = vadd.f32 %v516, 1.0
    %v658 = vadd.f32 %v518, 1.0
    %v659 = vadd.f32 %v520, 1.0
    %v660 = vadd.f32 %v522, 1.0
    %v661 = vadd.f32 %v524, 1.0
    %v662 = vadd.f32 %v526, 1.0
    %v663 = vadd.f32 %v528, 1.0
    %v664 = vadd.f32 %v530, 1.0
    %v665 = vadd.f32 %v532, 1.0
    %v666 = vadd.f32 %v534, 1.0
    %v667 = vadd.f32 %v536, 1.0
    %v668 = vadd.f32 %v538, 1.0
    %v669 = vadd.f32 %v540, 1.0
    %v670 = vadd.f32 %v542, 1.0
    %v671 = vrcp.pop %v543
    %v672 = vmul.f32 %v543, %v671
    %v673 = vsub.f32 1.0, %v672
    %v674 = vmul.f32 %v671, %v673
    %v675 = vadd.f32 %v671, %v674
    %vm676 = vweird.f32 %v543
    %vm677 = vweird.f32 %v671
    %vm678 = vmor %vm676, %vm677
    %v679 = vsel %vm678, %v671, %v675
    %v680 = vand.u32 2147483647, %v543
    %vm681 = vcmp.eq.f32.partialorder %v680, 8.507059e+37
    %v682 = vand.u32 %v543, 2147483648
    %v683 = vor.u32 1.1754944e-38, %v682
    %v684 = vsel %vm681, %v683, %v679
    %v685 = vmul.f32 1.0, %v684
    %v686 = vrcp.pop %v544
    %v687 = vmul.f32 %v544, %v686
    %v688 = vsub.f32 1.0, %v687
    %v689 = vmul.f32 %v686, %v688
    %v690 = vadd.f32 %v686, %v689
    %vm691 = vweird.f32 %v544
    %vm692 = vweird.f32 %v686
    %vm693 = vmor %vm691, %vm692
    %v694 = vsel %vm693, %v686, %v690
    %v695 = vand.u32 2147483647, %v544
    %vm696 = vcmp.eq.f32.partialorder %v695, 8.507059e+37
    %v697 = vand.u32 %v544, 2147483648
    %v698 = vor.u32 1.1754944e-38, %v697
    %v699 = vsel %vm696, %v698, %v694
    %v700 = vmul.f32 1.0, %v699
    %v701 = vrcp.pop %v545
    %v702 = vmul.f32 %v545, %v701
    %v703 = vsub.f32 1.0, %v702
    %v704 = vmul.f32 %v701, %v703
    %v705 = vadd.f32 %v701, %v704
    %vm706 = vweird.f32 %v545
    %vm707 = vweird.f32 %v701
    %vm708 = vmor %vm706, %vm707
    %v709 = vsel %vm708, %v701, %v705
    %v710 = vand.u32 2147483647, %v545
    %vm711 = vcmp.eq.f32.partialorder %v710, 8.507059e+37
    %v712 = vand.u32 %v545, 2147483648
    %v713 = vor.u32 1.1754944e-38, %v712
    %v714 = vsel %vm711, %v713, %v709
    %v715 = vmul.f32 1.0, %v714
    %v716 = vrcp.pop %v546
    %v717 = vmul.f32 %v546, %v716
    %v718 = vsub.f32 1.0, %v717
    %v719 = vmul.f32 %v716, %v718
    %v720 = vadd.f32 %v716, %v719
    %vm721 = vweird.f32 %v546
    %vm722 = vweird.f32 %v716
    %vm723 = vmor %vm721, %vm722
    %v724 = vsel %vm723, %v716, %v720
    %v725 = vand.u32 2147483647, %v546
    %vm726 = vcmp.eq.f32.partialorder %v725, 8.507059e+37
    %v727 = vand.u32 %v546, 2147483648
    %v728 = vor.u32 1.1754944e-38, %v727
    %v729 = vsel %vm726, %v728, %v724
    %v730 = vmul.f32 1.0, %v729
    %v731 = vrcp.pop %v547
    %v732 = vmul.f32 %v547, %v731
    %v733 = vsub.f32 1.0, %v732
    %v734 = vmul.f32 %v731, %v733
    %v735 = vadd.f32 %v731, %v734
    %vm736 = vweird.f32 %v547
    %vm737 = vweird.f32 %v731
    %vm738 = vmor %vm736, %vm737
    %v739 = vsel %vm738, %v731, %v735
    %v740 = vand.u32 2147483647, %v547
    %vm741 = vcmp.eq.f32.partialorder %v740, 8.507059e+37
    %v742 = vand.u32 %v547, 2147483648
    %v743 = vor.u32 1.1754944e-38, %v742
    %v744 = vsel %vm741, %v743, %v739
    %v745 = vmul.f32 1.0, %v744
    %v746 = vrcp.pop %v548
    %v747 = vmul.f32 %v548, %v746
    %v748 = vsub.f32 1.0, %v747
    %v749 = vmul.f32 %v746, %v748
    %v750 = vadd.f32 %v746, %v749
    %vm751 = vweird.f32 %v548
    %vm752 = vweird.f32 %v746
    %vm753 = vmor %vm751, %vm752
    %v754 = vsel %vm753, %v746, %v750
    %v755 = vand.u32 2147483647, %v548
    %vm756 = vcmp.eq.f32.partialorder %v755, 8.507059e+37
    %v757 = vand.u32 %v548, 2147483648
    %v758 = vor.u32 1.1754944e-38, %v757
    %v759 = vsel %vm756, %v758, %v754
    %v760 = vmul.f32 1.0, %v759
    %v761 = vrcp.pop %v549
    %v762 = vmul.f32 %v549, %v761
    %v763 = vsub.f32 1.0, %v762
    %v764 = vmul.f32 %v761, %v763
    %v765 = vadd.f32 %v761, %v764
    %vm766 = vweird.f32 %v549
    %vm767 = vweird.f32 %v761
    %vm768 = vmor %vm766, %vm767
    %v769 = vsel %vm768, %v761, %v765
    %v770 = vand.u32 2147483647, %v549
    %vm771 = vcmp.eq.f32.partialorder %v770, 8.507059e+37
    %v772 = vand.u32 %v549, 2147483648
    %v773 = vor.u32 1.1754944e-38, %v772
    %v774 = vsel %vm771, %v773, %v769
    %v775 = vmul.f32 1.0, %v774
    %v776 = vrcp.pop %v550
    %v777 = vmul.f32 %v550, %v776
    %v778 = vsub.f32 1.0, %v777
    %v779 = vmul.f32 %v776, %v778
    %v780 = vadd.f32 %v776, %v779
    %vm781 = vweird.f32 %v550
    %vm782 = vweird.f32 %v776
    %vm783 = vmor %vm781, %vm782
    %v784 = vsel %vm783, %v776, %v780
    %v785 = vand.u32 2147483647, %v550
    %vm786 = vcmp.eq.f32.partialorder %v785, 8.507059e+37
    %v787 = vand.u32 %v550, 2147483648
    %v788 = vor.u32 1.1754944e-38, %v787
    %v789 = vsel %vm786, %v788, %v784
    %v790 = vmul.f32 1.0, %v789
    %v791 = vrcp.pop %v551
    %v792 = vmul.f32 %v551, %v791
    %v793 = vsub.f32 1.0, %v792
    %v794 = vmul.f32 %v791, %v793
    %v795 = vadd.f32 %v791, %v794
    %vm796 = vweird.f32 %v551
    %vm797 = vweird.f32 %v791
    %vm798 = vmor %vm796, %vm797
    %v799 = vsel %vm798, %v791, %v795
    %v800 = vand.u32 2147483647, %v551
    %vm801 = vcmp.eq.f32.partialorder %v800, 8.507059e+37
    %v802 = vand.u32 %v551, 2147483648
    %v803 = vor.u32 1.1754944e-38, %v802
    %v804 = vsel %vm801, %v803, %v799
    %v805 = vmul.f32 1.0, %v804
    %v806 = vrcp.pop %v552
    %v807 = vmul.f32 %v552, %v806
    %v808 = vsub.f32 1.0, %v807
    %v809 = vmul.f32 %v806, %v808
    %v810 = vadd.f32 %v806, %v809
    %vm811 = vweird.f32 %v552
    %vm812 = vweird.f32 %v806
    %vm813 = vmor %vm811, %vm812
    %v814 = vsel %vm813, %v806, %v810
    %v815 = vand.u32 2147483647, %v552
    %vm816 = vcmp.eq.f32.partialorder %v815, 8.507059e+37
    %v817 = vand.u32 %v552, 2147483648
    %v818 = vor.u32 1.1754944e-38, %v817
    %v819 = vsel %vm816, %v818, %v814
    %v820 = vmul.f32 1.0, %v819
    %v821 = vrcp.pop %v553
    %v822 = vmul.f32 %v553, %v821
    %v823 = vsub.f32 1.0, %v822
    %v824 = vmul.f32 %v821, %v823
    %v825 = vadd.f32 %v821, %v824
    %vm826 = vweird.f32 %v553
    %vm827 = vweird.f32 %v821
    %vm828 = vmor %vm826, %vm827
    %v829 = vsel %vm828, %v821, %v825
    %v830 = vand.u32 2147483647, %v553
    %vm831 = vcmp.eq.f32.partialorder %v830, 8.507059e+37
    %v832 = vand.u32 %v553, 2147483648
    %v833 = vor.u32 1.1754944e-38, %v832
    %v834 = vsel %vm831, %v833, %v829
    %v835 = vmul.f32 1.0, %v834
    %v836 = vrcp.pop %v554
    %v837 = vmul.f32 %v554, %v836
    %v838 = vsub.f32 1.0, %v837
    %v839 = vmul.f32 %v836, %v838
    %v840 = vadd.f32 %v836, %v839
    %vm841 = vweird.f32 %v554
    %vm842 = vweird.f32 %v836
    %vm843 = vmor %vm841, %vm842
    %v844 = vsel %vm843, %v836, %v840
    %v845 = vand.u32 2147483647, %v554
    %vm846 = vcmp.eq.f32.partialorder %v845, 8.507059e+37
    %v847 = vand.u32 %v554, 2147483648
    %v848 = vor.u32 1.1754944e-38, %v847
    %v849 = vsel %vm846, %v848, %v844
    %v850 = vmul.f32 1.0, %v849
    %v851 = vrcp.pop %v555
    %v852 = vmul.f32 %v555, %v851
    %v853 = vsub.f32 1.0, %v852
    %v854 = vmul.f32 %v851, %v853
    %v855 = vadd.f32 %v851, %v854
    %vm856 = vweird.f32 %v555
    %vm857 = vweird.f32 %v851
    %vm858 = vmor %vm856, %vm857
    %v859 = vsel %vm858, %v851, %v855
    %v860 = vand.u32 2147483647, %v555
    %vm861 = vcmp.eq.f32.partialorder %v860, 8.507059e+37
    %v862 = vand.u32 %v555, 2147483648
    %v863 = vor.u32 1.1754944e-38, %v862
    %v864 = vsel %vm861, %v863, %v859
    %v865 = vmul.f32 1.0, %v864
    %v866 = vrcp.pop %v556
    %v867 = vmul.f32 %v556, %v866
    %v868 = vsub.f32 1.0, %v867
    %v869 = vmul.f32 %v866, %v868
    %v870 = vadd.f32 %v866, %v869
    %vm871 = vweird.f32 %v556
    %vm872 = vweird.f32 %v866
    %vm873 = vmor %vm871, %vm872
    %v874 = vsel %vm873, %v866, %v870
    %v875 = vand.u32 2147483647, %v556
    %vm876 = vcmp.eq.f32.partialorder %v875, 8.507059e+37
    %v877 = vand.u32 %v556, 2147483648
    %v878 = vor.u32 1.1754944e-38, %v877
    %v879 = vsel %vm876, %v878, %v874
    %v880 = vmul.f32 1.0, %v879
    %v881 = vrcp.pop %v557
    %v882 = vmul.f32 %v557, %v881
    %v883 = vsub.f32 1.0, %v882
    %v884 = vmul.f32 %v881, %v883
    %v885 = vadd.f32 %v881, %v884
    %vm886 = vweird.f32 %v557
    %vm887 = vweird.f32 %v881
    %vm888 = vmor %vm886, %vm887
    %v889 = vsel %vm888, %v881, %v885
    %v890 = vand.u32 2147483647, %v557
    %vm891 = vcmp.eq.f32.partialorder %v890, 8.507059e+37
    %v892 = vand.u32 %v557, 2147483648
    %v893 = vor.u32 1.1754944e-38, %v892
    %v894 = vsel %vm891, %v893, %v889
    %v895 = vmul.f32 1.0, %v894
    %v896 = vrcp.pop %v558
    %v897 = vmul.f32 %v558, %v896
    %v898 = vsub.f32 1.0, %v897
    %v899 = vmul.f32 %v896, %v898
    %v900 = vadd.f32 %v896, %v899
    %vm901 = vweird.f32 %v558
    %vm902 = vweird.f32 %v896
    %vm903 = vmor %vm901, %vm902
    %v904 = vsel %vm903, %v896, %v900
    %v905 = vand.u32 2147483647, %v558
    %vm906 = vcmp.eq.f32.partialorder %v905, 8.507059e+37
    %v907 = vand.u32 %v558, 2147483648
    %v908 = vor.u32 1.1754944e-38, %v907
    %v909 = vsel %vm906, %v908, %v904
    %v910 = vmul.f32 1.0, %v909
    %v911 = vrcp.pop %v559
    %v912 = vmul.f32 %v559, %v911
    %v913 = vsub.f32 1.0, %v912
    %v914 = vmul.f32 %v911, %v913
    %v915 = vadd.f32 %v911, %v914
    %vm916 = vweird.f32 %v559
    %vm917 = vweird.f32 %v911
    %vm918 = vmor %vm916, %vm917
    %v919 = vsel %vm918, %v911, %v915
    %v920 = vand.u32 2147483647, %v559
    %vm921 = vcmp.eq.f32.partialorder %v920, 8.507059e+37
    %v922 = vand.u32 %v559, 2147483648
    %v923 = vor.u32 1.1754944e-38, %v922
    %v924 = vsel %vm921, %v923, %v919
    %v925 = vmul.f32 1.0, %v924
    %v926 = vrcp.pop %v560
    %v927 = vmul.f32 %v560, %v926
    %v928 = vsub.f32 1.0, %v927
    %v929 = vmul.f32 %v926, %v928
    %v930 = vadd.f32 %v926, %v929
    %vm931 = vweird.f32 %v560
    %vm932 = vweird.f32 %v926
    %vm933 = vmor %vm931, %vm932
    %v934 = vsel %vm933, %v926, %v930
    %v935 = vand.u32 2147483647, %v560
    %vm936 = vcmp.eq.f32.partialorder %v935, 8.507059e+37
    %v937 = vand.u32 %v560, 2147483648
    %v938 = vor.u32 1.1754944e-38, %v937
    %v939 = vsel %vm936, %v938, %v934
    %v940 = vmul.f32 1.0, %v939
    %v941 = vrcp.pop %v561
    %v942 = vmul.f32 %v561, %v941
    %v943 = vsub.f32 1.0, %v942
    %v944 = vmul.f32 %v941, %v943
    %v945 = vadd.f32 %v941, %v944
    %vm946 = vweird.f32 %v561
    %vm947 = vweird.f32 %v941
    %vm948 = vmor %vm946, %vm947
    %v949 = vsel %vm948, %v941, %v945
    %v950 = vand.u32 2147483647, %v561
    %vm951 = vcmp.eq.f32.partialorder %v950, 8.507059e+37
    %v952 = vand.u32 %v561, 2147483648
    %v953 = vor.u32 1.1754944e-38, %v952
    %v954 = vsel %vm951, %v953, %v949
    %v955 = vmul.f32 1.0, %v954
    %v956 = vrcp.pop %v562
    %v957 = vmul.f32 %v562, %v956
    %v958 = vsub.f32 1.0, %v957
    %v959 = vmul.f32 %v956, %v958
    %v960 = vadd.f32 %v956, %v959
    %vm961 = vweird.f32 %v562
    %vm962 = vweird.f32 %v956
    %vm963 = vmor %vm961, %vm962
    %v964 = vsel %vm963, %v956, %v960
    %v965 = vand.u32 2147483647, %v562
    %vm966 = vcmp.eq.f32.partialorder %v965, 8.507059e+37
    %v967 = vand.u32 %v562, 2147483648
    %v968 = vor.u32 1.1754944e-38, %v967
    %v969 = vsel %vm966, %v968, %v964
    %v970 = vmul.f32 1.0, %v969
    %v971 = vrcp.pop %v563
    %v972 = vmul.f32 %v563, %v971
    %v973 = vsub.f32 1.0, %v972
    %v974 = vmul.f32 %v971, %v973
    %v975 = vadd.f32 %v971, %v974
    %vm976 = vweird.f32 %v563
    %vm977 = vweird.f32 %v971
    %vm978 = vmor %vm976, %vm977
    %v979 = vsel %vm978, %v971, %v975
    %v980 = vand.u32 2147483647, %v563
    %vm981 = vcmp.eq.f32.partialorder %v980, 8.507059e+37
    %v982 = vand.u32 %v563, 2147483648
    %v983 = vor.u32 1.1754944e-38, %v982
    %v984 = vsel %vm981, %v983, %v979
    %v985 = vmul.f32 1.0, %v984
    %v986 = vrcp.pop %v564
    %v987 = vmul.f32 %v564, %v986
    %v988 = vsub.f32 1.0, %v987
    %v989 = vmul.f32 %v986, %v988
    %v990 = vadd.f32 %v986, %v989
    %vm991 = vweird.f32 %v564
    %vm992 = vweird.f32 %v986
    %vm993 = vmor %vm991, %vm992
    %v994 = vsel %vm993, %v986, %v990
    %v995 = vand.u32 2147483647, %v564
    %vm996 = vcmp.eq.f32.partialorder %v995, 8.507059e+37
    %v997 = vand.u32 %v564, 2147483648
    %v998 = vor.u32 1.1754944e-38, %v997
    %v999 = vsel %vm996, %v998, %v994
    %v1000 = vmul.f32 1.0, %v999
    %v1001 = vrcp.pop %v565
    %v1002 = vmul.f32 %v565, %v1001
    %v1003 = vsub.f32 1.0, %v1002
    %v1004 = vmul.f32 %v1001, %v1003
    %v1005 = vadd.f32 %v1001, %v1004
    %vm1006 = vweird.f32 %v565
    %vm1007 = vweird.f32 %v1001
    %vm1008 = vmor %vm1006, %vm1007
    %v1009 = vsel %vm1008, %v1001, %v1005
    %v1010 = vand.u32 2147483647, %v565
    %vm1011 = vcmp.eq.f32.partialorder %v1010, 8.507059e+37
    %v1012 = vand.u32 %v565, 2147483648
    %v1013 = vor.u32 1.1754944e-38, %v1012
    %v1014 = vsel %vm1011, %v1013, %v1009
    %v1015 = vmul.f32 1.0, %v1014
    %v1016 = vrcp.pop %v566
    %v1017 = vmul.f32 %v566, %v1016
    %v1018 = vsub.f32 1.0, %v1017
    %v1019 = vmul.f32 %v1016, %v1018
    %v1020 = vadd.f32 %v1016, %v1019
    %vm1021 = vweird.f32 %v566
    %vm1022 = vweird.f32 %v1016
    %vm1023 = vmor %vm1021, %vm1022
    %v1024 = vsel %vm1023, %v1016, %v1020
    %v1025 = vand.u32 2147483647, %v566
    %vm1026 = vcmp.eq.f32.partialorder %v1025, 8.507059e+37
    %v1027 = vand.u32 %v566, 2147483648
    %v1028 = vor.u32 1.1754944e-38, %v1027
    %v1029 = vsel %vm1026, %v1028, %v1024
    %v1030 = vmul.f32 1.0, %v1029
    %v1031 = vrcp.pop %v567
    %v1032 = vmul.f32 %v567, %v1031
    %v1033 = vsub.f32 1.0, %v1032
    %v1034 = vmul.f32 %v1031, %v1033
    %v1035 = vadd.f32 %v1031, %v1034
    %vm1036 = vweird.f32 %v567
    %vm1037 = vweird.f32 %v1031
    %vm1038 = vmor %vm1036, %vm1037
    %v1039 = vsel %vm1038, %v1031, %v1035
    %v1040 = vand.u32 2147483647, %v567
    %vm1041 = vcmp.eq.f32.partialorder %v1040, 8.507059e+37
    %v1042 = vand.u32 %v567, 2147483648
    %v1043 = vor.u32 1.1754944e-38, %v1042
    %v1044 = vsel %vm1041, %v1043, %v1039
    %v1045 = vmul.f32 1.0, %v1044
    %v1046 = vrcp.pop %v568
    %v1047 = vmul.f32 %v568, %v1046
    %v1048 = vsub.f32 1.0, %v1047
    %v1049 = vmul.f32 %v1046, %v1048
    %v1050 = vadd.f32 %v1046, %v1049
    %vm1051 = vweird.f32 %v568
    %vm1052 = vweird.f32 %v1046
    %vm1053 = vmor %vm1051, %vm1052
    %v1054 = vsel %vm1053, %v1046, %v1050
    %v1055 = vand.u32 2147483647, %v568
    %vm1056 = vcmp.eq.f32.partialorder %v1055, 8.507059e+37
    %v1057 = vand.u32 %v568, 2147483648
    %v1058 = vor.u32 1.1754944e-38, %v1057
    %v1059 = vsel %vm1056, %v1058, %v1054
    %v1060 = vmul.f32 1.0, %v1059
    %v1061 = vrcp.pop %v569
    %v1062 = vmul.f32 %v569, %v1061
    %v1063 = vsub.f32 1.0, %v1062
    %v1064 = vmul.f32 %v1061, %v1063
    %v1065 = vadd.f32 %v1061, %v1064
    %vm1066 = vweird.f32 %v569
    %vm1067 = vweird.f32 %v1061
    %vm1068 = vmor %vm1066, %vm1067
    %v1069 = vsel %vm1068, %v1061, %v1065
    %v1070 = vand.u32 2147483647, %v569
    %vm1071 = vcmp.eq.f32.partialorder %v1070, 8.507059e+37
    %v1072 = vand.u32 %v569, 2147483648
    %v1073 = vor.u32 1.1754944e-38, %v1072
    %v1074 = vsel %vm1071, %v1073, %v1069
    %v1075 = vmul.f32 1.0, %v1074
    %v1076 = vrcp.pop %v570
    %v1077 = vmul.f32 %v570, %v1076
    %v1078 = vsub.f32 1.0, %v1077
    %v1079 = vmul.f32 %v1076, %v1078
    %v1080 = vadd.f32 %v1076, %v1079
    %vm1081 = vweird.f32 %v570
    %vm1082 = vweird.f32 %v1076
    %vm1083 = vmor %vm1081, %vm1082
    %v1084 = vsel %vm1083, %v1076, %v1080
    %v1085 = vand.u32 2147483647, %v570
    %vm1086 = vcmp.eq.f32.partialorder %v1085, 8.507059e+37
    %v1087 = vand.u32 %v570, 2147483648
    %v1088 = vor.u32 1.1754944e-38, %v1087
    %v1089 = vsel %vm1086, %v1088, %v1084
    %v1090 = vmul.f32 1.0, %v1089
    %v1091 = vrcp.pop %v571
    %v1092 = vmul.f32 %v571, %v1091
    %v1093 = vsub.f32 1.0, %v1092
    %v1094 = vmul.f32 %v1091, %v1093
    %v1095 = vadd.f32 %v1091, %v1094
    %vm1096 = vweird.f32 %v571
    %vm1097 = vweird.f32 %v1091
    %vm1098 = vmor %vm1096, %vm1097
    %v1099 = vsel %vm1098, %v1091, %v1095
    %v1100 = vand.u32 2147483647, %v571
    %vm1101 = vcmp.eq.f32.partialorder %v1100, 8.507059e+37
    %v1102 = vand.u32 %v571, 2147483648
    %v1103 = vor.u32 1.1754944e-38, %v1102
    %v1104 = vsel %vm1101, %v1103, %v1099
    %v1105 = vmul.f32 1.0, %v1104
    %v1106 = vrcp.pop %v572
    %v1107 = vmul.f32 %v572, %v1106
    %v1108 = vsub.f32 1.0, %v1107
    %v1109 = vmul.f32 %v1106, %v1108
    %v1110 = vadd.f32 %v1106, %v1109
    %vm1111 = vweird.f32 %v572
    %vm1112 = vweird.f32 %v1106
    %vm1113 = vmor %vm1111, %vm1112
    %v1114 = vsel %vm1113, %v1106, %v1110
    %v1115 = vand.u32 2147483647, %v572
    %vm1116 = vcmp.eq.f32.partialorder %v1115, 8.507059e+37
    %v1117 = vand.u32 %v572, 2147483648
    %v1118 = vor.u32 1.1754944e-38, %v1117
    %v1119 = vsel %vm1116, %v1118, %v1114
    %v1120 = vmul.f32 1.0, %v1119
    %v1121 = vrcp.pop %v573
    %v1122 = vmul.f32 %v573, %v1121
    %v1123 = vsub.f32 1.0, %v1122
    %v1124 = vmul.f32 %v1121, %v1123
    %v1125 = vadd.f32 %v1121, %v1124
    %vm1126 = vweird.f32 %v573
    %vm1127 = vweird.f32 %v1121
    %vm1128 = vmor %vm1126, %vm1127
    %v1129 = vsel %vm1128, %v1121, %v1125
    %v1130 = vand.u32 2147483647, %v573
    %vm1131 = vcmp.eq.f32.partialorder %v1130, 8.507059e+37
    %v1132 = vand.u32 %v573, 2147483648
    %v1133 = vor.u32 1.1754944e-38, %v1132
    %v1134 = vsel %vm1131, %v1133, %v1129
    %v1135 = vmul.f32 1.0, %v1134
    %v1136 = vrcp.pop %v574
    %v1137 = vmul.f32 %v574, %v1136
    %v1138 = vsub.f32 1.0, %v1137
    %v1139 = vmul.f32 %v1136, %v1138
    %v1140 = vadd.f32 %v1136, %v1139
    %vm1141 = vweird.f32 %v574
    %vm1142 = vweird.f32 %v1136
    %vm1143 = vmor %vm1141, %vm1142
    %v1144 = vsel %vm1143, %v1136, %v1140
    %v1145 = vand.u32 2147483647, %v574
    %vm1146 = vcmp.eq.f32.partialorder %v1145, 8.507059e+37
    %v1147 = vand.u32 %v574, 2147483648
    %v1148 = vor.u32 1.1754944e-38, %v1147
    %v1149 = vsel %vm1146, %v1148, %v1144
    %v1150 = vmul.f32 1.0, %v1149
    %v1151 = vrcp.pop %v575
    %v1152 = vmul.f32 %v575, %v1151
    %v1153 = vsub.f32 1.0, %v1152
    %v1154 = vmul.f32 %v1151, %v1153
    %v1155 = vadd.f32 %v1151, %v1154
    %vm1156 = vweird.f32 %v575
    %vm1157 = vweird.f32 %v1151
    %vm1158 = vmor %vm1156, %vm1157
    %v1159 = vsel %vm1158, %v1151, %v1155
    %v1160 = vand.u32 2147483647, %v575
    %vm1161 = vcmp.eq.f32.partialorder %v1160, 8.507059e+37
    %v1162 = vand.u32 %v575, 2147483648
    %v1163 = vor.u32 1.1754944e-38, %v1162
    %v1164 = vsel %vm1161, %v1163, %v1159
    %v1165 = vmul.f32 1.0, %v1164
    %v1166 = vrcp.pop %v576
    %v1167 = vmul.f32 %v576, %v1166
    %v1168 = vsub.f32 1.0, %v1167
    %v1169 = vmul.f32 %v1166, %v1168
    %v1170 = vadd.f32 %v1166, %v1169
    %vm1171 = vweird.f32 %v576
    %vm1172 = vweird.f32 %v1166
    %vm1173 = vmor %vm1171, %vm1172
    %v1174 = vsel %vm1173, %v1166, %v1170
    %v1175 = vand.u32 2147483647, %v576
    %vm1176 = vcmp.eq.f32.partialorder %v1175, 8.507059e+37
    %v1177 = vand.u32 %v576, 2147483648
    %v1178 = vor.u32 1.1754944e-38, %v1177
    %v1179 = vsel %vm1176, %v1178, %v1174
    %v1180 = vmul.f32 1.0, %v1179
    %v1181 = vrcp.pop %v577
    %v1182 = vmul.f32 %v577, %v1181
    %v1183 = vsub.f32 1.0, %v1182
    %v1184 = vmul.f32 %v1181, %v1183
    %v1185 = vadd.f32 %v1181, %v1184
    %vm1186 = vweird.f32 %v577
    %vm1187 = vweird.f32 %v1181
    %vm1188 = vmor %vm1186, %vm1187
    %v1189 = vsel %vm1188, %v1181, %v1185
    %v1190 = vand.u32 2147483647, %v577
    %vm1191 = vcmp.eq.f32.partialorder %v1190, 8.507059e+37
    %v1192 = vand.u32 %v577, 2147483648
    %v1193 = vor.u32 1.1754944e-38, %v1192
    %v1194 = vsel %vm1191, %v1193, %v1189
    %v1195 = vmul.f32 1.0, %v1194
    %v1196 = vrcp.pop %v578
    %v1197 = vmul.f32 %v578, %v1196
    %v1198 = vsub.f32 1.0, %v1197
    %v1199 = vmul.f32 %v1196, %v1198
    %v1200 = vadd.f32 %v1196, %v1199
    %vm1201 = vweird.f32 %v578
    %vm1202 = vweird.f32 %v1196
    %vm1203 = vmor %vm1201, %vm1202
    %v1204 = vsel %vm1203, %v1196, %v1200
    %v1205 = vand.u32 2147483647, %v578
    %vm1206 = vcmp.eq.f32.partialorder %v1205, 8.507059e+37
    %v1207 = vand.u32 %v578, 2147483648
    %v1208 = vor.u32 1.1754944e-38, %v1207
    %v1209 = vsel %vm1206, %v1208, %v1204
    %v1210 = vmul.f32 1.0, %v1209
    %v1211 = vrcp.pop %v579
    %v1212 = vmul.f32 %v579, %v1211
    %v1213 = vsub.f32 1.0, %v1212
    %v1214 = vmul.f32 %v1211, %v1213
    %v1215 = vadd.f32 %v1211, %v1214
    %vm1216 = vweird.f32 %v579
    %vm1217 = vweird.f32 %v1211
    %vm1218 = vmor %vm1216, %vm1217
    %v1219 = vsel %vm1218, %v1211, %v1215
    %v1220 = vand.u32 2147483647, %v579
    %vm1221 = vcmp.eq.f32.partialorder %v1220, 8.507059e+37
    %v1222 = vand.u32 %v579, 2147483648
    %v1223 = vor.u32 1.1754944e-38, %v1222
    %v1224 = vsel %vm1221, %v1223, %v1219
    %v1225 = vmul.f32 1.0, %v1224
    %v1226 = vrcp.pop %v580
    %v1227 = vmul.f32 %v580, %v1226
    %v1228 = vsub.f32 1.0, %v1227
    %v1229 = vmul.f32 %v1226, %v1228
    %v1230 = vadd.f32 %v1226, %v1229
    %vm1231 = vweird.f32 %v580
    %vm1232 = vweird.f32 %v1226
    %vm1233 = vmor %vm1231, %vm1232
    %v1234 = vsel %vm1233, %v1226, %v1230
    %v1235 = vand.u32 2147483647, %v580
    %vm1236 = vcmp.eq.f32.partialorder %v1235, 8.507059e+37
    %v1237 = vand.u32 %v580, 2147483648
    %v1238 = vor.u32 1.1754944e-38, %v1237
    %v1239 = vsel %vm1236, %v1238, %v1234
    %v1240 = vmul.f32 1.0, %v1239
    %v1241 = vrcp.pop %v581
    %v1242 = vmul.f32 %v581, %v1241
    %v1243 = vsub.f32 1.0, %v1242
    %v1244 = vmul.f32 %v1241, %v1243
    %v1245 = vadd.f32 %v1241, %v1244
    %vm1246 = vweird.f32 %v581
    %vm1247 = vweird.f32 %v1241
    %vm1248 = vmor %vm1246, %vm1247
    %v1249 = vsel %vm1248, %v1241, %v1245
    %v1250 = vand.u32 2147483647, %v581
    %vm1251 = vcmp.eq.f32.partialorder %v1250, 8.507059e+37
    %v1252 = vand.u32 %v581, 2147483648
    %v1253 = vor.u32 1.1754944e-38, %v1252
    %v1254 = vsel %vm1251, %v1253, %v1249
    %v1255 = vmul.f32 1.0, %v1254
    %v1256 = vrcp.pop %v582
    %v1257 = vmul.f32 %v582, %v1256
    %v1258 = vsub.f32 1.0, %v1257
    %v1259 = vmul.f32 %v1256, %v1258
    %v1260 = vadd.f32 %v1256, %v1259
    %vm1261 = vweird.f32 %v582
    %vm1262 = vweird.f32 %v1256
    %vm1263 = vmor %vm1261, %vm1262
    %v1264 = vsel %vm1263, %v1256, %v1260
    %v1265 = vand.u32 2147483647, %v582
    %vm1266 = vcmp.eq.f32.partialorder %v1265, 8.507059e+37
    %v1267 = vand.u32 %v582, 2147483648
    %v1268 = vor.u32 1.1754944e-38, %v1267
    %v1269 = vsel %vm1266, %v1268, %v1264
    %v1270 = vmul.f32 1.0, %v1269
    %v1271 = vrcp.pop %v583
    %v1272 = vmul.f32 %v583, %v1271
    %v1273 = vsub.f32 1.0, %v1272
    %v1274 = vmul.f32 %v1271, %v1273
    %v1275 = vadd.f32 %v1271, %v1274
    %vm1276 = vweird.f32 %v583
    %vm1277 = vweird.f32 %v1271
    %vm1278 = vmor %vm1276, %vm1277
    %v1279 = vsel %vm1278, %v1271, %v1275
    %v1280 = vand.u32 2147483647, %v583
    %vm1281 = vcmp.eq.f32.partialorder %v1280, 8.507059e+37
    %v1282 = vand.u32 %v583, 2147483648
    %v1283 = vor.u32 1.1754944e-38, %v1282
    %v1284 = vsel %vm1281, %v1283, %v1279
    %v1285 = vmul.f32 1.0, %v1284
    %v1286 = vrcp.pop %v584
    %v1287 = vmul.f32 %v584, %v1286
    %v1288 = vsub.f32 1.0, %v1287
    %v1289 = vmul.f32 %v1286, %v1288
    %v1290 = vadd.f32 %v1286, %v1289
    %vm1291 = vweird.f32 %v584
    %vm1292 = vweird.f32 %v1286
    %vm1293 = vmor %vm1291, %vm1292
    %v1294 = vsel %vm1293, %v1286, %v1290
    %v1295 = vand.u32 2147483647, %v584
    %vm1296 = vcmp.eq.f32.partialorder %v1295, 8.507059e+37
    %v1297 = vand.u32 %v584, 2147483648
    %v1298 = vor.u32 1.1754944e-38, %v1297
    %v1299 = vsel %vm1296, %v1298, %v1294
    %v1300 = vmul.f32 1.0, %v1299
    %v1301 = vrcp.pop %v585
    %v1302 = vmul.f32 %v585, %v1301
    %v1303 = vsub.f32 1.0, %v1302
    %v1304 = vmul.f32 %v1301, %v1303
    %v1305 = vadd.f32 %v1301, %v1304
    %vm1306 = vweird.f32 %v585
    %vm1307 = vweird.f32 %v1301
    %vm1308 = vmor %vm1306, %vm1307
    %v1309 = vsel %vm1308, %v1301, %v1305
    %v1310 = vand.u32 2147483647, %v585
    %vm1311 = vcmp.eq.f32.partialorder %v1310, 8.507059e+37
    %v1312 = vand.u32 %v585, 2147483648
    %v1313 = vor.u32 1.1754944e-38, %v1312
    %v1314 = vsel %vm1311, %v1313, %v1309
    %v1315 = vmul.f32 1.0, %v1314
    %v1316 = vrcp.pop %v586
    %v1317 = vmul.f32 %v586, %v1316
    %v1318 = vsub.f32 1.0, %v1317
    %v1319 = vmul.f32 %v1316, %v1318
    %v1320 = vadd.f32 %v1316, %v1319
    %vm1321 = vweird.f32 %v586
    %vm1322 = vweird.f32 %v1316
    %vm1323 = vmor %vm1321, %vm1322
    %v1324 = vsel %vm1323, %v1316, %v1320
    %v1325 = vand.u32 2147483647, %v586
    %vm1326 = vcmp.eq.f32.partialorder %v1325, 8.507059e+37
    %v1327 = vand.u32 %v586, 2147483648
    %v1328 = vor.u32 1.1754944e-38, %v1327
    %v1329 = vsel %vm1326, %v1328, %v1324
    %v1330 = vmul.f32 1.0, %v1329
    %v1331 = vrcp.pop %v587
    %v1332 = vmul.f32 %v587, %v1331
    %v1333 = vsub.f32 1.0, %v1332
    %v1334 = vmul.f32 %v1331, %v1333
    %v1335 = vadd.f32 %v1331, %v1334
    %vm1336 = vweird.f32 %v587
    %vm1337 = vweird.f32 %v1331
    %vm1338 = vmor %vm1336, %vm1337
    %v1339 = vsel %vm1338, %v1331, %v1335
    %v1340 = vand.u32 2147483647, %v587
    %vm1341 = vcmp.eq.f32.partialorder %v1340, 8.507059e+37
    %v1342 = vand.u32 %v587, 2147483648
    %v1343 = vor.u32 1.1754944e-38, %v1342
    %v1344 = vsel %vm1341, %v1343, %v1339
    %v1345 = vmul.f32 1.0, %v1344
    %v1346 = vrcp.pop %v588
    %v1347 = vmul.f32 %v588, %v1346
    %v1348 = vsub.f32 1.0, %v1347
    %v1349 = vmul.f32 %v1346, %v1348
    %v1350 = vadd.f32 %v1346, %v1349
    %vm1351 = vweird.f32 %v588
    %vm1352 = vweird.f32 %v1346
    %vm1353 = vmor %vm1351, %vm1352
    %v1354 = vsel %vm1353, %v1346, %v1350
    %v1355 = vand.u32 2147483647, %v588
    %vm1356 = vcmp.eq.f32.partialorder %v1355, 8.507059e+37
    %v1357 = vand.u32 %v588, 2147483648
    %v1358 = vor.u32 1.1754944e-38, %v1357
    %v1359 = vsel %vm1356, %v1358, %v1354
    %v1360 = vmul.f32 1.0, %v1359
    %v1361 = vrcp.pop %v589
    %v1362 = vmul.f32 %v589, %v1361
    %v1363 = vsub.f32 1.0, %v1362
    %v1364 = vmul.f32 %v1361, %v1363
    %v1365 = vadd.f32 %v1361, %v1364
    %vm1366 = vweird.f32 %v589
    %vm1367 = vweird.f32 %v1361
    %vm1368 = vmor %vm1366, %vm1367
    %v1369 = vsel %vm1368, %v1361, %v1365
    %v1370 = vand.u32 2147483647, %v589
    %vm1371 = vcmp.eq.f32.partialorder %v1370, 8.507059e+37
    %v1372 = vand.u32 %v589, 2147483648
    %v1373 = vor.u32 1.1754944e-38, %v1372
    %v1374 = vsel %vm1371, %v1373, %v1369
    %v1375 = vmul.f32 1.0, %v1374
    %v1376 = vrcp.pop %v590
    %v1377 = vmul.f32 %v590, %v1376
    %v1378 = vsub.f32 1.0, %v1377
    %v1379 = vmul.f32 %v1376, %v1378
    %v1380 = vadd.f32 %v1376, %v1379
    %vm1381 = vweird.f32 %v590
    %vm1382 = vweird.f32 %v1376
    %vm1383 = vmor %vm1381, %vm1382
    %v1384 = vsel %vm1383, %v1376, %v1380
    %v1385 = vand.u32 2147483647, %v590
    %vm1386 = vcmp.eq.f32.partialorder %v1385, 8.507059e+37
    %v1387 = vand.u32 %v590, 2147483648
    %v1388 = vor.u32 1.1754944e-38, %v1387
    %v1389 = vsel %vm1386, %v1388, %v1384
    %v1390 = vmul.f32 1.0, %v1389
    %v1391 = vrcp.pop %v591
    %v1392 = vmul.f32 %v591, %v1391
    %v1393 = vsub.f32 1.0, %v1392
    %v1394 = vmul.f32 %v1391, %v1393
    %v1395 = vadd.f32 %v1391, %v1394
    %vm1396 = vweird.f32 %v591
    %vm1397 = vweird.f32 %v1391
    %vm1398 = vmor %vm1396, %vm1397
    %v1399 = vsel %vm1398, %v1391, %v1395
    %v1400 = vand.u32 2147483647, %v591
    %vm1401 = vcmp.eq.f32.partialorder %v1400, 8.507059e+37
    %v1402 = vand.u32 %v591, 2147483648
    %v1403 = vor.u32 1.1754944e-38, %v1402
    %v1404 = vsel %vm1401, %v1403, %v1399
    %v1405 = vmul.f32 1.0, %v1404
    %v1406 = vrcp.pop %v592
    %v1407 = vmul.f32 %v592, %v1406
    %v1408 = vsub.f32 1.0, %v1407
    %v1409 = vmul.f32 %v1406, %v1408
    %v1410 = vadd.f32 %v1406, %v1409
    %vm1411 = vweird.f32 %v592
    %vm1412 = vweird.f32 %v1406
    %vm1413 = vmor %vm1411, %vm1412
    %v1414 = vsel %vm1413, %v1406, %v1410
    %v1415 = vand.u32 2147483647, %v592
    %vm1416 = vcmp.eq.f32.partialorder %v1415, 8.507059e+37
    %v1417 = vand.u32 %v592, 2147483648
    %v1418 = vor.u32 1.1754944e-38, %v1417
    %v1419 = vsel %vm1416, %v1418, %v1414
    %v1420 = vmul.f32 1.0, %v1419
    %v1421 = vrcp.pop %v593
    %v1422 = vmul.f32 %v593, %v1421
    %v1423 = vsub.f32 1.0, %v1422
    %v1424 = vmul.f32 %v1421, %v1423
    %v1425 = vadd.f32 %v1421, %v1424
    %vm1426 = vweird.f32 %v593
    %vm1427 = vweird.f32 %v1421
    %vm1428 = vmor %vm1426, %vm1427
    %v1429 = vsel %vm1428, %v1421, %v1425
    %v1430 = vand.u32 2147483647, %v593
    %vm1431 = vcmp.eq.f32.partialorder %v1430, 8.507059e+37
    %v1432 = vand.u32 %v593, 2147483648
    %v1433 = vor.u32 1.1754944e-38, %v1432
    %v1434 = vsel %vm1431, %v1433, %v1429
    %v1435 = vmul.f32 1.0, %v1434
    %v1436 = vrcp.pop %v594
    %v1437 = vmul.f32 %v594, %v1436
    %v1438 = vsub.f32 1.0, %v1437
    %v1439 = vmul.f32 %v1436, %v1438
    %v1440 = vadd.f32 %v1436, %v1439
    %vm1441 = vweird.f32 %v594
    %vm1442 = vweird.f32 %v1436
    %vm1443 = vmor %vm1441, %vm1442
    %v1444 = vsel %vm1443, %v1436, %v1440
    %v1445 = vand.u32 2147483647, %v594
    %vm1446 = vcmp.eq.f32.partialorder %v1445, 8.507059e+37
    %v1447 = vand.u32 %v594, 2147483648
    %v1448 = vor.u32 1.1754944e-38, %v1447
    %v1449 = vsel %vm1446, %v1448, %v1444
    %v1450 = vmul.f32 1.0, %v1449
    %v1451 = vrcp.pop %v595
    %v1452 = vmul.f32 %v595, %v1451
    %v1453 = vsub.f32 1.0, %v1452
    %v1454 = vmul.f32 %v1451, %v1453
    %v1455 = vadd.f32 %v1451, %v1454
    %vm1456 = vweird.f32 %v595
    %vm1457 = vweird.f32 %v1451
    %vm1458 = vmor %vm1456, %vm1457
    %v1459 = vsel %vm1458, %v1451, %v1455
    %v1460 = vand.u32 2147483647, %v595
    %vm1461 = vcmp.eq.f32.partialorder %v1460, 8.507059e+37
    %v1462 = vand.u32 %v595, 2147483648
    %v1463 = vor.u32 1.1754944e-38, %v1462
    %v1464 = vsel %vm1461, %v1463, %v1459
    %v1465 = vmul.f32 1.0, %v1464
    %v1466 = vrcp.pop %v596
    %v1467 = vmul.f32 %v596, %v1466
    %v1468 = vsub.f32 1.0, %v1467
    %v1469 = vmul.f32 %v1466, %v1468
    %v1470 = vadd.f32 %v1466, %v1469
    %vm1471 = vweird.f32 %v596
    %vm1472 = vweird.f32 %v1466
    %vm1473 = vmor %vm1471, %vm1472
    %v1474 = vsel %vm1473, %v1466, %v1470
    %v1475 = vand.u32 2147483647, %v596
    %vm1476 = vcmp.eq.f32.partialorder %v1475, 8.507059e+37
    %v1477 = vand.u32 %v596, 2147483648
    %v1478 = vor.u32 1.1754944e-38, %v1477
    %v1479 = vsel %vm1476, %v1478, %v1474
    %v1480 = vmul.f32 1.0, %v1479
    %v1481 = vrcp.pop %v597
    %v1482 = vmul.f32 %v597, %v1481
    %v1483 = vsub.f32 1.0, %v1482
    %v1484 = vmul.f32 %v1481, %v1483
    %v1485 = vadd.f32 %v1481, %v1484
    %vm1486 = vweird.f32 %v597
    %vm1487 = vweird.f32 %v1481
    %vm1488 = vmor %vm1486, %vm1487
    %v1489 = vsel %vm1488, %v1481, %v1485
    %v1490 = vand.u32 2147483647, %v597
    %vm1491 = vcmp.eq.f32.partialorder %v1490, 8.507059e+37
    %v1492 = vand.u32 %v597, 2147483648
    %v1493 = vor.u32 1.1754944e-38, %v1492
    %v1494 = vsel %vm1491, %v1493, %v1489
    %v1495 = vmul.f32 1.0, %v1494
    %v1496 = vrcp.pop %v598
    %v1497 = vmul.f32 %v598, %v1496
    %v1498 = vsub.f32 1.0, %v1497
    %v1499 = vmul.f32 %v1496, %v1498
    %v1500 = vadd.f32 %v1496, %v1499
    %vm1501 = vweird.f32 %v598
    %vm1502 = vweird.f32 %v1496
    %vm1503 = vmor %vm1501, %vm1502
    %v1504 = vsel %vm1503, %v1496, %v1500
    %v1505 = vand.u32 2147483647, %v598
    %vm1506 = vcmp.eq.f32.partialorder %v1505, 8.507059e+37
    %v1507 = vand.u32 %v598, 2147483648
    %v1508 = vor.u32 1.1754944e-38, %v1507
    %v1509 = vsel %vm1506, %v1508, %v1504
    %v1510 = vmul.f32 1.0, %v1509
    %v1511 = vrcp.pop %v599
    %v1512 = vmul.f32 %v599, %v1511
    %v1513 = vsub.f32 1.0, %v1512
    %v1514 = vmul.f32 %v1511, %v1513
    %v1515 = vadd.f32 %v1511, %v1514
    %vm1516 = vweird.f32 %v599
    %vm1517 = vweird.f32 %v1511
    %vm1518 = vmor %vm1516, %vm1517
    %v1519 = vsel %vm1518, %v1511, %v1515
    %v1520 = vand.u32 2147483647, %v599
    %vm1521 = vcmp.eq.f32.partialorder %v1520, 8.507059e+37
    %v1522 = vand.u32 %v599, 2147483648
    %v1523 = vor.u32 1.1754944e-38, %v1522
    %v1524 = vsel %vm1521, %v1523, %v1519
    %v1525 = vmul.f32 1.0, %v1524
    %v1526 = vrcp.pop %v600
    %v1527 = vmul.f32 %v600, %v1526
    %v1528 = vsub.f32 1.0, %v1527
    %v1529 = vmul.f32 %v1526, %v1528
    %v1530 = vadd.f32 %v1526, %v1529
    %vm1531 = vweird.f32 %v600
    %vm1532 = vweird.f32 %v1526
    %vm1533 = vmor %vm1531, %vm1532
    %v1534 = vsel %vm1533, %v1526, %v1530
    %v1535 = vand.u32 2147483647, %v600
    %vm1536 = vcmp.eq.f32.partialorder %v1535, 8.507059e+37
    %v1537 = vand.u32 %v600, 2147483648
    %v1538 = vor.u32 1.1754944e-38, %v1537
    %v1539 = vsel %vm1536, %v1538, %v1534
    %v1540 = vmul.f32 1.0, %v1539
    %v1541 = vrcp.pop %v601
    %v1542 = vmul.f32 %v601, %v1541
    %v1543 = vsub.f32 1.0, %v1542
    %v1544 = vmul.f32 %v1541, %v1543
    %v1545 = vadd.f32 %v1541, %v1544
    %vm1546 = vweird.f32 %v601
    %vm1547 = vweird.f32 %v1541
    %vm1548 = vmor %vm1546, %vm1547
    %v1549 = vsel %vm1548, %v1541, %v1545
    %v1550 = vand.u32 2147483647, %v601
    %vm1551 = vcmp.eq.f32.partialorder %v1550, 8.507059e+37
    %v1552 = vand.u32 %v601, 2147483648
    %v1553 = vor.u32 1.1754944e-38, %v1552
    %v1554 = vsel %vm1551, %v1553, %v1549
    %v1555 = vmul.f32 1.0, %v1554
    %v1556 = vrcp.pop %v602
    %v1557 = vmul.f32 %v602, %v1556
    %v1558 = vsub.f32 1.0, %v1557
    %v1559 = vmul.f32 %v1556, %v1558
    %v1560 = vadd.f32 %v1556, %v1559
    %vm1561 = vweird.f32 %v602
    %vm1562 = vweird.f32 %v1556
    %vm1563 = vmor %vm1561, %vm1562
    %v1564 = vsel %vm1563, %v1556, %v1560
    %v1565 = vand.u32 2147483647, %v602
    %vm1566 = vcmp.eq.f32.partialorder %v1565, 8.507059e+37
    %v1567 = vand.u32 %v602, 2147483648
    %v1568 = vor.u32 1.1754944e-38, %v1567
    %v1569 = vsel %vm1566, %v1568, %v1564
    %v1570 = vmul.f32 1.0, %v1569
    %v1571 = vrcp.pop %v603
    %v1572 = vmul.f32 %v603, %v1571
    %v1573 = vsub.f32 1.0, %v1572
    %v1574 = vmul.f32 %v1571, %v1573
    %v1575 = vadd.f32 %v1571, %v1574
    %vm1576 = vweird.f32 %v603
    %vm1577 = vweird.f32 %v1571
    %vm1578 = vmor %vm1576, %vm1577
    %v1579 = vsel %vm1578, %v1571, %v1575
    %v1580 = vand.u32 2147483647, %v603
    %vm1581 = vcmp.eq.f32.partialorder %v1580, 8.507059e+37
    %v1582 = vand.u32 %v603, 2147483648
    %v1583 = vor.u32 1.1754944e-38, %v1582
    %v1584 = vsel %vm1581, %v1583, %v1579
    %v1585 = vmul.f32 1.0, %v1584
    %v1586 = vrcp.pop %v604
    %v1587 = vmul.f32 %v604, %v1586
    %v1588 = vsub.f32 1.0, %v1587
    %v1589 = vmul.f32 %v1586, %v1588
    %v1590 = vadd.f32 %v1586, %v1589
    %vm1591 = vweird.f32 %v604
    %vm1592 = vweird.f32 %v1586
    %vm1593 = vmor %vm1591, %vm1592
    %v1594 = vsel %vm1593, %v1586, %v1590
    %v1595 = vand.u32 2147483647, %v604
    %vm1596 = vcmp.eq.f32.partialorder %v1595, 8.507059e+37
    %v1597 = vand.u32 %v604, 2147483648
    %v1598 = vor.u32 1.1754944e-38, %v1597
    %v1599 = vsel %vm1596, %v1598, %v1594
    %v1600 = vmul.f32 1.0, %v1599
    %v1601 = vrcp.pop %v605
    %v1602 = vmul.f32 %v605, %v1601
    %v1603 = vsub.f32 1.0, %v1602
    %v1604 = vmul.f32 %v1601, %v1603
    %v1605 = vadd.f32 %v1601, %v1604
    %vm1606 = vweird.f32 %v605
    %vm1607 = vweird.f32 %v1601
    %vm1608 = vmor %vm1606, %vm1607
    %v1609 = vsel %vm1608, %v1601, %v1605
    %v1610 = vand.u32 2147483647, %v605
    %vm1611 = vcmp.eq.f32.partialorder %v1610, 8.507059e+37
    %v1612 = vand.u32 %v605, 2147483648
    %v1613 = vor.u32 1.1754944e-38, %v1612
    %v1614 = vsel %vm1611, %v1613, %v1609
    %v1615 = vmul.f32 1.0, %v1614
    %v1616 = vrcp.pop %v606
    %v1617 = vmul.f32 %v606, %v1616
    %v1618 = vsub.f32 1.0, %v1617
    %v1619 = vmul.f32 %v1616, %v1618
    %v1620 = vadd.f32 %v1616, %v1619
    %vm1621 = vweird.f32 %v606
    %vm1622 = vweird.f32 %v1616
    %vm1623 = vmor %vm1621, %vm1622
    %v1624 = vsel %vm1623, %v1616, %v1620
    %v1625 = vand.u32 2147483647, %v606
    %vm1626 = vcmp.eq.f32.partialorder %v1625, 8.507059e+37
    %v1627 = vand.u32 %v606, 2147483648
    %v1628 = vor.u32 1.1754944e-38, %v1627
    %v1629 = vsel %vm1626, %v1628, %v1624
    %v1630 = vmul.f32 1.0, %v1629
    %v1631 = vrcp.pop %v607
    %v1632 = vmul.f32 %v607, %v1631
    %v1633 = vsub.f32 1.0, %v1632
    %v1634 = vmul.f32 %v1631, %v1633
    %v1635 = vadd.f32 %v1631, %v1634
    %vm1636 = vweird.f32 %v607
    %vm1637 = vweird.f32 %v1631
    %vm1638 = vmor %vm1636, %vm1637
    %v1639 = vsel %vm1638, %v1631, %v1635
    %v1640 = vand.u32 2147483647, %v607
    %vm1641 = vcmp.eq.f32.partialorder %v1640, 8.507059e+37
    %v1642 = vand.u32 %v607, 2147483648
    %v1643 = vor.u32 1.1754944e-38, %v1642
    %v1644 = vsel %vm1641, %v1643, %v1639
    %v1645 = vmul.f32 1.0, %v1644
    %v1646 = vrcp.pop %v608
    %v1647 = vmul.f32 %v608, %v1646
    %v1648 = vsub.f32 1.0, %v1647
    %v1649 = vmul.f32 %v1646, %v1648
    %v1650 = vadd.f32 %v1646, %v1649
    %vm1651 = vweird.f32 %v608
    %vm1652 = vweird.f32 %v1646
    %vm1653 = vmor %vm1651, %vm1652
    %v1654 = vsel %vm1653, %v1646, %v1650
    %v1655 = vand.u32 2147483647, %v608
    %vm1656 = vcmp.eq.f32.partialorder %v1655, 8.507059e+37
    %v1657 = vand.u32 %v608, 2147483648
    %v1658 = vor.u32 1.1754944e-38, %v1657
    %v1659 = vsel %vm1656, %v1658, %v1654
    %v1660 = vmul.f32 1.0, %v1659
    %v1661 = vrcp.pop %v609
    %v1662 = vmul.f32 %v609, %v1661
    %v1663 = vsub.f32 1.0, %v1662
    %v1664 = vmul.f32 %v1661, %v1663
    %v1665 = vadd.f32 %v1661, %v1664
    %vm1666 = vweird.f32 %v609
    %vm1667 = vweird.f32 %v1661
    %vm1668 = vmor %vm1666, %vm1667
    %v1669 = vsel %vm1668, %v1661, %v1665
    %v1670 = vand.u32 2147483647, %v609
    %vm1671 = vcmp.eq.f32.partialorder %v1670, 8.507059e+37
    %v1672 = vand.u32 %v609, 2147483648
    %v1673 = vor.u32 1.1754944e-38, %v1672
    %v1674 = vsel %vm1671, %v1673, %v1669
    %v1675 = vmul.f32 1.0, %v1674
    %v1676 = vrcp.pop %v610
    %v1677 = vmul.f32 %v610, %v1676
    %v1678 = vsub.f32 1.0, %v1677
    %v1679 = vmul.f32 %v1676, %v1678
    %v1680 = vadd.f32 %v1676, %v1679
    %vm1681 = vweird.f32 %v610
    %vm1682 = vweird.f32 %v1676
    %vm1683 = vmor %vm1681, %vm1682
    %v1684 = vsel %vm1683, %v1676, %v1680
    %v1685 = vand.u32 2147483647, %v610
    %vm1686 = vcmp.eq.f32.partialorder %v1685, 8.507059e+37
    %v1687 = vand.u32 %v610, 2147483648
    %v1688 = vor.u32 1.1754944e-38, %v1687
    %v1689 = vsel %vm1686, %v1688, %v1684
    %v1690 = vmul.f32 1.0, %v1689
    %v1691 = vrcp.pop %v611
    %v1692 = vmul.f32 %v611, %v1691
    %v1693 = vsub.f32 1.0, %v1692
    %v1694 = vmul.f32 %v1691, %v1693
    %v1695 = vadd.f32 %v1691, %v1694
    %vm1696 = vweird.f32 %v611
    %vm1697 = vweird.f32 %v1691
    %vm1698 = vmor %vm1696, %vm1697
    %v1699 = vsel %vm1698, %v1691, %v1695
    %v1700 = vand.u32 2147483647, %v611
    %vm1701 = vcmp.eq.f32.partialorder %v1700, 8.507059e+37
    %v1702 = vand.u32 %v611, 2147483648
    %v1703 = vor.u32 1.1754944e-38, %v1702
    %v1704 = vsel %vm1701, %v1703, %v1699
    %v1705 = vmul.f32 1.0, %v1704
    %v1706 = vrcp.pop %v612
    %v1707 = vmul.f32 %v612, %v1706
    %v1708 = vsub.f32 1.0, %v1707
    %v1709 = vmul.f32 %v1706, %v1708
    %v1710 = vadd.f32 %v1706, %v1709
    %vm1711 = vweird.f32 %v612
    %vm1712 = vweird.f32 %v1706
    %vm1713 = vmor %vm1711, %vm1712
    %v1714 = vsel %vm1713, %v1706, %v1710
    %v1715 = vand.u32 2147483647, %v612
    %vm1716 = vcmp.eq.f32.partialorder %v1715, 8.507059e+37
    %v1717 = vand.u32 %v612, 2147483648
    %v1718 = vor.u32 1.1754944e-38, %v1717
    %v1719 = vsel %vm1716, %v1718, %v1714
    %v1720 = vmul.f32 1.0, %v1719
    %v1721 = vrcp.pop %v613
    %v1722 = vmul.f32 %v613, %v1721
    %v1723 = vsub.f32 1.0, %v1722
    %v1724 = vmul.f32 %v1721, %v1723
    %v1725 = vadd.f32 %v1721, %v1724
    %vm1726 = vweird.f32 %v613
    %vm1727 = vweird.f32 %v1721
    %vm1728 = vmor %vm1726, %vm1727
    %v1729 = vsel %vm1728, %v1721, %v1725
    %v1730 = vand.u32 2147483647, %v613
    %vm1731 = vcmp.eq.f32.partialorder %v1730, 8.507059e+37
    %v1732 = vand.u32 %v613, 2147483648
    %v1733 = vor.u32 1.1754944e-38, %v1732
    %v1734 = vsel %vm1731, %v1733, %v1729
    %v1735 = vmul.f32 1.0, %v1734
    %v1736 = vrcp.pop %v614
    %v1737 = vmul.f32 %v614, %v1736
    %v1738 = vsub.f32 1.0, %v1737
    %v1739 = vmul.f32 %v1736, %v1738
    %v1740 = vadd.f32 %v1736, %v1739
    %vm1741 = vweird.f32 %v614
    %vm1742 = vweird.f32 %v1736
    %vm1743 = vmor %vm1741, %vm1742
    %v1744 = vsel %vm1743, %v1736, %v1740
    %v1745 = vand.u32 2147483647, %v614
    %vm1746 = vcmp.eq.f32.partialorder %v1745, 8.507059e+37
    %v1747 = vand.u32 %v614, 2147483648
    %v1748 = vor.u32 1.1754944e-38, %v1747
    %v1749 = vsel %vm1746, %v1748, %v1744
    %v1750 = vmul.f32 1.0, %v1749
    %v1751 = vrcp.pop %v615
    %v1752 = vmul.f32 %v615, %v1751
    %v1753 = vsub.f32 1.0, %v1752
    %v1754 = vmul.f32 %v1751, %v1753
    %v1755 = vadd.f32 %v1751, %v1754
    %vm1756 = vweird.f32 %v615
    %vm1757 = vweird.f32 %v1751
    %vm1758 = vmor %vm1756, %vm1757
    %v1759 = vsel %vm1758, %v1751, %v1755
    %v1760 = vand.u32 2147483647, %v615
    %vm1761 = vcmp.eq.f32.partialorder %v1760, 8.507059e+37
    %v1762 = vand.u32 %v615, 2147483648
    %v1763 = vor.u32 1.1754944e-38, %v1762
    %v1764 = vsel %vm1761, %v1763, %v1759
    %v1765 = vmul.f32 1.0, %v1764
    %v1766 = vrcp.pop %v616
    %v1767 = vmul.f32 %v616, %v1766
    %v1768 = vsub.f32 1.0, %v1767
    %v1769 = vmul.f32 %v1766, %v1768
    %v1770 = vadd.f32 %v1766, %v1769
    %vm1771 = vweird.f32 %v616
    %vm1772 = vweird.f32 %v1766
    %vm1773 = vmor %vm1771, %vm1772
    %v1774 = vsel %vm1773, %v1766, %v1770
    %v1775 = vand.u32 2147483647, %v616
    %vm1776 = vcmp.eq.f32.partialorder %v1775, 8.507059e+37
    %v1777 = vand.u32 %v616, 2147483648
    %v1778 = vor.u32 1.1754944e-38, %v1777
    %v1779 = vsel %vm1776, %v1778, %v1774
    %v1780 = vmul.f32 1.0, %v1779
    %v1781 = vrcp.pop %v617
    %v1782 = vmul.f32 %v617, %v1781
    %v1783 = vsub.f32 1.0, %v1782
    %v1784 = vmul.f32 %v1781, %v1783
    %v1785 = vadd.f32 %v1781, %v1784
    %vm1786 = vweird.f32 %v617
    %vm1787 = vweird.f32 %v1781
    %vm1788 = vmor %vm1786, %vm1787
    %v1789 = vsel %vm1788, %v1781, %v1785
    %v1790 = vand.u32 2147483647, %v617
    %vm1791 = vcmp.eq.f32.partialorder %v1790, 8.507059e+37
    %v1792 = vand.u32 %v617, 2147483648
    %v1793 = vor.u32 1.1754944e-38, %v1792
    %v1794 = vsel %vm1791, %v1793, %v1789
    %v1795 = vmul.f32 1.0, %v1794
    %v1796 = vrcp.pop %v618
    %v1797 = vmul.f32 %v618, %v1796
    %v1798 = vsub.f32 1.0, %v1797
    %v1799 = vmul.f32 %v1796, %v1798
    %v1800 = vadd.f32 %v1796, %v1799
    %vm1801 = vweird.f32 %v618
    %vm1802 = vweird.f32 %v1796
    %vm1803 = vmor %vm1801, %vm1802
    %v1804 = vsel %vm1803, %v1796, %v1800
    %v1805 = vand.u32 2147483647, %v618
    %vm1806 = vcmp.eq.f32.partialorder %v1805, 8.507059e+37
    %v1807 = vand.u32 %v618, 2147483648
    %v1808 = vor.u32 1.1754944e-38, %v1807
    %v1809 = vsel %vm1806, %v1808, %v1804
    %v1810 = vmul.f32 1.0, %v1809
    %v1811 = vrcp.pop %v619
    %v1812 = vmul.f32 %v619, %v1811
    %v1813 = vsub.f32 1.0, %v1812
    %v1814 = vmul.f32 %v1811, %v1813
    %v1815 = vadd.f32 %v1811, %v1814
    %vm1816 = vweird.f32 %v619
    %vm1817 = vweird.f32 %v1811
    %vm1818 = vmor %vm1816, %vm1817
    %v1819 = vsel %vm1818, %v1811, %v1815
    %v1820 = vand.u32 2147483647, %v619
    %vm1821 = vcmp.eq.f32.partialorder %v1820, 8.507059e+37
    %v1822 = vand.u32 %v619, 2147483648
    %v1823 = vor.u32 1.1754944e-38, %v1822
    %v1824 = vsel %vm1821, %v1823, %v1819
    %v1825 = vmul.f32 1.0, %v1824
    %v1826 = vrcp.pop %v620
    %v1827 = vmul.f32 %v620, %v1826
    %v1828 = vsub.f32 1.0, %v1827
    %v1829 = vmul.f32 %v1826, %v1828
    %v1830 = vadd.f32 %v1826, %v1829
    %vm1831 = vweird.f32 %v620
    %vm1832 = vweird.f32 %v1826
    %vm1833 = vmor %vm1831, %vm1832
    %v1834 = vsel %vm1833, %v1826, %v1830
    %v1835 = vand.u32 2147483647, %v620
    %vm1836 = vcmp.eq.f32.partialorder %v1835, 8.507059e+37
    %v1837 = vand.u32 %v620, 2147483648
    %v1838 = vor.u32 1.1754944e-38, %v1837
    %v1839 = vsel %vm1836, %v1838, %v1834
    %v1840 = vmul.f32 1.0, %v1839
    %v1841 = vrcp.pop %v621
    %v1842 = vmul.f32 %v621, %v1841
    %v1843 = vsub.f32 1.0, %v1842
    %v1844 = vmul.f32 %v1841, %v1843
    %v1845 = vadd.f32 %v1841, %v1844
    %vm1846 = vweird.f32 %v621
    %vm1847 = vweird.f32 %v1841
    %vm1848 = vmor %vm1846, %vm1847
    %v1849 = vsel %vm1848, %v1841, %v1845
    %v1850 = vand.u32 2147483647, %v621
    %vm1851 = vcmp.eq.f32.partialorder %v1850, 8.507059e+37
    %v1852 = vand.u32 %v621, 2147483648
    %v1853 = vor.u32 1.1754944e-38, %v1852
    %v1854 = vsel %vm1851, %v1853, %v1849
    %v1855 = vmul.f32 1.0, %v1854
    %v1856 = vrcp.pop %v622
    %v1857 = vmul.f32 %v622, %v1856
    %v1858 = vsub.f32 1.0, %v1857
    %v1859 = vmul.f32 %v1856, %v1858
    %v1860 = vadd.f32 %v1856, %v1859
    %vm1861 = vweird.f32 %v622
    %vm1862 = vweird.f32 %v1856
    %vm1863 = vmor %vm1861, %vm1862
    %v1864 = vsel %vm1863, %v1856, %v1860
    %v1865 = vand.u32 2147483647, %v622
    %vm1866 = vcmp.eq.f32.partialorder %v1865, 8.507059e+37
    %v1867 = vand.u32 %v622, 2147483648
    %v1868 = vor.u32 1.1754944e-38, %v1867
    %v1869 = vsel %vm1866, %v1868, %v1864
    %v1870 = vmul.f32 1.0, %v1869
    %v1871 = vrcp.pop %v623
    %v1872 = vmul.f32 %v623, %v1871
    %v1873 = vsub.f32 1.0, %v1872
    %v1874 = vmul.f32 %v1871, %v1873
    %v1875 = vadd.f32 %v1871, %v1874
    %vm1876 = vweird.f32 %v623
    %vm1877 = vweird.f32 %v1871
    %vm1878 = vmor %vm1876, %vm1877
    %v1879 = vsel %vm1878, %v1871, %v1875
    %v1880 = vand.u32 2147483647, %v623
    %vm1881 = vcmp.eq.f32.partialorder %v1880, 8.507059e+37
    %v1882 = vand.u32 %v623, 2147483648
    %v1883 = vor.u32 1.1754944e-38, %v1882
    %v1884 = vsel %vm1881, %v1883, %v1879
    %v1885 = vmul.f32 1.0, %v1884
    %v1886 = vrcp.pop %v624
    %v1887 = vmul.f32 %v624, %v1886
    %v1888 = vsub.f32 1.0, %v1887
    %v1889 = vmul.f32 %v1886, %v1888
    %v1890 = vadd.f32 %v1886, %v1889
    %vm1891 = vweird.f32 %v624
    %vm1892 = vweird.f32 %v1886
    %vm1893 = vmor %vm1891, %vm1892
    %v1894 = vsel %vm1893, %v1886, %v1890
    %v1895 = vand.u32 2147483647, %v624
    %vm1896 = vcmp.eq.f32.partialorder %v1895, 8.507059e+37
    %v1897 = vand.u32 %v624, 2147483648
    %v1898 = vor.u32 1.1754944e-38, %v1897
    %v1899 = vsel %vm1896, %v1898, %v1894
    %v1900 = vmul.f32 1.0, %v1899
    %v1901 = vrcp.pop %v625
    %v1902 = vmul.f32 %v625, %v1901
    %v1903 = vsub.f32 1.0, %v1902
    %v1904 = vmul.f32 %v1901, %v1903
    %v1905 = vadd.f32 %v1901, %v1904
    %vm1906 = vweird.f32 %v625
    %vm1907 = vweird.f32 %v1901
    %vm1908 = vmor %vm1906, %vm1907
    %v1909 = vsel %vm1908, %v1901, %v1905
    %v1910 = vand.u32 2147483647, %v625
    %vm1911 = vcmp.eq.f32.partialorder %v1910, 8.507059e+37
    %v1912 = vand.u32 %v625, 2147483648
    %v1913 = vor.u32 1.1754944e-38, %v1912
    %v1914 = vsel %vm1911, %v1913, %v1909
    %v1915 = vmul.f32 1.0, %v1914
    %v1916 = vrcp.pop %v626
    %v1917 = vmul.f32 %v626, %v1916
    %v1918 = vsub.f32 1.0, %v1917
    %v1919 = vmul.f32 %v1916, %v1918
    %v1920 = vadd.f32 %v1916, %v1919
    %vm1921 = vweird.f32 %v626
    %vm1922 = vweird.f32 %v1916
    %vm1923 = vmor %vm1921, %vm1922
    %v1924 = vsel %vm1923, %v1916, %v1920
    %v1925 = vand.u32 2147483647, %v626
    %vm1926 = vcmp.eq.f32.partialorder %v1925, 8.507059e+37
    %v1927 = vand.u32 %v626, 2147483648
    %v1928 = vor.u32 1.1754944e-38, %v1927
    %v1929 = vsel %vm1926, %v1928, %v1924
    %v1930 = vmul.f32 1.0, %v1929
    %v1931 = vrcp.pop %v627
    %v1932 = vmul.f32 %v627, %v1931
    %v1933 = vsub.f32 1.0, %v1932
    %v1934 = vmul.f32 %v1931, %v1933
    %v1935 = vadd.f32 %v1931, %v1934
    %vm1936 = vweird.f32 %v627
    %vm1937 = vweird.f32 %v1931
    %vm1938 = vmor %vm1936, %vm1937
    %v1939 = vsel %vm1938, %v1931, %v1935
    %v1940 = vand.u32 2147483647, %v627
    %vm1941 = vcmp.eq.f32.partialorder %v1940, 8.507059e+37
    %v1942 = vand.u32 %v627, 2147483648
    %v1943 = vor.u32 1.1754944e-38, %v1942
    %v1944 = vsel %vm1941, %v1943, %v1939
    %v1945 = vmul.f32 1.0, %v1944
    %v1946 = vrcp.pop %v628
    %v1947 = vmul.f32 %v628, %v1946
    %v1948 = vsub.f32 1.0, %v1947
    %v1949 = vmul.f32 %v1946, %v1948
    %v1950 = vadd.f32 %v1946, %v1949
    %vm1951 = vweird.f32 %v628
    %vm1952 = vweird.f32 %v1946
    %vm1953 = vmor %vm1951, %vm1952
    %v1954 = vsel %vm1953, %v1946, %v1950
    %v1955 = vand.u32 2147483647, %v628
    %vm1956 = vcmp.eq.f32.partialorder %v1955, 8.507059e+37
    %v1957 = vand.u32 %v628, 2147483648
    %v1958 = vor.u32 1.1754944e-38, %v1957
    %v1959 = vsel %vm1956, %v1958, %v1954
    %v1960 = vmul.f32 1.0, %v1959
    %v1961 = vrcp.pop %v629
    %v1962 = vmul.f32 %v629, %v1961
    %v1963 = vsub.f32 1.0, %v1962
    %v1964 = vmul.f32 %v1961, %v1963
    %v1965 = vadd.f32 %v1961, %v1964
    %vm1966 = vweird.f32 %v629
    %vm1967 = vweird.f32 %v1961
    %vm1968 = vmor %vm1966, %vm1967
    %v1969 = vsel %vm1968, %v1961, %v1965
    %v1970 = vand.u32 2147483647, %v629
    %vm1971 = vcmp.eq.f32.partialorder %v1970, 8.507059e+37
    %v1972 = vand.u32 %v629, 2147483648
    %v1973 = vor.u32 1.1754944e-38, %v1972
    %v1974 = vsel %vm1971, %v1973, %v1969
    %v1975 = vmul.f32 1.0, %v1974
    %v1976 = vrcp.pop %v630
    %v1977 = vmul.f32 %v630, %v1976
    %v1978 = vsub.f32 1.0, %v1977
    %v1979 = vmul.f32 %v1976, %v1978
    %v1980 = vadd.f32 %v1976, %v1979
    %vm1981 = vweird.f32 %v630
    %vm1982 = vweird.f32 %v1976
    %vm1983 = vmor %vm1981, %vm1982
    %v1984 = vsel %vm1983, %v1976, %v1980
    %v1985 = vand.u32 2147483647, %v630
    %vm1986 = vcmp.eq.f32.partialorder %v1985, 8.507059e+37
    %v1987 = vand.u32 %v630, 2147483648
    %v1988 = vor.u32 1.1754944e-38, %v1987
    %v1989 = vsel %vm1986, %v1988, %v1984
    %v1990 = vmul.f32 1.0, %v1989
    %v1991 = vrcp.pop %v631
    %v1992 = vmul.f32 %v631, %v1991
    %v1993 = vsub.f32 1.0, %v1992
    %v1994 = vmul.f32 %v1991, %v1993
    %v1995 = vadd.f32 %v1991, %v1994
    %vm1996 = vweird.f32 %v631
    %vm1997 = vweird.f32 %v1991
    %vm1998 = vmor %vm1996, %vm1997
    %v1999 = vsel %vm1998, %v1991, %v1995
    %v2000 = vand.u32 2147483647, %v631
    %vm2001 = vcmp.eq.f32.partialorder %v2000, 8.507059e+37
    %v2002 = vand.u32 %v631, 2147483648
    %v2003 = vor.u32 1.1754944e-38, %v2002
    %v2004 = vsel %vm2001, %v2003, %v1999
    %v2005 = vmul.f32 1.0, %v2004
    %v2006 = vrcp.pop %v632
    %v2007 = vmul.f32 %v632, %v2006
    %v2008 = vsub.f32 1.0, %v2007
    %v2009 = vmul.f32 %v2006, %v2008
    %v2010 = vadd.f32 %v2006, %v2009
    %vm2011 = vweird.f32 %v632
    %vm2012 = vweird.f32 %v2006
    %vm2013 = vmor %vm2011, %vm2012
    %v2014 = vsel %vm2013, %v2006, %v2010
    %v2015 = vand.u32 2147483647, %v632
    %vm2016 = vcmp.eq.f32.partialorder %v2015, 8.507059e+37
    %v2017 = vand.u32 %v632, 2147483648
    %v2018 = vor.u32 1.1754944e-38, %v2017
    %v2019 = vsel %vm2016, %v2018, %v2014
    %v2020 = vmul.f32 1.0, %v2019
    %v2021 = vrcp.pop %v633
    %v2022 = vmul.f32 %v633, %v2021
    %v2023 = vsub.f32 1.0, %v2022
    %v2024 = vmul.f32 %v2021, %v2023
    %v2025 = vadd.f32 %v2021, %v2024
    %vm2026 = vweird.f32 %v633
    %vm2027 = vweird.f32 %v2021
    %vm2028 = vmor %vm2026, %vm2027
    %v2029 = vsel %vm2028, %v2021, %v2025
    %v2030 = vand.u32 2147483647, %v633
    %vm2031 = vcmp.eq.f32.partialorder %v2030, 8.507059e+37
    %v2032 = vand.u32 %v633, 2147483648
    %v2033 = vor.u32 1.1754944e-38, %v2032
    %v2034 = vsel %vm2031, %v2033, %v2029
    %v2035 = vmul.f32 1.0, %v2034
    %v2036 = vrcp.pop %v634
    %v2037 = vmul.f32 %v634, %v2036
    %v2038 = vsub.f32 1.0, %v2037
    %v2039 = vmul.f32 %v2036, %v2038
    %v2040 = vadd.f32 %v2036, %v2039
    %vm2041 = vweird.f32 %v634
    %vm2042 = vweird.f32 %v2036
    %vm2043 = vmor %vm2041, %vm2042
    %v2044 = vsel %vm2043, %v2036, %v2040
    %v2045 = vand.u32 2147483647, %v634
    %vm2046 = vcmp.eq.f32.partialorder %v2045, 8.507059e+37
    %v2047 = vand.u32 %v634, 2147483648
    %v2048 = vor.u32 1.1754944e-38, %v2047
    %v2049 = vsel %vm2046, %v2048, %v2044
    %v2050 = vmul.f32 1.0, %v2049
    %v2051 = vrcp.pop %v635
    %v2052 = vmul.f32 %v635, %v2051
    %v2053 = vsub.f32 1.0, %v2052
    %v2054 = vmul.f32 %v2051, %v2053
    %v2055 = vadd.f32 %v2051, %v2054
    %vm2056 = vweird.f32 %v635
    %vm2057 = vweird.f32 %v2051
    %vm2058 = vmor %vm2056, %vm2057
    %v2059 = vsel %vm2058, %v2051, %v2055
    %v2060 = vand.u32 2147483647, %v635
    %vm2061 = vcmp.eq.f32.partialorder %v2060, 8.507059e+37
    %v2062 = vand.u32 %v635, 2147483648
    %v2063 = vor.u32 1.1754944e-38, %v2062
    %v2064 = vsel %vm2061, %v2063, %v2059
    %v2065 = vmul.f32 1.0, %v2064
    %v2066 = vrcp.pop %v636
    %v2067 = vmul.f32 %v636, %v2066
    %v2068 = vsub.f32 1.0, %v2067
    %v2069 = vmul.f32 %v2066, %v2068
    %v2070 = vadd.f32 %v2066, %v2069
    %vm2071 = vweird.f32 %v636
    %vm2072 = vweird.f32 %v2066
    %vm2073 = vmor %vm2071, %vm2072
    %v2074 = vsel %vm2073, %v2066, %v2070
    %v2075 = vand.u32 2147483647, %v636
    %vm2076 = vcmp.eq.f32.partialorder %v2075, 8.507059e+37
    %v2077 = vand.u32 %v636, 2147483648
    %v2078 = vor.u32 1.1754944e-38, %v2077
    %v2079 = vsel %vm2076, %v2078, %v2074
    %v2080 = vmul.f32 1.0, %v2079
    %v2081 = vrcp.pop %v637
    %v2082 = vmul.f32 %v637, %v2081
    %v2083 = vsub.f32 1.0, %v2082
    %v2084 = vmul.f32 %v2081, %v2083
    %v2085 = vadd.f32 %v2081, %v2084
    %vm2086 = vweird.f32 %v637
    %vm2087 = vweird.f32 %v2081
    %vm2088 = vmor %vm2086, %vm2087
    %v2089 = vsel %vm2088, %v2081, %v2085
    %v2090 = vand.u32 2147483647, %v637
    %vm2091 = vcmp.eq.f32.partialorder %v2090, 8.507059e+37
    %v2092 = vand.u32 %v637, 2147483648
    %v2093 = vor.u32 1.1754944e-38, %v2092
    %v2094 = vsel %vm2091, %v2093, %v2089
    %v2095 = vmul.f32 1.0, %v2094
    %v2096 = vrcp.pop %v638
    %v2097 = vmul.f32 %v638, %v2096
    %v2098 = vsub.f32 1.0, %v2097
    %v2099 = vmul.f32 %v2096, %v2098
    %v2100 = vadd.f32 %v2096, %v2099
    %vm2101 = vweird.f32 %v638
    %vm2102 = vweird.f32 %v2096
    %vm2103 = vmor %vm2101, %vm2102
    %v2104 = vsel %vm2103, %v2096, %v2100
    %v2105 = vand.u32 2147483647, %v638
    %vm2106 = vcmp.eq.f32.partialorder %v2105, 8.507059e+37
    %v2107 = vand.u32 %v638, 2147483648
    %v2108 = vor.u32 1.1754944e-38, %v2107
    %v2109 = vsel %vm2106, %v2108, %v2104
    %v2110 = vmul.f32 1.0, %v2109
    %v2111 = vrcp.pop %v639
    %v2112 = vmul.f32 %v639, %v2111
    %v2113 = vsub.f32 1.0, %v2112
    %v2114 = vmul.f32 %v2111, %v2113
    %v2115 = vadd.f32 %v2111, %v2114
    %vm2116 = vweird.f32 %v639
    %vm2117 = vweird.f32 %v2111
    %vm2118 = vmor %vm2116, %vm2117
    %v2119 = vsel %vm2118, %v2111, %v2115
    %v2120 = vand.u32 2147483647, %v639
    %vm2121 = vcmp.eq.f32.partialorder %v2120, 8.507059e+37
    %v2122 = vand.u32 %v639, 2147483648
    %v2123 = vor.u32 1.1754944e-38, %v2122
    %v2124 = vsel %vm2121, %v2123, %v2119
    %v2125 = vmul.f32 1.0, %v2124
    %v2126 = vrcp.pop %v640
    %v2127 = vmul.f32 %v640, %v2126
    %v2128 = vsub.f32 1.0, %v2127
    %v2129 = vmul.f32 %v2126, %v2128
    %v2130 = vadd.f32 %v2126, %v2129
    %vm2131 = vweird.f32 %v640
    %vm2132 = vweird.f32 %v2126
    %vm2133 = vmor %vm2131, %vm2132
    %v2134 = vsel %vm2133, %v2126, %v2130
    %v2135 = vand.u32 2147483647, %v640
    %vm2136 = vcmp.eq.f32.partialorder %v2135, 8.507059e+37
    %v2137 = vand.u32 %v640, 2147483648
    %v2138 = vor.u32 1.1754944e-38, %v2137
    %v2139 = vsel %vm2136, %v2138, %v2134
    %v2140 = vmul.f32 1.0, %v2139
    %v2141 = vrcp.pop %v641
    %v2142 = vmul.f32 %v641, %v2141
    %v2143 = vsub.f32 1.0, %v2142
    %v2144 = vmul.f32 %v2141, %v2143
    %v2145 = vadd.f32 %v2141, %v2144
    %vm2146 = vweird.f32 %v641
    %vm2147 = vweird.f32 %v2141
    %vm2148 = vmor %vm2146, %vm2147
    %v2149 = vsel %vm2148, %v2141, %v2145
    %v2150 = vand.u32 2147483647, %v641
    %vm2151 = vcmp.eq.f32.partialorder %v2150, 8.507059e+37
    %v2152 = vand.u32 %v641, 2147483648
    %v2153 = vor.u32 1.1754944e-38, %v2152
    %v2154 = vsel %vm2151, %v2153, %v2149
    %v2155 = vmul.f32 1.0, %v2154
    %v2156 = vrcp.pop %v642
    %v2157 = vmul.f32 %v642, %v2156
    %v2158 = vsub.f32 1.0, %v2157
    %v2159 = vmul.f32 %v2156, %v2158
    %v2160 = vadd.f32 %v2156, %v2159
    %vm2161 = vweird.f32 %v642
    %vm2162 = vweird.f32 %v2156
    %vm2163 = vmor %vm2161, %vm2162
    %v2164 = vsel %vm2163, %v2156, %v2160
    %v2165 = vand.u32 2147483647, %v642
    %vm2166 = vcmp.eq.f32.partialorder %v2165, 8.507059e+37
    %v2167 = vand.u32 %v642, 2147483648
    %v2168 = vor.u32 1.1754944e-38, %v2167
    %v2169 = vsel %vm2166, %v2168, %v2164
    %v2170 = vmul.f32 1.0, %v2169
    %v2171 = vrcp.pop %v643
    %v2172 = vmul.f32 %v643, %v2171
    %v2173 = vsub.f32 1.0, %v2172
    %v2174 = vmul.f32 %v2171, %v2173
    %v2175 = vadd.f32 %v2171, %v2174
    %vm2176 = vweird.f32 %v643
    %vm2177 = vweird.f32 %v2171
    %vm2178 = vmor %vm2176, %vm2177
    %v2179 = vsel %vm2178, %v2171, %v2175
    %v2180 = vand.u32 2147483647, %v643
    %vm2181 = vcmp.eq.f32.partialorder %v2180, 8.507059e+37
    %v2182 = vand.u32 %v643, 2147483648
    %v2183 = vor.u32 1.1754944e-38, %v2182
    %v2184 = vsel %vm2181, %v2183, %v2179
    %v2185 = vmul.f32 1.0, %v2184
    %v2186 = vrcp.pop %v644
    %v2187 = vmul.f32 %v644, %v2186
    %v2188 = vsub.f32 1.0, %v2187
    %v2189 = vmul.f32 %v2186, %v2188
    %v2190 = vadd.f32 %v2186, %v2189
    %vm2191 = vweird.f32 %v644
    %vm2192 = vweird.f32 %v2186
    %vm2193 = vmor %vm2191, %vm2192
    %v2194 = vsel %vm2193, %v2186, %v2190
    %v2195 = vand.u32 2147483647, %v644
    %vm2196 = vcmp.eq.f32.partialorder %v2195, 8.507059e+37
    %v2197 = vand.u32 %v644, 2147483648
    %v2198 = vor.u32 1.1754944e-38, %v2197
    %v2199 = vsel %vm2196, %v2198, %v2194
    %v2200 = vmul.f32 1.0, %v2199
    %v2201 = vrcp.pop %v645
    %v2202 = vmul.f32 %v645, %v2201
    %v2203 = vsub.f32 1.0, %v2202
    %v2204 = vmul.f32 %v2201, %v2203
    %v2205 = vadd.f32 %v2201, %v2204
    %vm2206 = vweird.f32 %v645
    %vm2207 = vweird.f32 %v2201
    %vm2208 = vmor %vm2206, %vm2207
    %v2209 = vsel %vm2208, %v2201, %v2205
    %v2210 = vand.u32 2147483647, %v645
    %vm2211 = vcmp.eq.f32.partialorder %v2210, 8.507059e+37
    %v2212 = vand.u32 %v645, 2147483648
    %v2213 = vor.u32 1.1754944e-38, %v2212
    %v2214 = vsel %vm2211, %v2213, %v2209
    %v2215 = vmul.f32 1.0, %v2214
    %v2216 = vrcp.pop %v646
    %v2217 = vmul.f32 %v646, %v2216
    %v2218 = vsub.f32 1.0, %v2217
    %v2219 = vmul.f32 %v2216, %v2218
    %v2220 = vadd.f32 %v2216, %v2219
    %vm2221 = vweird.f32 %v646
    %vm2222 = vweird.f32 %v2216
    %vm2223 = vmor %vm2221, %vm2222
    %v2224 = vsel %vm2223, %v2216, %v2220
    %v2225 = vand.u32 2147483647, %v646
    %vm2226 = vcmp.eq.f32.partialorder %v2225, 8.507059e+37
    %v2227 = vand.u32 %v646, 2147483648
    %v2228 = vor.u32 1.1754944e-38, %v2227
    %v2229 = vsel %vm2226, %v2228, %v2224
    %v2230 = vmul.f32 1.0, %v2229
    %v2231 = vrcp.pop %v647
    %v2232 = vmul.f32 %v647, %v2231
    %v2233 = vsub.f32 1.0, %v2232
    %v2234 = vmul.f32 %v2231, %v2233
    %v2235 = vadd.f32 %v2231, %v2234
    %vm2236 = vweird.f32 %v647
    %vm2237 = vweird.f32 %v2231
    %vm2238 = vmor %vm2236, %vm2237
    %v2239 = vsel %vm2238, %v2231, %v2235
    %v2240 = vand.u32 2147483647, %v647
    %vm2241 = vcmp.eq.f32.partialorder %v2240, 8.507059e+37
    %v2242 = vand.u32 %v647, 2147483648
    %v2243 = vor.u32 1.1754944e-38, %v2242
    %v2244 = vsel %vm2241, %v2243, %v2239
    %v2245 = vmul.f32 1.0, %v2244
    %v2246 = vrcp.pop %v648
    %v2247 = vmul.f32 %v648, %v2246
    %v2248 = vsub.f32 1.0, %v2247
    %v2249 = vmul.f32 %v2246, %v2248
    %v2250 = vadd.f32 %v2246, %v2249
    %vm2251 = vweird.f32 %v648
    %vm2252 = vweird.f32 %v2246
    %vm2253 = vmor %vm2251, %vm2252
    %v2254 = vsel %vm2253, %v2246, %v2250
    %v2255 = vand.u32 2147483647, %v648
    %vm2256 = vcmp.eq.f32.partialorder %v2255, 8.507059e+37
    %v2257 = vand.u32 %v648, 2147483648
    %v2258 = vor.u32 1.1754944e-38, %v2257
    %v2259 = vsel %vm2256, %v2258, %v2254
    %v2260 = vmul.f32 1.0, %v2259
    %v2261 = vrcp.pop %v649
    %v2262 = vmul.f32 %v649, %v2261
    %v2263 = vsub.f32 1.0, %v2262
    %v2264 = vmul.f32 %v2261, %v2263
    %v2265 = vadd.f32 %v2261, %v2264
    %vm2266 = vweird.f32 %v649
    %vm2267 = vweird.f32 %v2261
    %vm2268 = vmor %vm2266, %vm2267
    %v2269 = vsel %vm2268, %v2261, %v2265
    %v2270 = vand.u32 2147483647, %v649
    %vm2271 = vcmp.eq.f32.partialorder %v2270, 8.507059e+37
    %v2272 = vand.u32 %v649, 2147483648
    %v2273 = vor.u32 1.1754944e-38, %v2272
    %v2274 = vsel %vm2271, %v2273, %v2269
    %v2275 = vmul.f32 1.0, %v2274
    %v2276 = vrcp.pop %v650
    %v2277 = vmul.f32 %v650, %v2276
    %v2278 = vsub.f32 1.0, %v2277
    %v2279 = vmul.f32 %v2276, %v2278
    %v2280 = vadd.f32 %v2276, %v2279
    %vm2281 = vweird.f32 %v650
    %vm2282 = vweird.f32 %v2276
    %vm2283 = vmor %vm2281, %vm2282
    %v2284 = vsel %vm2283, %v2276, %v2280
    %v2285 = vand.u32 2147483647, %v650
    %vm2286 = vcmp.eq.f32.partialorder %v2285, 8.507059e+37
    %v2287 = vand.u32 %v650, 2147483648
    %v2288 = vor.u32 1.1754944e-38, %v2287
    %v2289 = vsel %vm2286, %v2288, %v2284
    %v2290 = vmul.f32 1.0, %v2289
    %v2291 = vrcp.pop %v651
    %v2292 = vmul.f32 %v651, %v2291
    %v2293 = vsub.f32 1.0, %v2292
    %v2294 = vmul.f32 %v2291, %v2293
    %v2295 = vadd.f32 %v2291, %v2294
    %vm2296 = vweird.f32 %v651
    %vm2297 = vweird.f32 %v2291
    %vm2298 = vmor %vm2296, %vm2297
    %v2299 = vsel %vm2298, %v2291, %v2295
    %v2300 = vand.u32 2147483647, %v651
    %vm2301 = vcmp.eq.f32.partialorder %v2300, 8.507059e+37
    %v2302 = vand.u32 %v651, 2147483648
    %v2303 = vor.u32 1.1754944e-38, %v2302
    %v2304 = vsel %vm2301, %v2303, %v2299
    %v2305 = vmul.f32 1.0, %v2304
    %v2306 = vrcp.pop %v652
    %v2307 = vmul.f32 %v652, %v2306
    %v2308 = vsub.f32 1.0, %v2307
    %v2309 = vmul.f32 %v2306, %v2308
    %v2310 = vadd.f32 %v2306, %v2309
    %vm2311 = vweird.f32 %v652
    %vm2312 = vweird.f32 %v2306
    %vm2313 = vmor %vm2311, %vm2312
    %v2314 = vsel %vm2313, %v2306, %v2310
    %v2315 = vand.u32 2147483647, %v652
    %vm2316 = vcmp.eq.f32.partialorder %v2315, 8.507059e+37
    %v2317 = vand.u32 %v652, 2147483648
    %v2318 = vor.u32 1.1754944e-38, %v2317
    %v2319 = vsel %vm2316, %v2318, %v2314
    %v2320 = vmul.f32 1.0, %v2319
    %v2321 = vrcp.pop %v653
    %v2322 = vmul.f32 %v653, %v2321
    %v2323 = vsub.f32 1.0, %v2322
    %v2324 = vmul.f32 %v2321, %v2323
    %v2325 = vadd.f32 %v2321, %v2324
    %vm2326 = vweird.f32 %v653
    %vm2327 = vweird.f32 %v2321
    %vm2328 = vmor %vm2326, %vm2327
    %v2329 = vsel %vm2328, %v2321, %v2325
    %v2330 = vand.u32 2147483647, %v653
    %vm2331 = vcmp.eq.f32.partialorder %v2330, 8.507059e+37
    %v2332 = vand.u32 %v653, 2147483648
    %v2333 = vor.u32 1.1754944e-38, %v2332
    %v2334 = vsel %vm2331, %v2333, %v2329
    %v2335 = vmul.f32 1.0, %v2334
    %v2336 = vrcp.pop %v654
    %v2337 = vmul.f32 %v654, %v2336
    %v2338 = vsub.f32 1.0, %v2337
    %v2339 = vmul.f32 %v2336, %v2338
    %v2340 = vadd.f32 %v2336, %v2339
    %vm2341 = vweird.f32 %v654
    %vm2342 = vweird.f32 %v2336
    %vm2343 = vmor %vm2341, %vm2342
    %v2344 = vsel %vm2343, %v2336, %v2340
    %v2345 = vand.u32 2147483647, %v654
    %vm2346 = vcmp.eq.f32.partialorder %v2345, 8.507059e+37
    %v2347 = vand.u32 %v654, 2147483648
    %v2348 = vor.u32 1.1754944e-38, %v2347
    %v2349 = vsel %vm2346, %v2348, %v2344
    %v2350 = vmul.f32 1.0, %v2349
    %v2351 = vrcp.pop %v655
    %v2352 = vmul.f32 %v655, %v2351
    %v2353 = vsub.f32 1.0, %v2352
    %v2354 = vmul.f32 %v2351, %v2353
    %v2355 = vadd.f32 %v2351, %v2354
    %vm2356 = vweird.f32 %v655
    %vm2357 = vweird.f32 %v2351
    %vm2358 = vmor %vm2356, %vm2357
    %v2359 = vsel %vm2358, %v2351, %v2355
    %v2360 = vand.u32 2147483647, %v655
    %vm2361 = vcmp.eq.f32.partialorder %v2360, 8.507059e+37
    %v2362 = vand.u32 %v655, 2147483648
    %v2363 = vor.u32 1.1754944e-38, %v2362
    %v2364 = vsel %vm2361, %v2363, %v2359
    %v2365 = vmul.f32 1.0, %v2364
    %v2366 = vrcp.pop %v656
    %v2367 = vmul.f32 %v656, %v2366
    %v2368 = vsub.f32 1.0, %v2367
    %v2369 = vmul.f32 %v2366, %v2368
    %v2370 = vadd.f32 %v2366, %v2369
    %vm2371 = vweird.f32 %v656
    %vm2372 = vweird.f32 %v2366
    %vm2373 = vmor %vm2371, %vm2372
    %v2374 = vsel %vm2373, %v2366, %v2370
    %v2375 = vand.u32 2147483647, %v656
    %vm2376 = vcmp.eq.f32.partialorder %v2375, 8.507059e+37
    %v2377 = vand.u32 %v656, 2147483648
    %v2378 = vor.u32 1.1754944e-38, %v2377
    %v2379 = vsel %vm2376, %v2378, %v2374
    %v2380 = vmul.f32 1.0, %v2379
    %v2381 = vrcp.pop %v657
    %v2382 = vmul.f32 %v657, %v2381
    %v2383 = vsub.f32 1.0, %v2382
    %v2384 = vmul.f32 %v2381, %v2383
    %v2385 = vadd.f32 %v2381, %v2384
    %vm2386 = vweird.f32 %v657
    %vm2387 = vweird.f32 %v2381
    %vm2388 = vmor %vm2386, %vm2387
    %v2389 = vsel %vm2388, %v2381, %v2385
    %v2390 = vand.u32 2147483647, %v657
    %vm2391 = vcmp.eq.f32.partialorder %v2390, 8.507059e+37
    %v2392 = vand.u32 %v657, 2147483648
    %v2393 = vor.u32 1.1754944e-38, %v2392
    %v2394 = vsel %vm2391, %v2393, %v2389
    %v2395 = vmul.f32 1.0, %v2394
    %v2396 = vrcp.pop %v658
    %v2397 = vmul.f32 %v658, %v2396
    %v2398 = vsub.f32 1.0, %v2397
    %v2399 = vmul.f32 %v2396, %v2398
    %v2400 = vadd.f32 %v2396, %v2399
    %vm2401 = vweird.f32 %v658
    %vm2402 = vweird.f32 %v2396
    %vm2403 = vmor %vm2401, %vm2402
    %v2404 = vsel %vm2403, %v2396, %v2400
    %v2405 = vand.u32 2147483647, %v658
    %vm2406 = vcmp.eq.f32.partialorder %v2405, 8.507059e+37
    %v2407 = vand.u32 %v658, 2147483648
    %v2408 = vor.u32 1.1754944e-38, %v2407
    %v2409 = vsel %vm2406, %v2408, %v2404
    %v2410 = vmul.f32 1.0, %v2409
    %v2411 = vrcp.pop %v659
    %v2412 = vmul.f32 %v659, %v2411
    %v2413 = vsub.f32 1.0, %v2412
    %v2414 = vmul.f32 %v2411, %v2413
    %v2415 = vadd.f32 %v2411, %v2414
    %vm2416 = vweird.f32 %v659
    %vm2417 = vweird.f32 %v2411
    %vm2418 = vmor %vm2416, %vm2417
    %v2419 = vsel %vm2418, %v2411, %v2415
    %v2420 = vand.u32 2147483647, %v659
    %vm2421 = vcmp.eq.f32.partialorder %v2420, 8.507059e+37
    %v2422 = vand.u32 %v659, 2147483648
    %v2423 = vor.u32 1.1754944e-38, %v2422
    %v2424 = vsel %vm2421, %v2423, %v2419
    %v2425 = vmul.f32 1.0, %v2424
    %v2426 = vrcp.pop %v660
    %v2427 = vmul.f32 %v660, %v2426
    %v2428 = vsub.f32 1.0, %v2427
    %v2429 = vmul.f32 %v2426, %v2428
    %v2430 = vadd.f32 %v2426, %v2429
    %vm2431 = vweird.f32 %v660
    %vm2432 = vweird.f32 %v2426
    %vm2433 = vmor %vm2431, %vm2432
    %v2434 = vsel %vm2433, %v2426, %v2430
    %v2435 = vand.u32 2147483647, %v660
    %vm2436 = vcmp.eq.f32.partialorder %v2435, 8.507059e+37
    %v2437 = vand.u32 %v660, 2147483648
    %v2438 = vor.u32 1.1754944e-38, %v2437
    %v2439 = vsel %vm2436, %v2438, %v2434
    %v2440 = vmul.f32 1.0, %v2439
    %v2441 = vrcp.pop %v661
    %v2442 = vmul.f32 %v661, %v2441
    %v2443 = vsub.f32 1.0, %v2442
    %v2444 = vmul.f32 %v2441, %v2443
    %v2445 = vadd.f32 %v2441, %v2444
    %vm2446 = vweird.f32 %v661
    %vm2447 = vweird.f32 %v2441
    %vm2448 = vmor %vm2446, %vm2447
    %v2449 = vsel %vm2448, %v2441, %v2445
    %v2450 = vand.u32 2147483647, %v661
    %vm2451 = vcmp.eq.f32.partialorder %v2450, 8.507059e+37
    %v2452 = vand.u32 %v661, 2147483648
    %v2453 = vor.u32 1.1754944e-38, %v2452
    %v2454 = vsel %vm2451, %v2453, %v2449
    %v2455 = vmul.f32 1.0, %v2454
    %v2456 = vrcp.pop %v662
    %v2457 = vmul.f32 %v662, %v2456
    %v2458 = vsub.f32 1.0, %v2457
    %v2459 = vmul.f32 %v2456, %v2458
    %v2460 = vadd.f32 %v2456, %v2459
    %vm2461 = vweird.f32 %v662
    %vm2462 = vweird.f32 %v2456
    %vm2463 = vmor %vm2461, %vm2462
    %v2464 = vsel %vm2463, %v2456, %v2460
    %v2465 = vand.u32 2147483647, %v662
    %vm2466 = vcmp.eq.f32.partialorder %v2465, 8.507059e+37
    %v2467 = vand.u32 %v662, 2147483648
    %v2468 = vor.u32 1.1754944e-38, %v2467
    %v2469 = vsel %vm2466, %v2468, %v2464
    %v2470 = vmul.f32 1.0, %v2469
    %v2471 = vrcp.pop %v663
    %v2472 = vmul.f32 %v663, %v2471
    %v2473 = vsub.f32 1.0, %v2472
    %v2474 = vmul.f32 %v2471, %v2473
    %v2475 = vadd.f32 %v2471, %v2474
    %vm2476 = vweird.f32 %v663
    %vm2477 = vweird.f32 %v2471
    %vm2478 = vmor %vm2476, %vm2477
    %v2479 = vsel %vm2478, %v2471, %v2475
    %v2480 = vand.u32 2147483647, %v663
    %vm2481 = vcmp.eq.f32.partialorder %v2480, 8.507059e+37
    %v2482 = vand.u32 %v663, 2147483648
    %v2483 = vor.u32 1.1754944e-38, %v2482
    %v2484 = vsel %vm2481, %v2483, %v2479
    %v2485 = vmul.f32 1.0, %v2484
    %v2486 = vrcp.pop %v664
    %v2487 = vmul.f32 %v664, %v2486
    %v2488 = vsub.f32 1.0, %v2487
    %v2489 = vmul.f32 %v2486, %v2488
    %v2490 = vadd.f32 %v2486, %v2489
    %vm2491 = vweird.f32 %v664
    %vm2492 = vweird.f32 %v2486
    %vm2493 = vmor %vm2491, %vm2492
    %v2494 = vsel %vm2493, %v2486, %v2490
    %v2495 = vand.u32 2147483647, %v664
    %vm2496 = vcmp.eq.f32.partialorder %v2495, 8.507059e+37
    %v2497 = vand.u32 %v664, 2147483648
    %v2498 = vor.u32 1.1754944e-38, %v2497
    %v2499 = vsel %vm2496, %v2498, %v2494
    %v2500 = vmul.f32 1.0, %v2499
    %v2501 = vrcp.pop %v665
    %v2502 = vmul.f32 %v665, %v2501
    %v2503 = vsub.f32 1.0, %v2502
    %v2504 = vmul.f32 %v2501, %v2503
    %v2505 = vadd.f32 %v2501, %v2504
    %vm2506 = vweird.f32 %v665
    %vm2507 = vweird.f32 %v2501
    %vm2508 = vmor %vm2506, %vm2507
    %v2509 = vsel %vm2508, %v2501, %v2505
    %v2510 = vand.u32 2147483647, %v665
    %vm2511 = vcmp.eq.f32.partialorder %v2510, 8.507059e+37
    %v2512 = vand.u32 %v665, 2147483648
    %v2513 = vor.u32 1.1754944e-38, %v2512
    %v2514 = vsel %vm2511, %v2513, %v2509
    %v2515 = vmul.f32 1.0, %v2514
    %v2516 = vrcp.pop %v666
    %v2517 = vmul.f32 %v666, %v2516
    %v2518 = vsub.f32 1.0, %v2517
    %v2519 = vmul.f32 %v2516, %v2518
    %v2520 = vadd.f32 %v2516, %v2519
    %vm2521 = vweird.f32 %v666
    %vm2522 = vweird.f32 %v2516
    %vm2523 = vmor %vm2521, %vm2522
    %v2524 = vsel %vm2523, %v2516, %v2520
    %v2525 = vand.u32 2147483647, %v666
    %vm2526 = vcmp.eq.f32.partialorder %v2525, 8.507059e+37
    %v2527 = vand.u32 %v666, 2147483648
    %v2528 = vor.u32 1.1754944e-38, %v2527
    %v2529 = vsel %vm2526, %v2528, %v2524
    %v2530 = vmul.f32 1.0, %v2529
    %v2531 = vrcp.pop %v667
    %v2532 = vmul.f32 %v667, %v2531
    %v2533 = vsub.f32 1.0, %v2532
    %v2534 = vmul.f32 %v2531, %v2533
    %v2535 = vadd.f32 %v2531, %v2534
    %vm2536 = vweird.f32 %v667
    %vm2537 = vweird.f32 %v2531
    %vm2538 = vmor %vm2536, %vm2537
    %v2539 = vsel %vm2538, %v2531, %v2535
    %v2540 = vand.u32 2147483647, %v667
    %vm2541 = vcmp.eq.f32.partialorder %v2540, 8.507059e+37
    %v2542 = vand.u32 %v667, 2147483648
    %v2543 = vor.u32 1.1754944e-38, %v2542
    %v2544 = vsel %vm2541, %v2543, %v2539
    %v2545 = vmul.f32 1.0, %v2544
    %v2546 = vrcp.pop %v668
    %v2547 = vmul.f32 %v668, %v2546
    %v2548 = vsub.f32 1.0, %v2547
    %v2549 = vmul.f32 %v2546, %v2548
    %v2550 = vadd.f32 %v2546, %v2549
    %vm2551 = vweird.f32 %v668
    %vm2552 = vweird.f32 %v2546
    %vm2553 = vmor %vm2551, %vm2552
    %v2554 = vsel %vm2553, %v2546, %v2550
    %v2555 = vand.u32 2147483647, %v668
    %vm2556 = vcmp.eq.f32.partialorder %v2555, 8.507059e+37
    %v2557 = vand.u32 %v668, 2147483648
    %v2558 = vor.u32 1.1754944e-38, %v2557
    %v2559 = vsel %vm2556, %v2558, %v2554
    %v2560 = vmul.f32 1.0, %v2559
    %v2561 = vrcp.pop %v669
    %v2562 = vmul.f32 %v669, %v2561
    %v2563 = vsub.f32 1.0, %v2562
    %v2564 = vmul.f32 %v2561, %v2563
    %v2565 = vadd.f32 %v2561, %v2564
    %vm2566 = vweird.f32 %v669
    %vm2567 = vweird.f32 %v2561
    %vm2568 = vmor %vm2566, %vm2567
    %v2569 = vsel %vm2568, %v2561, %v2565
    %v2570 = vand.u32 2147483647, %v669
    %vm2571 = vcmp.eq.f32.partialorder %v2570, 8.507059e+37
    %v2572 = vand.u32 %v669, 2147483648
    %v2573 = vor.u32 1.1754944e-38, %v2572
    %v2574 = vsel %vm2571, %v2573, %v2569
    %v2575 = vmul.f32 1.0, %v2574
    %v2576 = vrcp.pop %v670
    %v2577 = vmul.f32 %v670, %v2576
    %v2578 = vsub.f32 1.0, %v2577
    %v2579 = vmul.f32 %v2576, %v2578
    %v2580 = vadd.f32 %v2576, %v2579
    %vm2581 = vweird.f32 %v670
    %vm2582 = vweird.f32 %v2576
    %vm2583 = vmor %vm2581, %vm2582
    %v2584 = vsel %vm2583, %v2576, %v2580
    %v2585 = vand.u32 2147483647, %v670
    %vm2586 = vcmp.eq.f32.partialorder %v2585, 8.507059e+37
    %v2587 = vand.u32 %v670, 2147483648
    %v2588 = vor.u32 1.1754944e-38, %v2587
    %v2589 = vsel %vm2586, %v2588, %v2584
    %v2590 = vmul.f32 1.0, %v2589
    %v2591 = vmul.f32 %v685, 2.5
    %v2592 = vmul.f32 %v700, 2.5
    %v2593 = vmul.f32 %v715, 2.5
    %v2594 = vmul.f32 %v730, 2.5
    %v2595 = vmul.f32 %v745, 2.5
    %v2596 = vmul.f32 %v760, 2.5
    %v2597 = vmul.f32 %v775, 2.5
    %v2598 = vmul.f32 %v790, 2.5
    %v2599 = vmul.f32 %v805, 2.5
    %v2600 = vmul.f32 %v820, 2.5
    %v2601 = vmul.f32 %v835, 2.5
    %v2602 = vmul.f32 %v850, 2.5
    %v2603 = vmul.f32 %v865, 2.5
    %v2604 = vmul.f32 %v880, 2.5
    %v2605 = vmul.f32 %v895, 2.5
    %v2606 = vmul.f32 %v910, 2.5
    %v2607 = vmul.f32 %v925, 2.5
    %v2608 = vmul.f32 %v940, 2.5
    %v2609 = vmul.f32 %v955, 2.5
    %v2610 = vmul.f32 %v970, 2.5
    %v2611 = vmul.f32 %v985, 2.5
    %v2612 = vmul.f32 %v1000, 2.5
    %v2613 = vmul.f32 %v1015, 2.5
    %v2614 = vmul.f32 %v1030, 2.5
    %v2615 = vmul.f32 %v1045, 2.5
    %v2616 = vmul.f32 %v1060, 2.5
    %v2617 = vmul.f32 %v1075, 2.5
    %v2618 = vmul.f32 %v1090, 2.5
    %v2619 = vmul.f32 %v1105, 2.5
    %v2620 = vmul.f32 %v1120, 2.5
    %v2621 = vmul.f32 %v1135, 2.5
    %v2622 = vmul.f32 %v1150, 2.5
    %v2623 = vmul.f32 %v1165, 2.5
    %v2624 = vmul.f32 %v1180, 2.5
    %v2625 = vmul.f32 %v1195, 2.5
    %v2626 = vmul.f32 %v1210, 2.5
    %v2627 = vmul.f32 %v1225, 2.5
    %v2628 = vmul.f32 %v1240, 2.5
    %v2629 = vmul.f32 %v1255, 2.5
    %v2630 = vmul.f32 %v1270, 2.5
    %v2631 = vmul.f32 %v1285, 2.5
    %v2632 = vmul.f32 %v1300, 2.5
    %v2633 = vmul.f32 %v1315, 2.5
    %v2634 = vmul.f32 %v1330, 2.5
    %v2635 = vmul.f32 %v1345, 2.5
    %v2636 = vmul.f32 %v1360, 2.5
    %v2637 = vmul.f32 %v1375, 2.5
    %v2638 = vmul.f32 %v1390, 2.5
    %v2639 = vmul.f32 %v1405, 2.5
    %v2640 = vmul.f32 %v1420, 2.5
    %v2641 = vmul.f32 %v1435, 2.5
    %v2642 = vmul.f32 %v1450, 2.5
    %v2643 = vmul.f32 %v1465, 2.5
    %v2644 = vmul.f32 %v1480, 2.5
    %v2645 = vmul.f32 %v1495, 2.5
    %v2646 = vmul.f32 %v1510, 2.5
    %v2647 = vmul.f32 %v1525, 2.5
    %v2648 = vmul.f32 %v1540, 2.5
    %v2649 = vmul.f32 %v1555, 2.5
    %v2650 = vmul.f32 %v1570, 2.5
    %v2651 = vmul.f32 %v1585, 2.5
    %v2652 = vmul.f32 %v1600, 2.5
    %v2653 = vmul.f32 %v1615, 2.5
    %v2654 = vmul.f32 %v1630, 2.5
    %v2655 = vmul.f32 %v1645, 2.5
    %v2656 = vmul.f32 %v1660, 2.5
    %v2657 = vmul.f32 %v1675, 2.5
    %v2658 = vmul.f32 %v1690, 2.5
    %v2659 = vmul.f32 %v1705, 2.5
    %v2660 = vmul.f32 %v1720, 2.5
    %v2661 = vmul.f32 %v1735, 2.5
    %v2662 = vmul.f32 %v1750, 2.5
    %v2663 = vmul.f32 %v1765, 2.5
    %v2664 = vmul.f32 %v1780, 2.5
    %v2665 = vmul.f32 %v1795, 2.5
    %v2666 = vmul.f32 %v1810, 2.5
    %v2667 = vmul.f32 %v1825, 2.5
    %v2668 = vmul.f32 %v1840, 2.5
    %v2669 = vmul.f32 %v1855, 2.5
    %v2670 = vmul.f32 %v1870, 2.5
    %v2671 = vmul.f32 %v1885, 2.5
    %v2672 = vmul.f32 %v1900, 2.5
    %v2673 = vmul.f32 %v1915, 2.5
    %v2674 = vmul.f32 %v1930, 2.5
    %v2675 = vmul.f32 %v1945, 2.5
    %v2676 = vmul.f32 %v1960, 2.5
    %v2677 = vmul.f32 %v1975, 2.5
    %v2678 = vmul.f32 %v1990, 2.5
    %v2679 = vmul.f32 %v2005, 2.5
    %v2680 = vmul.f32 %v2020, 2.5
    %v2681 = vmul.f32 %v2035, 2.5
    %v2682 = vmul.f32 %v2050, 2.5
    %v2683 = vmul.f32 %v2065, 2.5
    %v2684 = vmul.f32 %v2080, 2.5
    %v2685 = vmul.f32 %v2095, 2.5
    %v2686 = vmul.f32 %v2110, 2.5
    %v2687 = vmul.f32 %v2125, 2.5
    %v2688 = vmul.f32 %v2140, 2.5
    %v2689 = vmul.f32 %v2155, 2.5
    %v2690 = vmul.f32 %v2170, 2.5
    %v2691 = vmul.f32 %v2185, 2.5
    %v2692 = vmul.f32 %v2200, 2.5
    %v2693 = vmul.f32 %v2215, 2.5
    %v2694 = vmul.f32 %v2230, 2.5
    %v2695 = vmul.f32 %v2245, 2.5
    %v2696 = vmul.f32 %v2260, 2.5
    %v2697 = vmul.f32 %v2275, 2.5
    %v2698 = vmul.f32 %v2290, 2.5
    %v2699 = vmul.f32 %v2305, 2.5
    %v2700 = vmul.f32 %v2320, 2.5
    %v2701 = vmul.f32 %v2335, 2.5
    %v2702 = vmul.f32 %v2350, 2.5
    %v2703 = vmul.f32 %v2365, 2.5
    %v2704 = vmul.f32 %v2380, 2.5
    %v2705 = vmul.f32 %v2395, 2.5
    %v2706 = vmul.f32 %v2410, 2.5
    %v2707 = vmul.f32 %v2425, 2.5
    %v2708 = vmul.f32 %v2440, 2.5
    %v2709 = vmul.f32 %v2455, 2.5
    %v2710 = vmul.f32 %v2470, 2.5
    %v2711 = vmul.f32 %v2485, 2.5
    %v2712 = vmul.f32 %v2500, 2.5
    %v2713 = vmul.f32 %v2515, 2.5
    %v2714 = vmul.f32 %v2530, 2.5
    %v2715 = vmul.f32 %v2545, 2.5
    %v2716 = vmul.f32 %v2560, 2.5
    %v2717 = vmul.f32 %v2575, 2.5
    %v2718 = vmul.f32 %v2590, 2.5
    %2719 = vst [vmem:[#allocation5] sm:$0xff] %v2591
    %2720 = vst [vmem:[#allocation5 + $0x8] sm:$0xff] %v2592
    %2721 = vst [vmem:[#allocation5 + $0x10] sm:$0xff] %v2593
    %2722 = vst [vmem:[#allocation5 + $0x18] sm:$0xff] %v2594
    %2723 = vst [vmem:[#allocation5 + $0x20] sm:$0xff] %v2595
    %2724 = vst [vmem:[#allocation5 + $0x28] sm:$0xff] %v2596
    %2725 = vst [vmem:[#allocation5 + $0x30] sm:$0xff] %v2597
    %2726 = vst [vmem:[#allocation5 + $0x38] sm:$0xff] %v2598
    %2727 = vst [vmem:[#allocation5 + $0x40] sm:$0xff] %v2599
    %2728 = vst [vmem:[#allocation5 + $0x48] sm:$0xff] %v2600
    %2729 = vst [vmem:[#allocation5 + $0x50] sm:$0xff] %v2601
    %2730 = vst [vmem:[#allocation5 + $0x58] sm:$0xff] %v2602
    %2731 = vst [vmem:[#allocation5 + $0x60] sm:$0xff] %v2603
    %2732 = vst [vmem:[#allocation5 + $0x68] sm:$0xff] %v2604
    %2733 = vst [vmem:[#allocation5 + $0x70] sm:$0xff] %v2605
    %2734 = vst [vmem:[#allocation5 + $0x78] sm:$0xff] %v2606
    %2735 = vst [vmem:[#allocation5 + $0x80] sm:$0xff] %v2607
    %2736 = vst [vmem:[#allocation5 + $0x88] sm:$0xff] %v2608
    %2737 = vst [vmem:[#allocation5 + $0x90] sm:$0xff] %v2609
    %2738 = vst [vmem:[#allocation5 + $0x98] sm:$0xff] %v2610
    %2739 = vst [vmem:[#allocation5 + $0xa0] sm:$0xff] %v2611
    %2740 = vst [vmem:[#allocation5 + $0xa8] sm:$0xff] %v2612
    %2741 = vst [vmem:[#allocation5 + $0xb0] sm:$0xff] %v2613
    %2742 = vst [vmem:[#allocation5 + $0xb8] sm:$0xff] %v2614
    %2743 = vst [vmem:[#allocation5 + $0xc0] sm:$0xff] %v2615
    %2744 = vst [vmem:[#allocation5 + $0xc8] sm:$0xff] %v2616
    %2745 = vst [vmem:[#allocation5 + $0xd0] sm:$0xff] %v2617
    %2746 = vst [vmem:[#allocation5 + $0xd8] sm:$0xff] %v2618
    %2747 = vst [vmem:[#allocation5 + $0xe0] sm:$0xff] %v2619
    %2748 = vst [vmem:[#allocation5 + $0xe8] sm:$0xff] %v2620
    %2749 = vst [vmem:[#allocation5 + $0xf0] sm:$0xff] %v2621
    %2750 = vst [vmem:[#allocation5 + $0xf8] sm:$0xff] %v2622
    %2751 = vst [vmem:[#allocation5 + $0x100] sm:$0xff] %v2623
    %2752 = vst [vmem:[#allocation5 + $0x108] sm:$0xff] %v2624
    %2753 = vst [vmem:[#allocation5 + $0x110] sm:$0xff] %v2625
    %2754 = vst [vmem:[#allocation5 + $0x118] sm:$0xff] %v2626
    %2755 = vst [vmem:[#allocation5 + $0x120] sm:$0xff] %v2627
    %2756 = vst [vmem:[#allocation5 + $0x128] sm:$0xff] %v2628
    %2757 = vst [vmem:[#allocation5 + $0x130] sm:$0xff] %v2629
    %2758 = vst [vmem:[#allocation5 + $0x138] sm:$0xff] %v2630
    %2759 = vst [vmem:[#allocation5 + $0x140] sm:$0xff] %v2631
    %2760 = vst [vmem:[#allocation5 + $0x148] sm:$0xff] %v2632
    %2761 = vst [vmem:[#allocation5 + $0x150] sm:$0xff] %v2633
    %2762 = vst [vmem:[#allocation5 + $0x158] sm:$0xff] %v2634
    %2763 = vst [vmem:[#allocation5 + $0x160] sm:$0xff] %v2635
    %2764 = vst [vmem:[#allocation5 + $0x168] sm:$0xff] %v2636
    %2765 = vst [vmem:[#allocation5 + $0x170] sm:$0xff] %v2637
    %2766 = vst [vmem:[#allocation5 + $0x178] sm:$0xff] %v2638
    %2767 = vst [vmem:[#allocation5 + $0x180] sm:$0xff] %v2639
    %2768 = vst [vmem:[#allocation5 + $0x188] sm:$0xff] %v2640
    %2769 = vst [vmem:[#allocation5 + $0x190] sm:$0xff] %v2641
    %2770 = vst [vmem:[#allocation5 + $0x198] sm:$0xff] %v2642
    %2771 = vst [vmem:[#allocation5 + $0x1a0] sm:$0xff] %v2643
    %2772 = vst [vmem:[#allocation5 + $0x1a8] sm:$0xff] %v2644
    %2773 = vst [vmem:[#allocation5 + $0x1b0] sm:$0xff] %v2645
    %2774 = vst [vmem:[#allocation5 + $0x1b8] sm:$0xff] %v2646
    %2775 = vst [vmem:[#allocation5 + $0x1c0] sm:$0xff] %v2647
    %2776 = vst [vmem:[#allocation5 + $0x1c8] sm:$0xff] %v2648
    %2777 = vst [vmem:[#allocation5 + $0x1d0] sm:$0xff] %v2649
    %2778 = vst [vmem:[#allocation5 + $0x1d8] sm:$0xff] %v2650
    %2779 = vst [vmem:[#allocation5 + $0x1e0] sm:$0xff] %v2651
    %2780 = vst [vmem:[#allocation5 + $0x1e8] sm:$0xff] %v2652
    %2781 = vst [vmem:[#allocation5 + $0x1f0] sm:$0xff] %v2653
    %2782 = vst [vmem:[#allocation5 + $0x1f8] sm:$0xff] %v2654
    %2783 = vst [vmem:[#allocation5 + $0x200] sm:$0xff] %v2655
    %2784 = vst [vmem:[#allocation5 + $0x208] sm:$0xff] %v2656
    %2785 = vst [vmem:[#allocation5 + $0x210] sm:$0xff] %v2657
    %2786 = vst [vmem:[#allocation5 + $0x218] sm:$0xff] %v2658
    %2787 = vst [vmem:[#allocation5 + $0x220] sm:$0xff] %v2659
    %2788 = vst [vmem:[#allocation5 + $0x228] sm:$0xff] %v2660
    %2789 = vst [vmem:[#allocation5 + $0x230] sm:$0xff] %v2661
    %2790 = vst [vmem:[#allocation5 + $0x238] sm:$0xff] %v2662
    %2791 = vst [vmem:[#allocation5 + $0x240] sm:$0xff] %v2663
    %2792 = vst [vmem:[#allocation5 + $0x248] sm:$0xff] %v2664
    %2793 = vst [vmem:[#allocation5 + $0x250] sm:$0xff] %v2665
    %2794 = vst [vmem:[#allocation5 + $0x258] sm:$0xff] %v2666
    %2795 = vst [vmem:[#allocation5 + $0x260] sm:$0xff] %v2667
    %2796 = vst [vmem:[#allocation5 + $0x268] sm:$0xff] %v2668
    %2797 = vst [vmem:[#allocation5 + $0x270] sm:$0xff] %v2669
    %2798 = vst [vmem:[#allocation5 + $0x278] sm:$0xff] %v2670
    %2799 = vst [vmem:[#allocation5 + $0x280] sm:$0xff] %v2671
    %2800 = vst [vmem:[#allocation5 + $0x288] sm:$0xff] %v2672
    %2801 = vst [vmem:[#allocation5 + $0x290] sm:$0xff] %v2673
    %2802 = vst [vmem:[#allocation5 + $0x298] sm:$0xff] %v2674
    %2803 = vst [vmem:[#allocation5 + $0x2a0] sm:$0xff] %v2675
    %2804 = vst [vmem:[#allocation5 + $0x2a8] sm:$0xff] %v2676
    %2805 = vst [vmem:[#allocation5 + $0x2b0] sm:$0xff] %v2677
    %2806 = vst [vmem:[#allocation5 + $0x2b8] sm:$0xff] %v2678
    %2807 = vst [vmem:[#allocation5 + $0x2c0] sm:$0xff] %v2679
    %2808 = vst [vmem:[#allocation5 + $0x2c8] sm:$0xff] %v2680
    %2809 = vst [vmem:[#allocation5 + $0x2d0] sm:$0xff] %v2681
    %2810 = vst [vmem:[#allocation5 + $0x2d8] sm:$0xff] %v2682
    %2811 = vst [vmem:[#allocation5 + $0x2e0] sm:$0xff] %v2683
    %2812 = vst [vmem:[#allocation5 + $0x2e8] sm:$0xff] %v2684
    %2813 = vst [vmem:[#allocation5 + $0x2f0] sm:$0xff] %v2685
    %2814 = vst [vmem:[#allocation5 + $0x2f8] sm:$0xff] %v2686
    %2815 = vst [vmem:[#allocation5 + $0x300] sm:$0xff] %v2687
    %2816 = vst [vmem:[#allocation5 + $0x308] sm:$0xff] %v2688
    %2817 = vst [vmem:[#allocation5 + $0x310] sm:$0xff] %v2689
    %2818 = vst [vmem:[#allocation5 + $0x318] sm:$0xff] %v2690
    %2819 = vst [vmem:[#allocation5 + $0x320] sm:$0xff] %v2691
    %2820 = vst [vmem:[#allocation5 + $0x328] sm:$0xff] %v2692
    %2821 = vst [vmem:[#allocation5 + $0x330] sm:$0xff] %v2693
    %2822 = vst [vmem:[#allocation5 + $0x338] sm:$0xff] %v2694
    %2823 = vst [vmem:[#allocation5 + $0x340] sm:$0xff] %v2695
    %2824 = vst [vmem:[#allocation5 + $0x348] sm:$0xff] %v2696
    %2825 = vst [vmem:[#allocation5 + $0x350] sm:$0xff] %v2697
    %2826 = vst [vmem:[#allocation5 + $0x358] sm:$0xff] %v2698
    %2827 = vst [vmem:[#allocation5 + $0x360] sm:$0xff] %v2699
    %2828 = vst [vmem:[#allocation5 + $0x368] sm:$0xff] %v2700
    %2829 = vst [vmem:[#allocation5 + $0x370] sm:$0xff] %v2701
    %2830 = vst [vmem:[#allocation5 + $0x378] sm:$0xff] %v2702
    %2831 = vst [vmem:[#allocation5 + $0x380] sm:$0xff] %v2703
    %2832 = vst [vmem:[#allocation5 + $0x388] sm:$0xff] %v2704
    %2833 = vst [vmem:[#allocation5 + $0x390] sm:$0xff] %v2705
    %2834 = vst [vmem:[#allocation5 + $0x398] sm:$0xff] %v2706
    %2835 = vst [vmem:[#allocation5 + $0x3a0] sm:$0xff] %v2707
    %2836 = vst [vmem:[#allocation5 + $0x3a8] sm:$0xff] %v2708
    %2837 = vst [vmem:[#allocation5 + $0x3b0] sm:$0xff] %v2709
    %2838 = vst [vmem:[#allocation5 + $0x3b8] sm:$0xff] %v2710
    %2839 = vst [vmem:[#allocation5 + $0x3c0] sm:$0xff] %v2711
    %2840 = vst [vmem:[#allocation5 + $0x3c8] sm:$0xff] %v2712
    %2841 = vst [vmem:[#allocation5 + $0x3d0] sm:$0xff] %v2713
    %2842 = vst [vmem:[#allocation5 + $0x3d8] sm:$0xff] %v2714
    %2843 = vst [vmem:[#allocation5 + $0x3e0] sm:$0xff] %v2715
    %2844 = vst [vmem:[#allocation5 + $0x3e8] sm:$0xff] %v2716
    %2845 = vst [vmem:[#allocation5 + $0x3f0] sm:$0xff] %v2717
    %2846 = vst [vmem:[#allocation5 + $0x3f8] sm:$0xff] %v2718
    // Predicated region
    $region10: #{tpu_custom_call.1} parent=1 // pred_check
      _
    $region11: #{tpu_custom_call.1} parent=1 // pred_check_branch
      %2848 = sbr.rel (0) target = $region13
    $region12: #{tpu_custom_call.1} parent=1 // pred_region
      %s2849 = smul.u32 16, %s5
      %2851 = vsyncadd [#allocation4], 0
      %s2852 = smul.addr %s2849, 8
      %s2853 = smul.addr %s2852, 8
      %s2854 = scalar_lea.hbm %s1, %s2853
      %s2855 = sshll.u32 [#allocation5], 4
      %s2856 = int_to_ptr.vmem [resolvable:$true] %s2855
      %s2857 = sshll.u32 %s2854, 4
      %s2858 = int_to_ptr.hbm [resolvable:$true] %s2857
      %2863 = dma.vmem_to_hbm [thread:$0]  %s2856, 16384, %s2858, [#allocation4], 1024, 1024, 64
    $region13: #{tpu_custom_call.1} parent=1 // pred_fallthru
      _
    // Predicated region
    $region14: #{tpu_custom_call.1} parent=1 // pred_check
      _
    $region15: #{tpu_custom_call.1} parent=1 // pred_check_branch
      %2865 = sbr.rel (0) target = $region17
    $region16: #{tpu_custom_call.1} parent=1 // pred_region
      %2867 = dma.done [#allocation4], 16384
    $region17: #{tpu_custom_call.1} parent=1 // pred_fallthru
      _
    %2868 = vsyncpa [#allocation3], 1
    %2869 = vsyncpa [#allocation4], 1

// kernel: tpu_custom_call.1
$region0: #{tpu_custom_call.1}
  #allocation0 [shape = 'u32[]', space=smem, size = 0x4, offset = 0x4, fixed_abs, tag = 'smem constant byte address 0x4 - core index']
  #allocation1 [shape = 'u32[72,128]{1,0:T(1,128)}', space=vmem, size = 0x9000, scoped, tag = 'internal scratch']
  %s0 = inlined_call_operand.hbm [shape: f32[128,1024], index: 0, kind: input, shape index: {}]
  %s1 = inlined_call_operand.hbm [shape: f32[128,1024], index: 1, kind: output, shape index: {}]
  %s2 = sld [smem:[#allocation0]]
  $region18: #{tpu_custom_call.1} parent=0
    _
  %s4 = ssub.s32 1, %s2
  %s5 = scalar_select 0, %s4, %s2
  $region1: #{tpu_custom_call.1} parent=0
    #allocation2 [shape = 'u8[524288]{0}', space=vmem, size = 0x80000, scoped, tag = 'input window, operand 0, single buffered']
    #allocation3 [shape = 's32[1]{0}', space=sflag, size = 0x4, scoped, tag = 'scoped memory for tpu_custom_call.1']
    #allocation4 [shape = 's32[1]{0}', space=sflag, size = 0x4, scoped, tag = 'scoped memory for tpu_custom_call.1']
    #allocation5 [shape = 'u8[524288]{0}', space=vmem, size = 0x80000, scoped, tag = 'output window, operand 0, single buffered']
    %6 = vsyncpa [#allocation3], 0
    %7 = vsyncpa [#allocation4], 0
    // Predicated region
    $region2: #{tpu_custom_call.1} parent=1 // pred_check
      _
    $region3: #{tpu_custom_call.1} parent=1 // pred_check_branch
      %9 = sbr.rel (0) target = $region5
    $region4: #{tpu_custom_call.1} parent=1 // pred_region
      %11 = vsyncadd [#allocation3], 0
      %s12 = sshll.u32 %s0, 4
      %s13 = int_to_ptr.hbm [resolvable:$true] %s12
      %s14 = sshll.u32 [#allocation2], 4
      %s15 = int_to_ptr.vmem [resolvable:$true] %s14
      %20 = dma.hbm_to_vmem [thread:$0]  %s13, 16384, %s15, [#allocation3], 1024, 1024, 64
    $region5: #{tpu_custom_call.1} parent=1 // pred_fallthru
      _
    // Predicated region
    $region6: #{tpu_custom_call.1} parent=1 // pred_check
      _
    $region7: #{tpu_custom_call.1} parent=1 // pred_check_branch
      %22 = sbr.rel (0) target = $region9
    $region8: #{tpu_custom_call.1} parent=1 // pred_region
      %24 = dma.done [#allocation3], 16384
    $region9: #{tpu_custom_call.1} parent=1 // pred_fallthru
      _
    %v25 = vld [vmem:[#allocation2] sm:$0xff]
    %v26 = vld [vmem:[#allocation2 + $0x8] sm:$0xff]
    %v27 = vld [vmem:[#allocation2 + $0x10] sm:$0xff]
    %v28 = vld [vmem:[#allocation2 + $0x18] sm:$0xff]
    %v29 = vld [vmem:[#allocation2 + $0x20] sm:$0xff]
    %v30 = vld [vmem:[#allocation2 + $0x28] sm:$0xff]
    %v31 = vld [vmem:[#allocation2 + $0x30] sm:$0xff]
    %v32 = vld [vmem:[#allocation2 + $0x38] sm:$0xff]
    %v33 = vld [vmem:[#allocation2 + $0x40] sm:$0xff]
    %v34 = vld [vmem:[#allocation2 + $0x48] sm:$0xff]
    %v35 = vld [vmem:[#allocation2 + $0x50] sm:$0xff]
    %v36 = vld [vmem:[#allocation2 + $0x58] sm:$0xff]
    %v37 = vld [vmem:[#allocation2 + $0x60] sm:$0xff]
    %v38 = vld [vmem:[#allocation2 + $0x68] sm:$0xff]
    %v39 = vld [vmem:[#allocation2 + $0x70] sm:$0xff]
    %v40 = vld [vmem:[#allocation2 + $0x78] sm:$0xff]
    %v41 = vld [vmem:[#allocation2 + $0x80] sm:$0xff]
    %v42 = vld [vmem:[#allocation2 + $0x88] sm:$0xff]
    %v43 = vld [vmem:[#allocation2 + $0x90] sm:$0xff]
    %v44 = vld [vmem:[#allocation2 + $0x98] sm:$0xff]
    %v45 = vld [vmem:[#allocation2 + $0xa0] sm:$0xff]
    %v46 = vld [vmem:[#allocation2 + $0xa8] sm:$0xff]
    %v47 = vld [vmem:[#allocation2 + $0xb0] sm:$0xff]
    %v48 = vld [vmem:[#allocation2 + $0xb8] sm:$0xff]
    %v49 = vld [vmem:[#allocation2 + $0xc0] sm:$0xff]
    %v50 = vld [vmem:[#allocation2 + $0xc8] sm:$0xff]
    %v51 = vld [vmem:[#allocation2 + $0xd0] sm:$0xff]
    %v52 = vld [vmem:[#allocation2 + $0xd8] sm:$0xff]
    %v53 = vld [vmem:[#allocation2 + $0xe0] sm:$0xff]
    %v54 = vld [vmem:[#allocation2 + $0xe8] sm:$0xff]
    %v55 = vld [vmem:[#allocation2 + $0xf0] sm:$0xff]
    %v56 = vld [vmem:[#allocation2 + $0xf8] sm:$0xff]
    %v57 = vld [vmem:[#allocation2 + $0x100] sm:$0xff]
    %v58 = vld [vmem:[#allocation2 + $0x108] sm:$0xff]
    %v59 = vld [vmem:[#allocation2 + $0x110] sm:$0xff]
    %v60 = vld [vmem:[#allocation2 + $0x118] sm:$0xff]
    %v61 = vld [vmem:[#allocation2 + $0x120] sm:$0xff]
    %v62 = vld [vmem:[#allocation2 + $0x128] sm:$0xff]
    %v63 = vld [vmem:[#allocation2 + $0x130] sm:$0xff]
    %v64 = vld [vmem:[#allocation2 + $0x138] sm:$0xff]
    %v65 = vld [vmem:[#allocation2 + $0x140] sm:$0xff]
    %v66 = vld [vmem:[#allocation2 + $0x148] sm:$0xff]
    %v67 = vld [vmem:[#allocation2 + $0x150] sm:$0xff]
    %v68 = vld [vmem:[#allocation2 + $0x158] sm:$0xff]
    %v69 = vld [vmem:[#allocation2 + $0x160] sm:$0xff]
    %v70 = vld [vmem:[#allocation2 + $0x168] sm:$0xff]
    %v71 = vld [vmem:[#allocation2 + $0x170] sm:$0xff]
    %v72 = vld [vmem:[#allocation2 + $0x178] sm:$0xff]
    %v73 = vld [vmem:[#allocation2 + $0x180] sm:$0xff]
    %v74 = vld [vmem:[#allocation2 + $0x188] sm:$0xff]
    %v75 = vld [vmem:[#allocation2 + $0x190] sm:$0xff]
    %v76 = vld [vmem:[#allocation2 + $0x198] sm:$0xff]
    %v77 = vld [vmem:[#allocation2 + $0x1a0] sm:$0xff]
    %v78 = vld [vmem:[#allocation2 + $0x1a8] sm:$0xff]
    %v79 = vld [vmem:[#allocation2 + $0x1b0] sm:$0xff]
    %v80 = vld [vmem:[#allocation2 + $0x1b8] sm:$0xff]
    %v81 = vld [vmem:[#allocation2 + $0x1c0] sm:$0xff]
    %v82 = vld [vmem:[#allocation2 + $0x1c8] sm:$0xff]
    %v83 = vld [vmem:[#allocation2 + $0x1d0] sm:$0xff]
    %v84 = vld [vmem:[#allocation2 + $0x1d8] sm:$0xff]
    %v85 = vld [vmem:[#allocation2 + $0x1e0] sm:$0xff]
    %v86 = vld [vmem:[#allocation2 + $0x1e8] sm:$0xff]
    %v87 = vld [vmem:[#allocation2 + $0x1f0] sm:$0xff]
    %v88 = vld [vmem:[#allocation2 + $0x1f8] sm:$0xff]
    %v89 = vld [vmem:[#allocation2 + $0x200] sm:$0xff]
    %v90 = vld [vmem:[#allocation2 + $0x208] sm:$0xff]
    %v91 = vld [vmem:[#allocation2 + $0x210] sm:$0xff]
    %v92 = vld [vmem:[#allocation2 + $0x218] sm:$0xff]
    %v93 = vld [vmem:[#allocation2 + $0x220] sm:$0xff]
    %v94 = vld [vmem:[#allocation2 + $0x228] sm:$0xff]
    %v95 = vld [vmem:[#allocation2 + $0x230] sm:$0xff]
    %v96 = vld [vmem:[#allocation2 + $0x238] sm:$0xff]
    %v97 = vld [vmem:[#allocation2 + $0x240] sm:$0xff]
    %v98 = vld [vmem:[#allocation2 + $0x248] sm:$0xff]
    %v99 = vld [vmem:[#allocation2 + $0x250] sm:$0xff]
    %v100 = vld [vmem:[#allocation2 + $0x258] sm:$0xff]
    %v101 = vld [vmem:[#allocation2 + $0x260] sm:$0xff]
    %v102 = vld [vmem:[#allocation2 + $0x268] sm:$0xff]
    %v103 = vld [vmem:[#allocation2 + $0x270] sm:$0xff]
    %v104 = vld [vmem:[#allocation2 + $0x278] sm:$0xff]
    %v105 = vld [vmem:[#allocation2 + $0x280] sm:$0xff]
    %v106 = vld [vmem:[#allocation2 + $0x288] sm:$0xff]
    %v107 = vld [vmem:[#allocation2 + $0x290] sm:$0xff]
    %v108 = vld [vmem:[#allocation2 + $0x298] sm:$0xff]
    %v109 = vld [vmem:[#allocation2 + $0x2a0] sm:$0xff]
    %v110 = vld [vmem:[#allocation2 + $0x2a8] sm:$0xff]
    %v111 = vld [vmem:[#allocation2 + $0x2b0] sm:$0xff]
    %v112 = vld [vmem:[#allocation2 + $0x2b8] sm:$0xff]
    %v113 = vld [vmem:[#allocation2 + $0x2c0] sm:$0xff]
    %v114 = vld [vmem:[#allocation2 + $0x2c8] sm:$0xff]
    %v115 = vld [vmem:[#allocation2 + $0x2d0] sm:$0xff]
    %v116 = vld [vmem:[#allocation2 + $0x2d8] sm:$0xff]
    %v117 = vld [vmem:[#allocation2 + $0x2e0] sm:$0xff]
    %v118 = vld [vmem:[#allocation2 + $0x2e8] sm:$0xff]
    %v119 = vld [vmem:[#allocation2 + $0x2f0] sm:$0xff]
    %v120 = vld [vmem:[#allocation2 + $0x2f8] sm:$0xff]
    %v121 = vld [vmem:[#allocation2 + $0x300] sm:$0xff]
    %v122 = vld [vmem:[#allocation2 + $0x308] sm:$0xff]
    %v123 = vld [vmem:[#allocation2 + $0x310] sm:$0xff]
    %v124 = vld [vmem:[#allocation2 + $0x318] sm:$0xff]
    %v125 = vld [vmem:[#allocation2 + $0x320] sm:$0xff]
    %v126 = vld [vmem:[#allocation2 + $0x328] sm:$0xff]
    %v127 = vld [vmem:[#allocation2 + $0x330] sm:$0xff]
    %v128 = vld [vmem:[#allocation2 + $0x338] sm:$0xff]
    %v129 = vld [vmem:[#allocation2 + $0x340] sm:$0xff]
    %v130 = vld [vmem:[#allocation2 + $0x348] sm:$0xff]
    %v131 = vld [vmem:[#allocation2 + $0x350] sm:$0xff]
    %v132 = vld [vmem:[#allocation2 + $0x358] sm:$0xff]
    %v133 = vld [vmem:[#allocation2 + $0x360] sm:$0xff]
    %v134 = vld [vmem:[#allocation2 + $0x368] sm:$0xff]
    %v135 = vld [vmem:[#allocation2 + $0x370] sm:$0xff]
    %v136 = vld [vmem:[#allocation2 + $0x378] sm:$0xff]
    %v137 = vld [vmem:[#allocation2 + $0x380] sm:$0xff]
    %v138 = vld [vmem:[#allocation2 + $0x388] sm:$0xff]
    %v139 = vld [vmem:[#allocation2 + $0x390] sm:$0xff]
    %v140 = vld [vmem:[#allocation2 + $0x398] sm:$0xff]
    %v141 = vld [vmem:[#allocation2 + $0x3a0] sm:$0xff]
    %v142 = vld [vmem:[#allocation2 + $0x3a8] sm:$0xff]
    %v143 = vld [vmem:[#allocation2 + $0x3b0] sm:$0xff]
    %v144 = vld [vmem:[#allocation2 + $0x3b8] sm:$0xff]
    %v145 = vld [vmem:[#allocation2 + $0x3c0] sm:$0xff]
    %v146 = vld [vmem:[#allocation2 + $0x3c8] sm:$0xff]
    %v147 = vld [vmem:[#allocation2 + $0x3d0] sm:$0xff]
    %v148 = vld [vmem:[#allocation2 + $0x3d8] sm:$0xff]
    %v149 = vld [vmem:[#allocation2 + $0x3e0] sm:$0xff]
    %v150 = vld [vmem:[#allocation2 + $0x3e8] sm:$0xff]
    %v151 = vld [vmem:[#allocation2 + $0x3f0] sm:$0xff]
    %v152 = vld [vmem:[#allocation2 + $0x3f8] sm:$0xff]
    %v153 = vxor.u32 %v25, 2147483648
    %v154 = vxor.u32 %v26, 2147483648
    %v155 = vxor.u32 %v27, 2147483648
    %v156 = vxor.u32 %v28, 2147483648
    %v157 = vxor.u32 %v29, 2147483648
    %v158 = vxor.u32 %v30, 2147483648
    %v159 = vxor.u32 %v31, 2147483648
    %v160 = vxor.u32 %v32, 2147483648
    %v161 = vxor.u32 %v33, 2147483648
    %v162 = vxor.u32 %v34, 2147483648
    %v163 = vxor.u32 %v35, 2147483648
    %v164 = vxor.u32 %v36, 2147483648
    %v165 = vxor.u32 %v37, 2147483648
    %v166 = vxor.u32 %v38, 2147483648
    %v167 = vxor.u32 %v39, 2147483648
    %v168 = vxor.u32 %v40, 2147483648
    %v169 = vxor.u32 %v41, 2147483648
    %v170 = vxor.u32 %v42, 2147483648
    %v171 = vxor.u32 %v43, 2147483648
    %v172 = vxor.u32 %v44, 2147483648
    %v173 = vxor.u32 %v45, 2147483648
    %v174 = vxor.u32 %v46, 2147483648
    %v175 = vxor.u32 %v47, 2147483648
    %v176 = vxor.u32 %v48, 2147483648
    %v177 = vxor.u32 %v49, 2147483648
    %v178 = vxor.u32 %v50, 2147483648
    %v179 = vxor.u32 %v51, 2147483648
    %v180 = vxor.u32 %v52, 2147483648
    %v181 = vxor.u32 %v53, 2147483648
    %v182 = vxor.u32 %v54, 2147483648
    %v183 = vxor.u32 %v55, 2147483648
    %v184 = vxor.u32 %v56, 2147483648
    %v185 = vxor.u32 %v57, 2147483648
    %v186 = vxor.u32 %v58, 2147483648
    %v187 = vxor.u32 %v59, 2147483648
    %v188 = vxor.u32 %v60, 2147483648
    %v189 = vxor.u32 %v61, 2147483648
    %v190 = vxor.u32 %v62, 2147483648
    %v191 = vxor.u32 %v63, 2147483648
    %v192 = vxor.u32 %v64, 2147483648
    %v193 = vxor.u32 %v65, 2147483648
    %v194 = vxor.u32 %v66, 2147483648
    %v195 = vxor.u32 %v67, 2147483648
    %v196 = vxor.u32 %v68, 2147483648
    %v197 = vxor.u32 %v69, 2147483648
    %v198 = vxor.u32 %v70, 2147483648
    %v199 = vxor.u32 %v71, 2147483648
    %v200 = vxor.u32 %v72, 2147483648
    %v201 = vxor.u32 %v73, 2147483648
    %v202 = vxor.u32 %v74, 2147483648
    %v203 = vxor.u32 %v75, 2147483648
    %v204 = vxor.u32 %v76, 2147483648
    %v205 = vxor.u32 %v77, 2147483648
    %v206 = vxor.u32 %v78, 2147483648
    %v207 = vxor.u32 %v79, 2147483648
    %v208 = vxor.u32 %v80, 2147483648
    %v209 = vxor.u32 %v81, 2147483648
    %v210 = vxor.u32 %v82, 2147483648
    %v211 = vxor.u32 %v83, 2147483648
    %v212 = vxor.u32 %v84, 2147483648
    %v213 = vxor.u32 %v85, 2147483648
    %v214 = vxor.u32 %v86, 2147483648
    %v215 = vxor.u32 %v87, 2147483648
    %v216 = vxor.u32 %v88, 2147483648
    %v217 = vxor.u32 %v89, 2147483648
    %v218 = vxor.u32 %v90, 2147483648
    %v219 = vxor.u32 %v91, 2147483648
    %v220 = vxor.u32 %v92, 2147483648
    %v221 = vxor.u32 %v93, 2147483648
    %v222 = vxor.u32 %v94, 2147483648
    %v223 = vxor.u32 %v95, 2147483648
    %v224 = vxor.u32 %v96, 2147483648
    %v225 = vxor.u32 %v97, 2147483648
    %v226 = vxor.u32 %v98, 2147483648
    %v227 = vxor.u32 %v99, 2147483648
    %v228 = vxor.u32 %v100, 2147483648
    %v229 = vxor.u32 %v101, 2147483648
    %v230 = vxor.u32 %v102, 2147483648
    %v231 = vxor.u32 %v103, 2147483648
    %v232 = vxor.u32 %v104, 2147483648
    %v233 = vxor.u32 %v105, 2147483648
    %v234 = vxor.u32 %v106, 2147483648
    %v235 = vxor.u32 %v107, 2147483648
    %v236 = vxor.u32 %v108, 2147483648
    %v237 = vxor.u32 %v109, 2147483648
    %v238 = vxor.u32 %v110, 2147483648
    %v239 = vxor.u32 %v111, 2147483648
    %v240 = vxor.u32 %v112, 2147483648
    %v241 = vxor.u32 %v113, 2147483648
    %v242 = vxor.u32 %v114, 2147483648
    %v243 = vxor.u32 %v115, 2147483648
    %v244 = vxor.u32 %v116, 2147483648
    %v245 = vxor.u32 %v117, 2147483648
    %v246 = vxor.u32 %v118, 2147483648
    %v247 = vxor.u32 %v119, 2147483648
    %v248 = vxor.u32 %v120, 2147483648
    %v249 = vxor.u32 %v121, 2147483648
    %v250 = vxor.u32 %v122, 2147483648
    %v251 = vxor.u32 %v123, 2147483648
    %v252 = vxor.u32 %v124, 2147483648
    %v253 = vxor.u32 %v125, 2147483648
    %v254 = vxor.u32 %v126, 2147483648
    %v255 = vxor.u32 %v127, 2147483648
    %v256 = vxor.u32 %v128, 2147483648
    %v257 = vxor.u32 %v129, 2147483648
    %v258 = vxor.u32 %v130, 2147483648
    %v259 = vxor.u32 %v131, 2147483648
    %v260 = vxor.u32 %v132, 2147483648
    %v261 = vxor.u32 %v133, 2147483648
    %v262 = vxor.u32 %v134, 2147483648
    %v263 = vxor.u32 %v135, 2147483648
    %v264 = vxor.u32 %v136, 2147483648
    %v265 = vxor.u32 %v137, 2147483648
    %v266 = vxor.u32 %v138, 2147483648
    %v267 = vxor.u32 %v139, 2147483648
    %v268 = vxor.u32 %v140, 2147483648
    %v269 = vxor.u32 %v141, 2147483648
    %v270 = vxor.u32 %v142, 2147483648
    %v271 = vxor.u32 %v143, 2147483648
    %v272 = vxor.u32 %v144, 2147483648
    %v273 = vxor.u32 %v145, 2147483648
    %v274 = vxor.u32 %v146, 2147483648
    %v275 = vxor.u32 %v147, 2147483648
    %v276 = vxor.u32 %v148, 2147483648
    %v277 = vxor.u32 %v149, 2147483648
    %v278 = vxor.u32 %v150, 2147483648
    %v279 = vxor.u32 %v151, 2147483648
    %v280 = vxor.u32 %v152, 2147483648
    %v281 = vmul.f32 %v153, 1.442695
    %v282 = vpow.pop %v281
    %v283 = vmul.f32 %v154, 1.442695
    %v284 = vpow.pop %v283
    %v285 = vmul.f32 %v155, 1.442695
    %v286 = vpow.pop %v285
    %v287 = vmul.f32 %v156, 1.442695
    %v288 = vpow.pop %v287
    %v289 = vmul.f32 %v157, 1.442695
    %v290 = vpow.pop %v289
    %v291 = vmul.f32 %v158, 1.442695
    %v292 = vpow.pop %v291
    %v293 = vmul.f32 %v159, 1.442695
    %v294 = vpow.pop %v293
    %v295 = vmul.f32 %v160, 1.442695
    %v296 = vpow.pop %v295
    %v297 = vmul.f32 %v161, 1.442695
    %v298 = vpow.pop %v297
    %v299 = vmul.f32 %v162, 1.442695
    %v300 = vpow.pop %v299
    %v301 = vmul.f32 %v163, 1.442695
    %v302 = vpow.pop %v301
    %v303 = vmul.f32 %v164, 1.442695
    %v304 = vpow.pop %v303
    %v305 = vmul.f32 %v165, 1.442695
    %v306 = vpow.pop %v305
    %v307 = vmul.f32 %v166, 1.442695
    %v308 = vpow.pop %v307
    %v309 = vmul.f32 %v167, 1.442695
    %v310 = vpow.pop %v309
    %v311 = vmul.f32 %v168, 1.442695
    %v312 = vpow.pop %v311
    %v313 = vmul.f32 %v169, 1.442695
    %v314 = vpow.pop %v313
    %v315 = vmul.f32 %v170, 1.442695
    %v316 = vpow.pop %v315
    %v317 = vmul.f32 %v171, 1.442695
    %v318 = vpow.pop %v317
    %v319 = vmul.f32 %v172, 1.442695
    %v320 = vpow.pop %v319
    %v321 = vmul.f32 %v173, 1.442695
    %v322 = vpow.pop %v321
    %v323 = vmul.f32 %v174, 1.442695
    %v324 = vpow.pop %v323
    %v325 = vmul.f32 %v175, 1.442695
    %v326 = vpow.pop %v325
    %v327 = vmul.f32 %v176, 1.442695
    %v328 = vpow.pop %v327
    %v329 = vmul.f32 %v177, 1.442695
    %v330 = vpow.pop %v329
    %v331 = vmul.f32 %v178, 1.442695
    %v332 = vpow.pop %v331
    %v333 = vmul.f32 %v179, 1.442695
    %v334 = vpow.pop %v333
    %v335 = vmul.f32 %v180, 1.442695
    %v336 = vpow.pop %v335
    %v337 = vmul.f32 %v181, 1.442695
    %v338 = vpow.pop %v337
    %v339 = vmul.f32 %v182, 1.442695
    %v340 = vpow.pop %v339
    %v341 = vmul.f32 %v183, 1.442695
    %v342 = vpow.pop %v341
    %v343 = vmul.f32 %v184, 1.442695
    %v344 = vpow.pop %v343
    %v345 = vmul.f32 %v185, 1.442695
    %v346 = vpow.pop %v345
    %v347 = vmul.f32 %v186, 1.442695
    %v348 = vpow.pop %v347
    %v349 = vmul.f32 %v187, 1.442695
    %v350 = vpow.pop %v349
    %v351 = vmul.f32 %v188, 1.442695
    %v352 = vpow.pop %v351
    %v353 = vmul.f32 %v189, 1.442695
    %v354 = vpow.pop %v353
    %v355 = vmul.f32 %v190, 1.442695
    %v356 = vpow.pop %v355
    %v357 = vmul.f32 %v191, 1.442695
    %v358 = vpow.pop %v357
    %v359 = vmul.f32 %v192, 1.442695
    %v360 = vpow.pop %v359
    %v361 = vmul.f32 %v193, 1.442695
    %v362 = vpow.pop %v361
    %v363 = vmul.f32 %v194, 1.442695
    %v364 = vpow.pop %v363
    %v365 = vmul.f32 %v195, 1.442695
    %v366 = vpow.pop %v365
    %v367 = vmul.f32 %v196, 1.442695
    %v368 = vpow.pop %v367
    %v369 = vmul.f32 %v197, 1.442695
    %v370 = vpow.pop %v369
    %v371 = vmul.f32 %v198, 1.442695
    %v372 = vpow.pop %v371
    %v373 = vmul.f32 %v199, 1.442695
    %v374 = vpow.pop %v373
    %v375 = vmul.f32 %v200, 1.442695
    %v376 = vpow.pop %v375
    %v377 = vmul.f32 %v201, 1.442695
    %v378 = vpow.pop %v377
    %v379 = vmul.f32 %v202, 1.442695
    %v380 = vpow.pop %v379
    %v381 = vmul.f32 %v203, 1.442695
    %v382 = vpow.pop %v381
    %v383 = vmul.f32 %v204, 1.442695
    %v384 = vpow.pop %v383
    %v385 = vmul.f32 %v205, 1.442695
    %v386 = vpow.pop %v385
    %v387 = vmul.f32 %v206, 1.442695
    %v388 = vpow.pop %v387
    %v389 = vmul.f32 %v207, 1.442695
    %v390 = vpow.pop %v389
    %v391 = vmul.f32 %v208, 1.442695
    %v392 = vpow.pop %v391
    %v393 = vmul.f32 %v209, 1.442695
    %v394 = vpow.pop %v393
    %v395 = vmul.f32 %v210, 1.442695
    %v396 = vpow.pop %v395
    %v397 = vmul.f32 %v211, 1.442695
    %v398 = vpow.pop %v397
    %v399 = vmul.f32 %v212, 1.442695
    %v400 = vpow.pop %v399
    %v401 = vmul.f32 %v213, 1.442695
    %v402 = vpow.pop %v401
    %v403 = vmul.f32 %v214, 1.442695
    %v404 = vpow.pop %v403
    %v405 = vmul.f32 %v215, 1.442695
    %v406 = vpow.pop %v405
    %v407 = vmul.f32 %v216, 1.442695
    %v408 = vpow.pop %v407
    %v409 = vmul.f32 %v217, 1.442695
    %v410 = vpow.pop %v409
    %v411 = vmul.f32 %v218, 1.442695
    %v412 = vpow.pop %v411
    %v413 = vmul.f32 %v219, 1.442695
    %v414 = vpow.pop %v413
    %v415 = vmul.f32 %v220, 1.442695
    %v416 = vpow.pop %v415
    %v417 = vmul.f32 %v221, 1.442695
    %v418 = vpow.pop %v417
    %v419 = vmul.f32 %v222, 1.442695
    %v420 = vpow.pop %v419
    %v421 = vmul.f32 %v223, 1.442695
    %v422 = vpow.pop %v421
    %v423 = vmul.f32 %v224, 1.442695
    %v424 = vpow.pop %v423
    %v425 = vmul.f32 %v225, 1.442695
    %v426 = vpow.pop %v425
    %v427 = vmul.f32 %v226, 1.442695
    %v428 = vpow.pop %v427
    %v429 = vmul.f32 %v227, 1.442695
    %v430 = vpow.pop %v429
    %v431 = vmul.f32 %v228, 1.442695
    %v432 = vpow.pop %v431
    %v433 = vmul.f32 %v229, 1.442695
    %v434 = vpow.pop %v433
    %v435 = vmul.f32 %v230, 1.442695
    %v436 = vpow.pop %v435
    %v437 = vmul.f32 %v231, 1.442695
    %v438 = vpow.pop %v437
    %v439 = vmul.f32 %v232, 1.442695
    %v440 = vpow.pop %v439
    %v441 = vmul.f32 %v233, 1.442695
    %v442 = vpow.pop %v441
    %v443 = vmul.f32 %v234, 1.442695
    %v444 = vpow.pop %v443
    %v445 = vmul.f32 %v235, 1.442695
    %v446 = vpow.pop %v445
    %v447 = vmul.f32 %v236, 1.442695
    %v448 = vpow.pop %v447
    %v449 = vmul.f32 %v237, 1.442695
    %v450 = vpow.pop %v449
    %v451 = vmul.f32 %v238, 1.442695
    %v452 = vpow.pop %v451
    %v453 = vmul.f32 %v239, 1.442695
    %v454 = vpow.pop %v453
    %v455 = vmul.f32 %v240, 1.442695
    %v456 = vpow.pop %v455
    %v457 = vmul.f32 %v241, 1.442695
    %v458 = vpow.pop %v457
    %v459 = vmul.f32 %v242, 1.442695
    %v460 = vpow.pop %v459
    %v461 = vmul.f32 %v243, 1.442695
    %v462 = vpow.pop %v461
    %v463 = vmul.f32 %v244, 1.442695
    %v464 = vpow.pop %v463
    %v465 = vmul.f32 %v245, 1.442695
    %v466 = vpow.pop %v465
    %v467 = vmul.f32 %v246, 1.442695
    %v468 = vpow.pop %v467
    %v469 = vmul.f32 %v247, 1.442695
    %v470 = vpow.pop %v469
    %v471 = vmul.f32 %v248, 1.442695
    %v472 = vpow.pop %v471
    %v473 = vmul.f32 %v249, 1.442695
    %v474 = vpow.pop %v473
    %v475 = vmul.f32 %v250, 1.442695
    %v476 = vpow.pop %v475
    %v477 = vmul.f32 %v251, 1.442695
    %v478 = vpow.pop %v477
    %v479 = vmul.f32 %v252, 1.442695
    %v480 = vpow.pop %v479
    %v481 = vmul.f32 %v253, 1.442695
    %v482 = vpow.pop %v481
    %v483 = vmul.f32 %v254, 1.442695
    %v484 = vpow.pop %v483
    %v485 = vmul.f32 %v255, 1.442695
    %v486 = vpow.pop %v485
    %v487 = vmul.f32 %v256, 1.442695
    %v488 = vpow.pop %v487
    %v489 = vmul.f32 %v257, 1.442695
    %v490 = vpow.pop %v489
    %v491 = vmul.f32 %v258, 1.442695
    %v492 = vpow.pop %v491
    %v493 = vmul.f32 %v259, 1.442695
    %v494 = vpow.pop %v493
    %v495 = vmul.f32 %v260, 1.442695
    %v496 = vpow.pop %v495
    %v497 = vmul.f32 %v261, 1.442695
    %v498 = vpow.pop %v497
    %v499 = vmul.f32 %v262, 1.442695
    %v500 = vpow.pop %v499
    %v501 = vmul.f32 %v263, 1.442695
    %v502 = vpow.pop %v501
    %v503 = vmul.f32 %v264, 1.442695
    %v504 = vpow.pop %v503
    %v505 = vmul.f32 %v265, 1.442695
    %v506 = vpow.pop %v505
    %v507 = vmul.f32 %v266, 1.442695
    %v508 = vpow.pop %v507
    %v509 = vmul.f32 %v267, 1.442695
    %v510 = vpow.pop %v509
    %v511 = vmul.f32 %v268, 1.442695
    %v512 = vpow.pop %v511
    %v513 = vmul.f32 %v269, 1.442695
    %v514 = vpow.pop %v513
    %v515 = vmul.f32 %v270, 1.442695
    %v516 = vpow.pop %v515
    %v517 = vmul.f32 %v271, 1.442695
    %v518 = vpow.pop %v517
    %v519 = vmul.f32 %v272, 1.442695
    %v520 = vpow.pop %v519
    %v521 = vmul.f32 %v273, 1.442695
    %v522 = vpow.pop %v521
    %v523 = vmul.f32 %v274, 1.442695
    %v524 = vpow.pop %v523
    %v525 = vmul.f32 %v275, 1.442695
    %v526 = vpow.pop %v525
    %v527 = vmul.f32 %v276, 1.442695
    %v528 = vpow.pop %v527
    %v529 = vmul.f32 %v277, 1.442695
    %v530 = vpow.pop %v529
    %v531 = vmul.f32 %v278, 1.442695
    %v532 = vpow.pop %v531
    %v533 = vmul.f32 %v279, 1.442695
    %v534 = vpow.pop %v533
    %v535 = vmul.f32 %v280, 1.442695
    %v536 = vpow.pop %v535
    %v537 = vadd.f32 %v282, 1.0
    %v538 = vadd.f32 %v284, 1.0
    %v539 = vadd.f32 %v286, 1.0
    %v540 = vadd.f32 %v288, 1.0
    %v541 = vadd.f32 %v290, 1.0
    %v542 = vadd.f32 %v292, 1.0
    %v543 = vadd.f32 %v294, 1.0
    %v544 = vadd.f32 %v296, 1.0
    %v545 = vadd.f32 %v298, 1.0
    %v546 = vadd.f32 %v300, 1.0
    %v547 = vadd.f32 %v302, 1.0
    %v548 = vadd.f32 %v304, 1.0
    %v549 = vadd.f32 %v306, 1.0
    %v550 = vadd.f32 %v308, 1.0
    %v551 = vadd.f32 %v310, 1.0
    %v552 = vadd.f32 %v312, 1.0
    %v553 = vadd.f32 %v314, 1.0
    %v554 = vadd.f32 %v316, 1.0
    %v555 = vadd.f32 %v318, 1.0
    %v556 = vadd.f32 %v320, 1.0
    %v557 = vadd.f32 %v322, 1.0
    %v558 = vadd.f32 %v324, 1.0
    %v559 = vadd.f32 %v326, 1.0
    %v560 = vadd.f32 %v328, 1.0
    %v561 = vadd.f32 %v330, 1.0
    %v562 = vadd.f32 %v332, 1.0
    %v563 = vadd.f32 %v334, 1.0
    %v564 = vadd.f32 %v336, 1.0
    %v565 = vadd.f32 %v338, 1.0
    %v566 = vadd.f32 %v340, 1.0
    %v567 = vadd.f32 %v342, 1.0
    %v568 = vadd.f32 %v344, 1.0
    %v569 = vadd.f32 %v346, 1.0
    %v570 = vadd.f32 %v348, 1.0
    %v571 = vadd.f32 %v350, 1.0
    %v572 = vadd.f32 %v352, 1.0
    %v573 = vadd.f32 %v354, 1.0
    %v574 = vadd.f32 %v356, 1.0
    %v575 = vadd.f32 %v358, 1.0
    %v576 = vadd.f32 %v360, 1.0
    %v577 = vadd.f32 %v362, 1.0
    %v578 = vadd.f32 %v364, 1.0
    %v579 = vadd.f32 %v366, 1.0
    %v580 = vadd.f32 %v368, 1.0
    %v581 = vadd.f32 %v370, 1.0
    %v582 = vadd.f32 %v372, 1.0
    %v583 = vadd.f32 %v374, 1.0
    %v584 = vadd.f32 %v376, 1.0
    %v585 = vadd.f32 %v378, 1.0
    %v586 = vadd.f32 %v380, 1.0
    %v587 = vadd.f32 %v382, 1.0
    %v588 = vadd.f32 %v384, 1.0
    %v589 = vadd.f32 %v386, 1.0
    %v590 = vadd.f32 %v388, 1.0
    %v591 = vadd.f32 %v390, 1.0
    %v592 = vadd.f32 %v392, 1.0
    %v593 = vadd.f32 %v394, 1.0
    %v594 = vadd.f32 %v396, 1.0
    %v595 = vadd.f32 %v398, 1.0
    %v596 = vadd.f32 %v400, 1.0
    %v597 = vadd.f32 %v402, 1.0
    %v598 = vadd.f32 %v404, 1.0
    %v599 = vadd.f32 %v406, 1.0
    %v600 = vadd.f32 %v408, 1.0
    %v601 = vadd.f32 %v410, 1.0
    %v602 = vadd.f32 %v412, 1.0
    %v603 = vadd.f32 %v414, 1.0
    %v604 = vadd.f32 %v416, 1.0
    %v605 = vadd.f32 %v418, 1.0
    %v606 = vadd.f32 %v420, 1.0
    %v607 = vadd.f32 %v422, 1.0
    %v608 = vadd.f32 %v424, 1.0
    %v609 = vadd.f32 %v426, 1.0
    %v610 = vadd.f32 %v428, 1.0
    %v611 = vadd.f32 %v430, 1.0
    %v612 = vadd.f32 %v432, 1.0
    %v613 = vadd.f32 %v434, 1.0
    %v614 = vadd.f32 %v436, 1.0
    %v615 = vadd.f32 %v438, 1.0
    %v616 = vadd.f32 %v440, 1.0
    %v617 = vadd.f32 %v442, 1.0
    %v618 = vadd.f32 %v444, 1.0
    %v619 = vadd.f32 %v446, 1.0
    %v620 = vadd.f32 %v448, 1.0
    %v621 = vadd.f32 %v450, 1.0
    %v622 = vadd.f32 %v452, 1.0
    %v623 = vadd.f32 %v454, 1.0
    %v624 = vadd.f32 %v456, 1.0
    %v625 = vadd.f32 %v458, 1.0
    %v626 = vadd.f32 %v460, 1.0
    %v627 = vadd.f32 %v462, 1.0
    %v628 = vadd.f32 %v464, 1.0
    %v629 = vadd.f32 %v466, 1.0
    %v630 = vadd.f32 %v468, 1.0
    %v631 = vadd.f32 %v470, 1.0
    %v632 = vadd.f32 %v472, 1.0
    %v633 = vadd.f32 %v474, 1.0
    %v634 = vadd.f32 %v476, 1.0
    %v635 = vadd.f32 %v478, 1.0
    %v636 = vadd.f32 %v480, 1.0
    %v637 = vadd.f32 %v482, 1.0
    %v638 = vadd.f32 %v484, 1.0
    %v639 = vadd.f32 %v486, 1.0
    %v640 = vadd.f32 %v488, 1.0
    %v641 = vadd.f32 %v490, 1.0
    %v642 = vadd.f32 %v492, 1.0
    %v643 = vadd.f32 %v494, 1.0
    %v644 = vadd.f32 %v496, 1.0
    %v645 = vadd.f32 %v498, 1.0
    %v646 = vadd.f32 %v500, 1.0
    %v647 = vadd.f32 %v502, 1.0
    %v648 = vadd.f32 %v504, 1.0
    %v649 = vadd.f32 %v506, 1.0
    %v650 = vadd.f32 %v508, 1.0
    %v651 = vadd.f32 %v510, 1.0
    %v652 = vadd.f32 %v512, 1.0
    %v653 = vadd.f32 %v514, 1.0
    %v654 = vadd.f32 %v516, 1.0
    %v655 = vadd.f32 %v518, 1.0
    %v656 = vadd.f32 %v520, 1.0
    %v657 = vadd.f32 %v522, 1.0
    %v658 = vadd.f32 %v524, 1.0
    %v659 = vadd.f32 %v526, 1.0
    %v660 = vadd.f32 %v528, 1.0
    %v661 = vadd.f32 %v530, 1.0
    %v662 = vadd.f32 %v532, 1.0
    %v663 = vadd.f32 %v534, 1.0
    %v664 = vadd.f32 %v536, 1.0
    %v665 = vrcp.pop %v537
    %v666 = vmul.f32 %v537, %v665
    %v667 = vsub.f32 1.0, %v666
    %v668 = vmul.f32 %v665, %v667
    %v669 = vadd.f32 %v665, %v668
    %vm670 = vweird.f32 %v537
    %vm671 = vweird.f32 %v665
    %vm672 = vmor %vm670, %vm671
    %v673 = vsel %vm672, %v665, %v669
    %v674 = vand.u32 2147483647, %v537
    %vm675 = vcmp.eq.f32.partialorder %v674, 8.507059e+37
    %v676 = vand.u32 %v537, 2147483648
    %v677 = vor.u32 1.1754944e-38, %v676
    %v678 = vsel %vm675, %v677, %v673
    %v679 = vmul.f32 1.0, %v678
    %v680 = vrcp.pop %v538
    %v681 = vmul.f32 %v538, %v680
    %v682 = vsub.f32 1.0, %v681
    %v683 = vmul.f32 %v680, %v682
    %v684 = vadd.f32 %v680, %v683
    %vm685 = vweird.f32 %v538
    %vm686 = vweird.f32 %v680
    %vm687 = vmor %vm685, %vm686
    %v688 = vsel %vm687, %v680, %v684
    %v689 = vand.u32 2147483647, %v538
    %vm690 = vcmp.eq.f32.partialorder %v689, 8.507059e+37
    %v691 = vand.u32 %v538, 2147483648
    %v692 = vor.u32 1.1754944e-38, %v691
    %v693 = vsel %vm690, %v692, %v688
    %v694 = vmul.f32 1.0, %v693
    %v695 = vrcp.pop %v539
    %v696 = vmul.f32 %v539, %v695
    %v697 = vsub.f32 1.0, %v696
    %v698 = vmul.f32 %v695, %v697
    %v699 = vadd.f32 %v695, %v698
    %vm700 = vweird.f32 %v539
    %vm701 = vweird.f32 %v695
    %vm702 = vmor %vm700, %vm701
    %v703 = vsel %vm702, %v695, %v699
    %v704 = vand.u32 2147483647, %v539
    %vm705 = vcmp.eq.f32.partialorder %v704, 8.507059e+37
    %v706 = vand.u32 %v539, 2147483648
    %v707 = vor.u32 1.1754944e-38, %v706
    %v708 = vsel %vm705, %v707, %v703
    %v709 = vmul.f32 1.0, %v708
    %v710 = vrcp.pop %v540
    %v711 = vmul.f32 %v540, %v710
    %v712 = vsub.f32 1.0, %v711
    %v713 = vmul.f32 %v710, %v712
    %v714 = vadd.f32 %v710, %v713
    %vm715 = vweird.f32 %v540
    %vm716 = vweird.f32 %v710
    %vm717 = vmor %vm715, %vm716
    %v718 = vsel %vm717, %v710, %v714
    %v719 = vand.u32 2147483647, %v540
    %vm720 = vcmp.eq.f32.partialorder %v719, 8.507059e+37
    %v721 = vand.u32 %v540, 2147483648
    %v722 = vor.u32 1.1754944e-38, %v721
    %v723 = vsel %vm720, %v722, %v718
    %v724 = vmul.f32 1.0, %v723
    %v725 = vrcp.pop %v541
    %v726 = vmul.f32 %v541, %v725
    %v727 = vsub.f32 1.0, %v726
    %v728 = vmul.f32 %v725, %v727
    %v729 = vadd.f32 %v725, %v728
    %vm730 = vweird.f32 %v541
    %vm731 = vweird.f32 %v725
    %vm732 = vmor %vm730, %vm731
    %v733 = vsel %vm732, %v725, %v729
    %v734 = vand.u32 2147483647, %v541
    %vm735 = vcmp.eq.f32.partialorder %v734, 8.507059e+37
    %v736 = vand.u32 %v541, 2147483648
    %v737 = vor.u32 1.1754944e-38, %v736
    %v738 = vsel %vm735, %v737, %v733
    %v739 = vmul.f32 1.0, %v738
    %v740 = vrcp.pop %v542
    %v741 = vmul.f32 %v542, %v740
    %v742 = vsub.f32 1.0, %v741
    %v743 = vmul.f32 %v740, %v742
    %v744 = vadd.f32 %v740, %v743
    %vm745 = vweird.f32 %v542
    %vm746 = vweird.f32 %v740
    %vm747 = vmor %vm745, %vm746
    %v748 = vsel %vm747, %v740, %v744
    %v749 = vand.u32 2147483647, %v542
    %vm750 = vcmp.eq.f32.partialorder %v749, 8.507059e+37
    %v751 = vand.u32 %v542, 2147483648
    %v752 = vor.u32 1.1754944e-38, %v751
    %v753 = vsel %vm750, %v752, %v748
    %v754 = vmul.f32 1.0, %v753
    %v755 = vrcp.pop %v543
    %v756 = vmul.f32 %v543, %v755
    %v757 = vsub.f32 1.0, %v756
    %v758 = vmul.f32 %v755, %v757
    %v759 = vadd.f32 %v755, %v758
    %vm760 = vweird.f32 %v543
    %vm761 = vweird.f32 %v755
    %vm762 = vmor %vm760, %vm761
    %v763 = vsel %vm762, %v755, %v759
    %v764 = vand.u32 2147483647, %v543
    %vm765 = vcmp.eq.f32.partialorder %v764, 8.507059e+37
    %v766 = vand.u32 %v543, 2147483648
    %v767 = vor.u32 1.1754944e-38, %v766
    %v768 = vsel %vm765, %v767, %v763
    %v769 = vmul.f32 1.0, %v768
    %v770 = vrcp.pop %v544
    %v771 = vmul.f32 %v544, %v770
    %v772 = vsub.f32 1.0, %v771
    %v773 = vmul.f32 %v770, %v772
    %v774 = vadd.f32 %v770, %v773
    %vm775 = vweird.f32 %v544
    %vm776 = vweird.f32 %v770
    %vm777 = vmor %vm775, %vm776
    %v778 = vsel %vm777, %v770, %v774
    %v779 = vand.u32 2147483647, %v544
    %vm780 = vcmp.eq.f32.partialorder %v779, 8.507059e+37
    %v781 = vand.u32 %v544, 2147483648
    %v782 = vor.u32 1.1754944e-38, %v781
    %v783 = vsel %vm780, %v782, %v778
    %v784 = vmul.f32 1.0, %v783
    %v785 = vrcp.pop %v545
    %v786 = vmul.f32 %v545, %v785
    %v787 = vsub.f32 1.0, %v786
    %v788 = vmul.f32 %v785, %v787
    %v789 = vadd.f32 %v785, %v788
    %vm790 = vweird.f32 %v545
    %vm791 = vweird.f32 %v785
    %vm792 = vmor %vm790, %vm791
    %v793 = vsel %vm792, %v785, %v789
    %v794 = vand.u32 2147483647, %v545
    %vm795 = vcmp.eq.f32.partialorder %v794, 8.507059e+37
    %v796 = vand.u32 %v545, 2147483648
    %v797 = vor.u32 1.1754944e-38, %v796
    %v798 = vsel %vm795, %v797, %v793
    %v799 = vmul.f32 1.0, %v798
    %v800 = vrcp.pop %v546
    %v801 = vmul.f32 %v546, %v800
    %v802 = vsub.f32 1.0, %v801
    %v803 = vmul.f32 %v800, %v802
    %v804 = vadd.f32 %v800, %v803
    %vm805 = vweird.f32 %v546
    %vm806 = vweird.f32 %v800
    %vm807 = vmor %vm805, %vm806
    %v808 = vsel %vm807, %v800, %v804
    %v809 = vand.u32 2147483647, %v546
    %vm810 = vcmp.eq.f32.partialorder %v809, 8.507059e+37
    %v811 = vand.u32 %v546, 2147483648
    %v812 = vor.u32 1.1754944e-38, %v811
    %v813 = vsel %vm810, %v812, %v808
    %v814 = vmul.f32 1.0, %v813
    %v815 = vrcp.pop %v547
    %v816 = vmul.f32 %v547, %v815
    %v817 = vsub.f32 1.0, %v816
    %v818 = vmul.f32 %v815, %v817
    %v819 = vadd.f32 %v815, %v818
    %vm820 = vweird.f32 %v547
    %vm821 = vweird.f32 %v815
    %vm822 = vmor %vm820, %vm821
    %v823 = vsel %vm822, %v815, %v819
    %v824 = vand.u32 2147483647, %v547
    %vm825 = vcmp.eq.f32.partialorder %v824, 8.507059e+37
    %v826 = vand.u32 %v547, 2147483648
    %v827 = vor.u32 1.1754944e-38, %v826
    %v828 = vsel %vm825, %v827, %v823
    %v829 = vmul.f32 1.0, %v828
    %v830 = vrcp.pop %v548
    %v831 = vmul.f32 %v548, %v830
    %v832 = vsub.f32 1.0, %v831
    %v833 = vmul.f32 %v830, %v832
    %v834 = vadd.f32 %v830, %v833
    %vm835 = vweird.f32 %v548
    %vm836 = vweird.f32 %v830
    %vm837 = vmor %vm835, %vm836
    %v838 = vsel %vm837, %v830, %v834
    %v839 = vand.u32 2147483647, %v548
    %vm840 = vcmp.eq.f32.partialorder %v839, 8.507059e+37
    %v841 = vand.u32 %v548, 2147483648
    %v842 = vor.u32 1.1754944e-38, %v841
    %v843 = vsel %vm840, %v842, %v838
    %v844 = vmul.f32 1.0, %v843
    %v845 = vrcp.pop %v549
    %v846 = vmul.f32 %v549, %v845
    %v847 = vsub.f32 1.0, %v846
    %v848 = vmul.f32 %v845, %v847
    %v849 = vadd.f32 %v845, %v848
    %vm850 = vweird.f32 %v549
    %vm851 = vweird.f32 %v845
    %vm852 = vmor %vm850, %vm851
    %v853 = vsel %vm852, %v845, %v849
    %v854 = vand.u32 2147483647, %v549
    %vm855 = vcmp.eq.f32.partialorder %v854, 8.507059e+37
    %v856 = vand.u32 %v549, 2147483648
    %v857 = vor.u32 1.1754944e-38, %v856
    %v858 = vsel %vm855, %v857, %v853
    %v859 = vmul.f32 1.0, %v858
    %v860 = vrcp.pop %v550
    %v861 = vmul.f32 %v550, %v860
    %v862 = vsub.f32 1.0, %v861
    %v863 = vmul.f32 %v860, %v862
    %v864 = vadd.f32 %v860, %v863
    %vm865 = vweird.f32 %v550
    %vm866 = vweird.f32 %v860
    %vm867 = vmor %vm865, %vm866
    %v868 = vsel %vm867, %v860, %v864
    %v869 = vand.u32 2147483647, %v550
    %vm870 = vcmp.eq.f32.partialorder %v869, 8.507059e+37
    %v871 = vand.u32 %v550, 2147483648
    %v872 = vor.u32 1.1754944e-38, %v871
    %v873 = vsel %vm870, %v872, %v868
    %v874 = vmul.f32 1.0, %v873
    %v875 = vrcp.pop %v551
    %v876 = vmul.f32 %v551, %v875
    %v877 = vsub.f32 1.0, %v876
    %v878 = vmul.f32 %v875, %v877
    %v879 = vadd.f32 %v875, %v878
    %vm880 = vweird.f32 %v551
    %vm881 = vweird.f32 %v875
    %vm882 = vmor %vm880, %vm881
    %v883 = vsel %vm882, %v875, %v879
    %v884 = vand.u32 2147483647, %v551
    %vm885 = vcmp.eq.f32.partialorder %v884, 8.507059e+37
    %v886 = vand.u32 %v551, 2147483648
    %v887 = vor.u32 1.1754944e-38, %v886
    %v888 = vsel %vm885, %v887, %v883
    %v889 = vmul.f32 1.0, %v888
    %v890 = vrcp.pop %v552
    %v891 = vmul.f32 %v552, %v890
    %v892 = vsub.f32 1.0, %v891
    %v893 = vmul.f32 %v890, %v892
    %v894 = vadd.f32 %v890, %v893
    %vm895 = vweird.f32 %v552
    %vm896 = vweird.f32 %v890
    %vm897 = vmor %vm895, %vm896
    %v898 = vsel %vm897, %v890, %v894
    %v899 = vand.u32 2147483647, %v552
    %vm900 = vcmp.eq.f32.partialorder %v899, 8.507059e+37
    %v901 = vand.u32 %v552, 2147483648
    %v902 = vor.u32 1.1754944e-38, %v901
    %v903 = vsel %vm900, %v902, %v898
    %v904 = vmul.f32 1.0, %v903
    %v905 = vrcp.pop %v553
    %v906 = vmul.f32 %v553, %v905
    %v907 = vsub.f32 1.0, %v906
    %v908 = vmul.f32 %v905, %v907
    %v909 = vadd.f32 %v905, %v908
    %vm910 = vweird.f32 %v553
    %vm911 = vweird.f32 %v905
    %vm912 = vmor %vm910, %vm911
    %v913 = vsel %vm912, %v905, %v909
    %v914 = vand.u32 2147483647, %v553
    %vm915 = vcmp.eq.f32.partialorder %v914, 8.507059e+37
    %v916 = vand.u32 %v553, 2147483648
    %v917 = vor.u32 1.1754944e-38, %v916
    %v918 = vsel %vm915, %v917, %v913
    %v919 = vmul.f32 1.0, %v918
    %v920 = vrcp.pop %v554
    %v921 = vmul.f32 %v554, %v920
    %v922 = vsub.f32 1.0, %v921
    %v923 = vmul.f32 %v920, %v922
    %v924 = vadd.f32 %v920, %v923
    %vm925 = vweird.f32 %v554
    %vm926 = vweird.f32 %v920
    %vm927 = vmor %vm925, %vm926
    %v928 = vsel %vm927, %v920, %v924
    %v929 = vand.u32 2147483647, %v554
    %vm930 = vcmp.eq.f32.partialorder %v929, 8.507059e+37
    %v931 = vand.u32 %v554, 2147483648
    %v932 = vor.u32 1.1754944e-38, %v931
    %v933 = vsel %vm930, %v932, %v928
    %v934 = vmul.f32 1.0, %v933
    %v935 = vrcp.pop %v555
    %v936 = vmul.f32 %v555, %v935
    %v937 = vsub.f32 1.0, %v936
    %v938 = vmul.f32 %v935, %v937
    %v939 = vadd.f32 %v935, %v938
    %vm940 = vweird.f32 %v555
    %vm941 = vweird.f32 %v935
    %vm942 = vmor %vm940, %vm941
    %v943 = vsel %vm942, %v935, %v939
    %v944 = vand.u32 2147483647, %v555
    %vm945 = vcmp.eq.f32.partialorder %v944, 8.507059e+37
    %v946 = vand.u32 %v555, 2147483648
    %v947 = vor.u32 1.1754944e-38, %v946
    %v948 = vsel %vm945, %v947, %v943
    %v949 = vmul.f32 1.0, %v948
    %v950 = vrcp.pop %v556
    %v951 = vmul.f32 %v556, %v950
    %v952 = vsub.f32 1.0, %v951
    %v953 = vmul.f32 %v950, %v952
    %v954 = vadd.f32 %v950, %v953
    %vm955 = vweird.f32 %v556
    %vm956 = vweird.f32 %v950
    %vm957 = vmor %vm955, %vm956
    %v958 = vsel %vm957, %v950, %v954
    %v959 = vand.u32 2147483647, %v556
    %vm960 = vcmp.eq.f32.partialorder %v959, 8.507059e+37
    %v961 = vand.u32 %v556, 2147483648
    %v962 = vor.u32 1.1754944e-38, %v961
    %v963 = vsel %vm960, %v962, %v958
    %v964 = vmul.f32 1.0, %v963
    %v965 = vrcp.pop %v557
    %v966 = vmul.f32 %v557, %v965
    %v967 = vsub.f32 1.0, %v966
    %v968 = vmul.f32 %v965, %v967
    %v969 = vadd.f32 %v965, %v968
    %vm970 = vweird.f32 %v557
    %vm971 = vweird.f32 %v965
    %vm972 = vmor %vm970, %vm971
    %v973 = vsel %vm972, %v965, %v969
    %v974 = vand.u32 2147483647, %v557
    %vm975 = vcmp.eq.f32.partialorder %v974, 8.507059e+37
    %v976 = vand.u32 %v557, 2147483648
    %v977 = vor.u32 1.1754944e-38, %v976
    %v978 = vsel %vm975, %v977, %v973
    %v979 = vmul.f32 1.0, %v978
    %v980 = vrcp.pop %v558
    %v981 = vmul.f32 %v558, %v980
    %v982 = vsub.f32 1.0, %v981
    %v983 = vmul.f32 %v980, %v982
    %v984 = vadd.f32 %v980, %v983
    %vm985 = vweird.f32 %v558
    %vm986 = vweird.f32 %v980
    %vm987 = vmor %vm985, %vm986
    %v988 = vsel %vm987, %v980, %v984
    %v989 = vand.u32 2147483647, %v558
    %vm990 = vcmp.eq.f32.partialorder %v989, 8.507059e+37
    %v991 = vand.u32 %v558, 2147483648
    %v992 = vor.u32 1.1754944e-38, %v991
    %v993 = vsel %vm990, %v992, %v988
    %v994 = vmul.f32 1.0, %v993
    %v995 = vrcp.pop %v559
    %v996 = vmul.f32 %v559, %v995
    %v997 = vsub.f32 1.0, %v996
    %v998 = vmul.f32 %v995, %v997
    %v999 = vadd.f32 %v995, %v998
    %vm1000 = vweird.f32 %v559
    %vm1001 = vweird.f32 %v995
    %vm1002 = vmor %vm1000, %vm1001
    %v1003 = vsel %vm1002, %v995, %v999
    %v1004 = vand.u32 2147483647, %v559
    %vm1005 = vcmp.eq.f32.partialorder %v1004, 8.507059e+37
    %v1006 = vand.u32 %v559, 2147483648
    %v1007 = vor.u32 1.1754944e-38, %v1006
    %v1008 = vsel %vm1005, %v1007, %v1003
    %v1009 = vmul.f32 1.0, %v1008
    %v1010 = vrcp.pop %v560
    %v1011 = vmul.f32 %v560, %v1010
    %v1012 = vsub.f32 1.0, %v1011
    %v1013 = vmul.f32 %v1010, %v1012
    %v1014 = vadd.f32 %v1010, %v1013
    %vm1015 = vweird.f32 %v560
    %vm1016 = vweird.f32 %v1010
    %vm1017 = vmor %vm1015, %vm1016
    %v1018 = vsel %vm1017, %v1010, %v1014
    %v1019 = vand.u32 2147483647, %v560
    %vm1020 = vcmp.eq.f32.partialorder %v1019, 8.507059e+37
    %v1021 = vand.u32 %v560, 2147483648
    %v1022 = vor.u32 1.1754944e-38, %v1021
    %v1023 = vsel %vm1020, %v1022, %v1018
    %v1024 = vmul.f32 1.0, %v1023
    %v1025 = vrcp.pop %v561
    %v1026 = vmul.f32 %v561, %v1025
    %v1027 = vsub.f32 1.0, %v1026
    %v1028 = vmul.f32 %v1025, %v1027
    %v1029 = vadd.f32 %v1025, %v1028
    %vm1030 = vweird.f32 %v561
    %vm1031 = vweird.f32 %v1025
    %vm1032 = vmor %vm1030, %vm1031
    %v1033 = vsel %vm1032, %v1025, %v1029
    %v1034 = vand.u32 2147483647, %v561
    %vm1035 = vcmp.eq.f32.partialorder %v1034, 8.507059e+37
    %v1036 = vand.u32 %v561, 2147483648
    %v1037 = vor.u32 1.1754944e-38, %v1036
    %v1038 = vsel %vm1035, %v1037, %v1033
    %v1039 = vmul.f32 1.0, %v1038
    %v1040 = vrcp.pop %v562
    %v1041 = vmul.f32 %v562, %v1040
    %v1042 = vsub.f32 1.0, %v1041
    %v1043 = vmul.f32 %v1040, %v1042
    %v1044 = vadd.f32 %v1040, %v1043
    %vm1045 = vweird.f32 %v562
    %vm1046 = vweird.f32 %v1040
    %vm1047 = vmor %vm1045, %vm1046
    %v1048 = vsel %vm1047, %v1040, %v1044
    %v1049 = vand.u32 2147483647, %v562
    %vm1050 = vcmp.eq.f32.partialorder %v1049, 8.507059e+37
    %v1051 = vand.u32 %v562, 2147483648
    %v1052 = vor.u32 1.1754944e-38, %v1051
    %v1053 = vsel %vm1050, %v1052, %v1048
    %v1054 = vmul.f32 1.0, %v1053
    %v1055 = vrcp.pop %v563
    %v1056 = vmul.f32 %v563, %v1055
    %v1057 = vsub.f32 1.0, %v1056
    %v1058 = vmul.f32 %v1055, %v1057
    %v1059 = vadd.f32 %v1055, %v1058
    %vm1060 = vweird.f32 %v563
    %vm1061 = vweird.f32 %v1055
    %vm1062 = vmor %vm1060, %vm1061
    %v1063 = vsel %vm1062, %v1055, %v1059
    %v1064 = vand.u32 2147483647, %v563
    %vm1065 = vcmp.eq.f32.partialorder %v1064, 8.507059e+37
    %v1066 = vand.u32 %v563, 2147483648
    %v1067 = vor.u32 1.1754944e-38, %v1066
    %v1068 = vsel %vm1065, %v1067, %v1063
    %v1069 = vmul.f32 1.0, %v1068
    %v1070 = vrcp.pop %v564
    %v1071 = vmul.f32 %v564, %v1070
    %v1072 = vsub.f32 1.0, %v1071
    %v1073 = vmul.f32 %v1070, %v1072
    %v1074 = vadd.f32 %v1070, %v1073
    %vm1075 = vweird.f32 %v564
    %vm1076 = vweird.f32 %v1070
    %vm1077 = vmor %vm1075, %vm1076
    %v1078 = vsel %vm1077, %v1070, %v1074
    %v1079 = vand.u32 2147483647, %v564
    %vm1080 = vcmp.eq.f32.partialorder %v1079, 8.507059e+37
    %v1081 = vand.u32 %v564, 2147483648
    %v1082 = vor.u32 1.1754944e-38, %v1081
    %v1083 = vsel %vm1080, %v1082, %v1078
    %v1084 = vmul.f32 1.0, %v1083
    %v1085 = vrcp.pop %v565
    %v1086 = vmul.f32 %v565, %v1085
    %v1087 = vsub.f32 1.0, %v1086
    %v1088 = vmul.f32 %v1085, %v1087
    %v1089 = vadd.f32 %v1085, %v1088
    %vm1090 = vweird.f32 %v565
    %vm1091 = vweird.f32 %v1085
    %vm1092 = vmor %vm1090, %vm1091
    %v1093 = vsel %vm1092, %v1085, %v1089
    %v1094 = vand.u32 2147483647, %v565
    %vm1095 = vcmp.eq.f32.partialorder %v1094, 8.507059e+37
    %v1096 = vand.u32 %v565, 2147483648
    %v1097 = vor.u32 1.1754944e-38, %v1096
    %v1098 = vsel %vm1095, %v1097, %v1093
    %v1099 = vmul.f32 1.0, %v1098
    %v1100 = vrcp.pop %v566
    %v1101 = vmul.f32 %v566, %v1100
    %v1102 = vsub.f32 1.0, %v1101
    %v1103 = vmul.f32 %v1100, %v1102
    %v1104 = vadd.f32 %v1100, %v1103
    %vm1105 = vweird.f32 %v566
    %vm1106 = vweird.f32 %v1100
    %vm1107 = vmor %vm1105, %vm1106
    %v1108 = vsel %vm1107, %v1100, %v1104
    %v1109 = vand.u32 2147483647, %v566
    %vm1110 = vcmp.eq.f32.partialorder %v1109, 8.507059e+37
    %v1111 = vand.u32 %v566, 2147483648
    %v1112 = vor.u32 1.1754944e-38, %v1111
    %v1113 = vsel %vm1110, %v1112, %v1108
    %v1114 = vmul.f32 1.0, %v1113
    %v1115 = vrcp.pop %v567
    %v1116 = vmul.f32 %v567, %v1115
    %v1117 = vsub.f32 1.0, %v1116
    %v1118 = vmul.f32 %v1115, %v1117
    %v1119 = vadd.f32 %v1115, %v1118
    %vm1120 = vweird.f32 %v567
    %vm1121 = vweird.f32 %v1115
    %vm1122 = vmor %vm1120, %vm1121
    %v1123 = vsel %vm1122, %v1115, %v1119
    %v1124 = vand.u32 2147483647, %v567
    %vm1125 = vcmp.eq.f32.partialorder %v1124, 8.507059e+37
    %v1126 = vand.u32 %v567, 2147483648
    %v1127 = vor.u32 1.1754944e-38, %v1126
    %v1128 = vsel %vm1125, %v1127, %v1123
    %v1129 = vmul.f32 1.0, %v1128
    %v1130 = vrcp.pop %v568
    %v1131 = vmul.f32 %v568, %v1130
    %v1132 = vsub.f32 1.0, %v1131
    %v1133 = vmul.f32 %v1130, %v1132
    %v1134 = vadd.f32 %v1130, %v1133
    %vm1135 = vweird.f32 %v568
    %vm1136 = vweird.f32 %v1130
    %vm1137 = vmor %vm1135, %vm1136
    %v1138 = vsel %vm1137, %v1130, %v1134
    %v1139 = vand.u32 2147483647, %v568
    %vm1140 = vcmp.eq.f32.partialorder %v1139, 8.507059e+37
    %v1141 = vand.u32 %v568, 2147483648
    %v1142 = vor.u32 1.1754944e-38, %v1141
    %v1143 = vsel %vm1140, %v1142, %v1138
    %v1144 = vmul.f32 1.0, %v1143
    %v1145 = vrcp.pop %v569
    %v1146 = vmul.f32 %v569, %v1145
    %v1147 = vsub.f32 1.0, %v1146
    %v1148 = vmul.f32 %v1145, %v1147
    %v1149 = vadd.f32 %v1145, %v1148
    %vm1150 = vweird.f32 %v569
    %vm1151 = vweird.f32 %v1145
    %vm1152 = vmor %vm1150, %vm1151
    %v1153 = vsel %vm1152, %v1145, %v1149
    %v1154 = vand.u32 2147483647, %v569
    %vm1155 = vcmp.eq.f32.partialorder %v1154, 8.507059e+37
    %v1156 = vand.u32 %v569, 2147483648
    %v1157 = vor.u32 1.1754944e-38, %v1156
    %v1158 = vsel %vm1155, %v1157, %v1153
    %v1159 = vmul.f32 1.0, %v1158
    %v1160 = vrcp.pop %v570
    %v1161 = vmul.f32 %v570, %v1160
    %v1162 = vsub.f32 1.0, %v1161
    %v1163 = vmul.f32 %v1160, %v1162
    %v1164 = vadd.f32 %v1160, %v1163
    %vm1165 = vweird.f32 %v570
    %vm1166 = vweird.f32 %v1160
    %vm1167 = vmor %vm1165, %vm1166
    %v1168 = vsel %vm1167, %v1160, %v1164
    %v1169 = vand.u32 2147483647, %v570
    %vm1170 = vcmp.eq.f32.partialorder %v1169, 8.507059e+37
    %v1171 = vand.u32 %v570, 2147483648
    %v1172 = vor.u32 1.1754944e-38, %v1171
    %v1173 = vsel %vm1170, %v1172, %v1168
    %v1174 = vmul.f32 1.0, %v1173
    %v1175 = vrcp.pop %v571
    %v1176 = vmul.f32 %v571, %v1175
    %v1177 = vsub.f32 1.0, %v1176
    %v1178 = vmul.f32 %v1175, %v1177
    %v1179 = vadd.f32 %v1175, %v1178
    %vm1180 = vweird.f32 %v571
    %vm1181 = vweird.f32 %v1175
    %vm1182 = vmor %vm1180, %vm1181
    %v1183 = vsel %vm1182, %v1175, %v1179
    %v1184 = vand.u32 2147483647, %v571
    %vm1185 = vcmp.eq.f32.partialorder %v1184, 8.507059e+37
    %v1186 = vand.u32 %v571, 2147483648
    %v1187 = vor.u32 1.1754944e-38, %v1186
    %v1188 = vsel %vm1185, %v1187, %v1183
    %v1189 = vmul.f32 1.0, %v1188
    %v1190 = vrcp.pop %v572
    %v1191 = vmul.f32 %v572, %v1190
    %v1192 = vsub.f32 1.0, %v1191
    %v1193 = vmul.f32 %v1190, %v1192
    %v1194 = vadd.f32 %v1190, %v1193
    %vm1195 = vweird.f32 %v572
    %vm1196 = vweird.f32 %v1190
    %vm1197 = vmor %vm1195, %vm1196
    %v1198 = vsel %vm1197, %v1190, %v1194
    %v1199 = vand.u32 2147483647, %v572
    %vm1200 = vcmp.eq.f32.partialorder %v1199, 8.507059e+37
    %v1201 = vand.u32 %v572, 2147483648
    %v1202 = vor.u32 1.1754944e-38, %v1201
    %v1203 = vsel %vm1200, %v1202, %v1198
    %v1204 = vmul.f32 1.0, %v1203
    %v1205 = vrcp.pop %v573
    %v1206 = vmul.f32 %v573, %v1205
    %v1207 = vsub.f32 1.0, %v1206
    %v1208 = vmul.f32 %v1205, %v1207
    %v1209 = vadd.f32 %v1205, %v1208
    %vm1210 = vweird.f32 %v573
    %vm1211 = vweird.f32 %v1205
    %vm1212 = vmor %vm1210, %vm1211
    %v1213 = vsel %vm1212, %v1205, %v1209
    %v1214 = vand.u32 2147483647, %v573
    %vm1215 = vcmp.eq.f32.partialorder %v1214, 8.507059e+37
    %v1216 = vand.u32 %v573, 2147483648
    %v1217 = vor.u32 1.1754944e-38, %v1216
    %v1218 = vsel %vm1215, %v1217, %v1213
    %v1219 = vmul.f32 1.0, %v1218
    %v1220 = vrcp.pop %v574
    %v1221 = vmul.f32 %v574, %v1220
    %v1222 = vsub.f32 1.0, %v1221
    %v1223 = vmul.f32 %v1220, %v1222
    %v1224 = vadd.f32 %v1220, %v1223
    %vm1225 = vweird.f32 %v574
    %vm1226 = vweird.f32 %v1220
    %vm1227 = vmor %vm1225, %vm1226
    %v1228 = vsel %vm1227, %v1220, %v1224
    %v1229 = vand.u32 2147483647, %v574
    %vm1230 = vcmp.eq.f32.partialorder %v1229, 8.507059e+37
    %v1231 = vand.u32 %v574, 2147483648
    %v1232 = vor.u32 1.1754944e-38, %v1231
    %v1233 = vsel %vm1230, %v1232, %v1228
    %v1234 = vmul.f32 1.0, %v1233
    %v1235 = vrcp.pop %v575
    %v1236 = vmul.f32 %v575, %v1235
    %v1237 = vsub.f32 1.0, %v1236
    %v1238 = vmul.f32 %v1235, %v1237
    %v1239 = vadd.f32 %v1235, %v1238
    %vm1240 = vweird.f32 %v575
    %vm1241 = vweird.f32 %v1235
    %vm1242 = vmor %vm1240, %vm1241
    %v1243 = vsel %vm1242, %v1235, %v1239
    %v1244 = vand.u32 2147483647, %v575
    %vm1245 = vcmp.eq.f32.partialorder %v1244, 8.507059e+37
    %v1246 = vand.u32 %v575, 2147483648
    %v1247 = vor.u32 1.1754944e-38, %v1246
    %v1248 = vsel %vm1245, %v1247, %v1243
    %v1249 = vmul.f32 1.0, %v1248
    %v1250 = vrcp.pop %v576
    %v1251 = vmul.f32 %v576, %v1250
    %v1252 = vsub.f32 1.0, %v1251
    %v1253 = vmul.f32 %v1250, %v1252
    %v1254 = vadd.f32 %v1250, %v1253
    %vm1255 = vweird.f32 %v576
    %vm1256 = vweird.f32 %v1250
    %vm1257 = vmor %vm1255, %vm1256
    %v1258 = vsel %vm1257, %v1250, %v1254
    %v1259 = vand.u32 2147483647, %v576
    %vm1260 = vcmp.eq.f32.partialorder %v1259, 8.507059e+37
    %v1261 = vand.u32 %v576, 2147483648
    %v1262 = vor.u32 1.1754944e-38, %v1261
    %v1263 = vsel %vm1260, %v1262, %v1258
    %v1264 = vmul.f32 1.0, %v1263
    %v1265 = vrcp.pop %v577
    %v1266 = vmul.f32 %v577, %v1265
    %v1267 = vsub.f32 1.0, %v1266
    %v1268 = vmul.f32 %v1265, %v1267
    %v1269 = vadd.f32 %v1265, %v1268
    %vm1270 = vweird.f32 %v577
    %vm1271 = vweird.f32 %v1265
    %vm1272 = vmor %vm1270, %vm1271
    %v1273 = vsel %vm1272, %v1265, %v1269
    %v1274 = vand.u32 2147483647, %v577
    %vm1275 = vcmp.eq.f32.partialorder %v1274, 8.507059e+37
    %v1276 = vand.u32 %v577, 2147483648
    %v1277 = vor.u32 1.1754944e-38, %v1276
    %v1278 = vsel %vm1275, %v1277, %v1273
    %v1279 = vmul.f32 1.0, %v1278
    %v1280 = vrcp.pop %v578
    %v1281 = vmul.f32 %v578, %v1280
    %v1282 = vsub.f32 1.0, %v1281
    %v1283 = vmul.f32 %v1280, %v1282
    %v1284 = vadd.f32 %v1280, %v1283
    %vm1285 = vweird.f32 %v578
    %vm1286 = vweird.f32 %v1280
    %vm1287 = vmor %vm1285, %vm1286
    %v1288 = vsel %vm1287, %v1280, %v1284
    %v1289 = vand.u32 2147483647, %v578
    %vm1290 = vcmp.eq.f32.partialorder %v1289, 8.507059e+37
    %v1291 = vand.u32 %v578, 2147483648
    %v1292 = vor.u32 1.1754944e-38, %v1291
    %v1293 = vsel %vm1290, %v1292, %v1288
    %v1294 = vmul.f32 1.0, %v1293
    %v1295 = vrcp.pop %v579
    %v1296 = vmul.f32 %v579, %v1295
    %v1297 = vsub.f32 1.0, %v1296
    %v1298 = vmul.f32 %v1295, %v1297
    %v1299 = vadd.f32 %v1295, %v1298
    %vm1300 = vweird.f32 %v579
    %vm1301 = vweird.f32 %v1295
    %vm1302 = vmor %vm1300, %vm1301
    %v1303 = vsel %vm1302, %v1295, %v1299
    %v1304 = vand.u32 2147483647, %v579
    %vm1305 = vcmp.eq.f32.partialorder %v1304, 8.507059e+37
    %v1306 = vand.u32 %v579, 2147483648
    %v1307 = vor.u32 1.1754944e-38, %v1306
    %v1308 = vsel %vm1305, %v1307, %v1303
    %v1309 = vmul.f32 1.0, %v1308
    %v1310 = vrcp.pop %v580
    %v1311 = vmul.f32 %v580, %v1310
    %v1312 = vsub.f32 1.0, %v1311
    %v1313 = vmul.f32 %v1310, %v1312
    %v1314 = vadd.f32 %v1310, %v1313
    %vm1315 = vweird.f32 %v580
    %vm1316 = vweird.f32 %v1310
    %vm1317 = vmor %vm1315, %vm1316
    %v1318 = vsel %vm1317, %v1310, %v1314
    %v1319 = vand.u32 2147483647, %v580
    %vm1320 = vcmp.eq.f32.partialorder %v1319, 8.507059e+37
    %v1321 = vand.u32 %v580, 2147483648
    %v1322 = vor.u32 1.1754944e-38, %v1321
    %v1323 = vsel %vm1320, %v1322, %v1318
    %v1324 = vmul.f32 1.0, %v1323
    %v1325 = vrcp.pop %v581
    %v1326 = vmul.f32 %v581, %v1325
    %v1327 = vsub.f32 1.0, %v1326
    %v1328 = vmul.f32 %v1325, %v1327
    %v1329 = vadd.f32 %v1325, %v1328
    %vm1330 = vweird.f32 %v581
    %vm1331 = vweird.f32 %v1325
    %vm1332 = vmor %vm1330, %vm1331
    %v1333 = vsel %vm1332, %v1325, %v1329
    %v1334 = vand.u32 2147483647, %v581
    %vm1335 = vcmp.eq.f32.partialorder %v1334, 8.507059e+37
    %v1336 = vand.u32 %v581, 2147483648
    %v1337 = vor.u32 1.1754944e-38, %v1336
    %v1338 = vsel %vm1335, %v1337, %v1333
    %v1339 = vmul.f32 1.0, %v1338
    %v1340 = vrcp.pop %v582
    %v1341 = vmul.f32 %v582, %v1340
    %v1342 = vsub.f32 1.0, %v1341
    %v1343 = vmul.f32 %v1340, %v1342
    %v1344 = vadd.f32 %v1340, %v1343
    %vm1345 = vweird.f32 %v582
    %vm1346 = vweird.f32 %v1340
    %vm1347 = vmor %vm1345, %vm1346
    %v1348 = vsel %vm1347, %v1340, %v1344
    %v1349 = vand.u32 2147483647, %v582
    %vm1350 = vcmp.eq.f32.partialorder %v1349, 8.507059e+37
    %v1351 = vand.u32 %v582, 2147483648
    %v1352 = vor.u32 1.1754944e-38, %v1351
    %v1353 = vsel %vm1350, %v1352, %v1348
    %v1354 = vmul.f32 1.0, %v1353
    %v1355 = vrcp.pop %v583
    %v1356 = vmul.f32 %v583, %v1355
    %v1357 = vsub.f32 1.0, %v1356
    %v1358 = vmul.f32 %v1355, %v1357
    %v1359 = vadd.f32 %v1355, %v1358
    %vm1360 = vweird.f32 %v583
    %vm1361 = vweird.f32 %v1355
    %vm1362 = vmor %vm1360, %vm1361
    %v1363 = vsel %vm1362, %v1355, %v1359
    %v1364 = vand.u32 2147483647, %v583
    %vm1365 = vcmp.eq.f32.partialorder %v1364, 8.507059e+37
    %v1366 = vand.u32 %v583, 2147483648
    %v1367 = vor.u32 1.1754944e-38, %v1366
    %v1368 = vsel %vm1365, %v1367, %v1363
    %v1369 = vmul.f32 1.0, %v1368
    %v1370 = vrcp.pop %v584
    %v1371 = vmul.f32 %v584, %v1370
    %v1372 = vsub.f32 1.0, %v1371
    %v1373 = vmul.f32 %v1370, %v1372
    %v1374 = vadd.f32 %v1370, %v1373
    %vm1375 = vweird.f32 %v584
    %vm1376 = vweird.f32 %v1370
    %vm1377 = vmor %vm1375, %vm1376
    %v1378 = vsel %vm1377, %v1370, %v1374
    %v1379 = vand.u32 2147483647, %v584
    %vm1380 = vcmp.eq.f32.partialorder %v1379, 8.507059e+37
    %v1381 = vand.u32 %v584, 2147483648
    %v1382 = vor.u32 1.1754944e-38, %v1381
    %v1383 = vsel %vm1380, %v1382, %v1378
    %v1384 = vmul.f32 1.0, %v1383
    %v1385 = vrcp.pop %v585
    %v1386 = vmul.f32 %v585, %v1385
    %v1387 = vsub.f32 1.0, %v1386
    %v1388 = vmul.f32 %v1385, %v1387
    %v1389 = vadd.f32 %v1385, %v1388
    %vm1390 = vweird.f32 %v585
    %vm1391 = vweird.f32 %v1385
    %vm1392 = vmor %vm1390, %vm1391
    %v1393 = vsel %vm1392, %v1385, %v1389
    %v1394 = vand.u32 2147483647, %v585
    %vm1395 = vcmp.eq.f32.partialorder %v1394, 8.507059e+37
    %v1396 = vand.u32 %v585, 2147483648
    %v1397 = vor.u32 1.1754944e-38, %v1396
    %v1398 = vsel %vm1395, %v1397, %v1393
    %v1399 = vmul.f32 1.0, %v1398
    %v1400 = vrcp.pop %v586
    %v1401 = vmul.f32 %v586, %v1400
    %v1402 = vsub.f32 1.0, %v1401
    %v1403 = vmul.f32 %v1400, %v1402
    %v1404 = vadd.f32 %v1400, %v1403
    %vm1405 = vweird.f32 %v586
    %vm1406 = vweird.f32 %v1400
    %vm1407 = vmor %vm1405, %vm1406
    %v1408 = vsel %vm1407, %v1400, %v1404
    %v1409 = vand.u32 2147483647, %v586
    %vm1410 = vcmp.eq.f32.partialorder %v1409, 8.507059e+37
    %v1411 = vand.u32 %v586, 2147483648
    %v1412 = vor.u32 1.1754944e-38, %v1411
    %v1413 = vsel %vm1410, %v1412, %v1408
    %v1414 = vmul.f32 1.0, %v1413
    %v1415 = vrcp.pop %v587
    %v1416 = vmul.f32 %v587, %v1415
    %v1417 = vsub.f32 1.0, %v1416
    %v1418 = vmul.f32 %v1415, %v1417
    %v1419 = vadd.f32 %v1415, %v1418
    %vm1420 = vweird.f32 %v587
    %vm1421 = vweird.f32 %v1415
    %vm1422 = vmor %vm1420, %vm1421
    %v1423 = vsel %vm1422, %v1415, %v1419
    %v1424 = vand.u32 2147483647, %v587
    %vm1425 = vcmp.eq.f32.partialorder %v1424, 8.507059e+37
    %v1426 = vand.u32 %v587, 2147483648
    %v1427 = vor.u32 1.1754944e-38, %v1426
    %v1428 = vsel %vm1425, %v1427, %v1423
    %v1429 = vmul.f32 1.0, %v1428
    %v1430 = vrcp.pop %v588
    %v1431 = vmul.f32 %v588, %v1430
    %v1432 = vsub.f32 1.0, %v1431
    %v1433 = vmul.f32 %v1430, %v1432
    %v1434 = vadd.f32 %v1430, %v1433
    %vm1435 = vweird.f32 %v588
    %vm1436 = vweird.f32 %v1430
    %vm1437 = vmor %vm1435, %vm1436
    %v1438 = vsel %vm1437, %v1430, %v1434
    %v1439 = vand.u32 2147483647, %v588
    %vm1440 = vcmp.eq.f32.partialorder %v1439, 8.507059e+37
    %v1441 = vand.u32 %v588, 2147483648
    %v1442 = vor.u32 1.1754944e-38, %v1441
    %v1443 = vsel %vm1440, %v1442, %v1438
    %v1444 = vmul.f32 1.0, %v1443
    %v1445 = vrcp.pop %v589
    %v1446 = vmul.f32 %v589, %v1445
    %v1447 = vsub.f32 1.0, %v1446
    %v1448 = vmul.f32 %v1445, %v1447
    %v1449 = vadd.f32 %v1445, %v1448
    %vm1450 = vweird.f32 %v589
    %vm1451 = vweird.f32 %v1445
    %vm1452 = vmor %vm1450, %vm1451
    %v1453 = vsel %vm1452, %v1445, %v1449
    %v1454 = vand.u32 2147483647, %v589
    %vm1455 = vcmp.eq.f32.partialorder %v1454, 8.507059e+37
    %v1456 = vand.u32 %v589, 2147483648
    %v1457 = vor.u32 1.1754944e-38, %v1456
    %v1458 = vsel %vm1455, %v1457, %v1453
    %v1459 = vmul.f32 1.0, %v1458
    %v1460 = vrcp.pop %v590
    %v1461 = vmul.f32 %v590, %v1460
    %v1462 = vsub.f32 1.0, %v1461
    %v1463 = vmul.f32 %v1460, %v1462
    %v1464 = vadd.f32 %v1460, %v1463
    %vm1465 = vweird.f32 %v590
    %vm1466 = vweird.f32 %v1460
    %vm1467 = vmor %vm1465, %vm1466
    %v1468 = vsel %vm1467, %v1460, %v1464
    %v1469 = vand.u32 2147483647, %v590
    %vm1470 = vcmp.eq.f32.partialorder %v1469, 8.507059e+37
    %v1471 = vand.u32 %v590, 2147483648
    %v1472 = vor.u32 1.1754944e-38, %v1471
    %v1473 = vsel %vm1470, %v1472, %v1468
    %v1474 = vmul.f32 1.0, %v1473
    %v1475 = vrcp.pop %v591
    %v1476 = vmul.f32 %v591, %v1475
    %v1477 = vsub.f32 1.0, %v1476
    %v1478 = vmul.f32 %v1475, %v1477
    %v1479 = vadd.f32 %v1475, %v1478
    %vm1480 = vweird.f32 %v591
    %vm1481 = vweird.f32 %v1475
    %vm1482 = vmor %vm1480, %vm1481
    %v1483 = vsel %vm1482, %v1475, %v1479
    %v1484 = vand.u32 2147483647, %v591
    %vm1485 = vcmp.eq.f32.partialorder %v1484, 8.507059e+37
    %v1486 = vand.u32 %v591, 2147483648
    %v1487 = vor.u32 1.1754944e-38, %v1486
    %v1488 = vsel %vm1485, %v1487, %v1483
    %v1489 = vmul.f32 1.0, %v1488
    %v1490 = vrcp.pop %v592
    %v1491 = vmul.f32 %v592, %v1490
    %v1492 = vsub.f32 1.0, %v1491
    %v1493 = vmul.f32 %v1490, %v1492
    %v1494 = vadd.f32 %v1490, %v1493
    %vm1495 = vweird.f32 %v592
    %vm1496 = vweird.f32 %v1490
    %vm1497 = vmor %vm1495, %vm1496
    %v1498 = vsel %vm1497, %v1490, %v1494
    %v1499 = vand.u32 2147483647, %v592
    %vm1500 = vcmp.eq.f32.partialorder %v1499, 8.507059e+37
    %v1501 = vand.u32 %v592, 2147483648
    %v1502 = vor.u32 1.1754944e-38, %v1501
    %v1503 = vsel %vm1500, %v1502, %v1498
    %v1504 = vmul.f32 1.0, %v1503
    %v1505 = vrcp.pop %v593
    %v1506 = vmul.f32 %v593, %v1505
    %v1507 = vsub.f32 1.0, %v1506
    %v1508 = vmul.f32 %v1505, %v1507
    %v1509 = vadd.f32 %v1505, %v1508
    %vm1510 = vweird.f32 %v593
    %vm1511 = vweird.f32 %v1505
    %vm1512 = vmor %vm1510, %vm1511
    %v1513 = vsel %vm1512, %v1505, %v1509
    %v1514 = vand.u32 2147483647, %v593
    %vm1515 = vcmp.eq.f32.partialorder %v1514, 8.507059e+37
    %v1516 = vand.u32 %v593, 2147483648
    %v1517 = vor.u32 1.1754944e-38, %v1516
    %v1518 = vsel %vm1515, %v1517, %v1513
    %v1519 = vmul.f32 1.0, %v1518
    %v1520 = vrcp.pop %v594
    %v1521 = vmul.f32 %v594, %v1520
    %v1522 = vsub.f32 1.0, %v1521
    %v1523 = vmul.f32 %v1520, %v1522
    %v1524 = vadd.f32 %v1520, %v1523
    %vm1525 = vweird.f32 %v594
    %vm1526 = vweird.f32 %v1520
    %vm1527 = vmor %vm1525, %vm1526
    %v1528 = vsel %vm1527, %v1520, %v1524
    %v1529 = vand.u32 2147483647, %v594
    %vm1530 = vcmp.eq.f32.partialorder %v1529, 8.507059e+37
    %v1531 = vand.u32 %v594, 2147483648
    %v1532 = vor.u32 1.1754944e-38, %v1531
    %v1533 = vsel %vm1530, %v1532, %v1528
    %v1534 = vmul.f32 1.0, %v1533
    %v1535 = vrcp.pop %v595
    %v1536 = vmul.f32 %v595, %v1535
    %v1537 = vsub.f32 1.0, %v1536
    %v1538 = vmul.f32 %v1535, %v1537
    %v1539 = vadd.f32 %v1535, %v1538
    %vm1540 = vweird.f32 %v595
    %vm1541 = vweird.f32 %v1535
    %vm1542 = vmor %vm1540, %vm1541
    %v1543 = vsel %vm1542, %v1535, %v1539
    %v1544 = vand.u32 2147483647, %v595
    %vm1545 = vcmp.eq.f32.partialorder %v1544, 8.507059e+37
    %v1546 = vand.u32 %v595, 2147483648
    %v1547 = vor.u32 1.1754944e-38, %v1546
    %v1548 = vsel %vm1545, %v1547, %v1543
    %v1549 = vmul.f32 1.0, %v1548
    %v1550 = vrcp.pop %v596
    %v1551 = vmul.f32 %v596, %v1550
    %v1552 = vsub.f32 1.0, %v1551
    %v1553 = vmul.f32 %v1550, %v1552
    %v1554 = vadd.f32 %v1550, %v1553
    %vm1555 = vweird.f32 %v596
    %vm1556 = vweird.f32 %v1550
    %vm1557 = vmor %vm1555, %vm1556
    %v1558 = vsel %vm1557, %v1550, %v1554
    %v1559 = vand.u32 2147483647, %v596
    %vm1560 = vcmp.eq.f32.partialorder %v1559, 8.507059e+37
    %v1561 = vand.u32 %v596, 2147483648
    %v1562 = vor.u32 1.1754944e-38, %v1561
    %v1563 = vsel %vm1560, %v1562, %v1558
    %v1564 = vmul.f32 1.0, %v1563
    %v1565 = vrcp.pop %v597
    %v1566 = vmul.f32 %v597, %v1565
    %v1567 = vsub.f32 1.0, %v1566
    %v1568 = vmul.f32 %v1565, %v1567
    %v1569 = vadd.f32 %v1565, %v1568
    %vm1570 = vweird.f32 %v597
    %vm1571 = vweird.f32 %v1565
    %vm1572 = vmor %vm1570, %vm1571
    %v1573 = vsel %vm1572, %v1565, %v1569
    %v1574 = vand.u32 2147483647, %v597
    %vm1575 = vcmp.eq.f32.partialorder %v1574, 8.507059e+37
    %v1576 = vand.u32 %v597, 2147483648
    %v1577 = vor.u32 1.1754944e-38, %v1576
    %v1578 = vsel %vm1575, %v1577, %v1573
    %v1579 = vmul.f32 1.0, %v1578
    %v1580 = vrcp.pop %v598
    %v1581 = vmul.f32 %v598, %v1580
    %v1582 = vsub.f32 1.0, %v1581
    %v1583 = vmul.f32 %v1580, %v1582
    %v1584 = vadd.f32 %v1580, %v1583
    %vm1585 = vweird.f32 %v598
    %vm1586 = vweird.f32 %v1580
    %vm1587 = vmor %vm1585, %vm1586
    %v1588 = vsel %vm1587, %v1580, %v1584
    %v1589 = vand.u32 2147483647, %v598
    %vm1590 = vcmp.eq.f32.partialorder %v1589, 8.507059e+37
    %v1591 = vand.u32 %v598, 2147483648
    %v1592 = vor.u32 1.1754944e-38, %v1591
    %v1593 = vsel %vm1590, %v1592, %v1588
    %v1594 = vmul.f32 1.0, %v1593
    %v1595 = vrcp.pop %v599
    %v1596 = vmul.f32 %v599, %v1595
    %v1597 = vsub.f32 1.0, %v1596
    %v1598 = vmul.f32 %v1595, %v1597
    %v1599 = vadd.f32 %v1595, %v1598
    %vm1600 = vweird.f32 %v599
    %vm1601 = vweird.f32 %v1595
    %vm1602 = vmor %vm1600, %vm1601
    %v1603 = vsel %vm1602, %v1595, %v1599
    %v1604 = vand.u32 2147483647, %v599
    %vm1605 = vcmp.eq.f32.partialorder %v1604, 8.507059e+37
    %v1606 = vand.u32 %v599, 2147483648
    %v1607 = vor.u32 1.1754944e-38, %v1606
    %v1608 = vsel %vm1605, %v1607, %v1603
    %v1609 = vmul.f32 1.0, %v1608
    %v1610 = vrcp.pop %v600
    %v1611 = vmul.f32 %v600, %v1610
    %v1612 = vsub.f32 1.0, %v1611
    %v1613 = vmul.f32 %v1610, %v1612
    %v1614 = vadd.f32 %v1610, %v1613
    %vm1615 = vweird.f32 %v600
    %vm1616 = vweird.f32 %v1610
    %vm1617 = vmor %vm1615, %vm1616
    %v1618 = vsel %vm1617, %v1610, %v1614
    %v1619 = vand.u32 2147483647, %v600
    %vm1620 = vcmp.eq.f32.partialorder %v1619, 8.507059e+37
    %v1621 = vand.u32 %v600, 2147483648
    %v1622 = vor.u32 1.1754944e-38, %v1621
    %v1623 = vsel %vm1620, %v1622, %v1618
    %v1624 = vmul.f32 1.0, %v1623
    %v1625 = vrcp.pop %v601
    %v1626 = vmul.f32 %v601, %v1625
    %v1627 = vsub.f32 1.0, %v1626
    %v1628 = vmul.f32 %v1625, %v1627
    %v1629 = vadd.f32 %v1625, %v1628
    %vm1630 = vweird.f32 %v601
    %vm1631 = vweird.f32 %v1625
    %vm1632 = vmor %vm1630, %vm1631
    %v1633 = vsel %vm1632, %v1625, %v1629
    %v1634 = vand.u32 2147483647, %v601
    %vm1635 = vcmp.eq.f32.partialorder %v1634, 8.507059e+37
    %v1636 = vand.u32 %v601, 2147483648
    %v1637 = vor.u32 1.1754944e-38, %v1636
    %v1638 = vsel %vm1635, %v1637, %v1633
    %v1639 = vmul.f32 1.0, %v1638
    %v1640 = vrcp.pop %v602
    %v1641 = vmul.f32 %v602, %v1640
    %v1642 = vsub.f32 1.0, %v1641
    %v1643 = vmul.f32 %v1640, %v1642
    %v1644 = vadd.f32 %v1640, %v1643
    %vm1645 = vweird.f32 %v602
    %vm1646 = vweird.f32 %v1640
    %vm1647 = vmor %vm1645, %vm1646
    %v1648 = vsel %vm1647, %v1640, %v1644
    %v1649 = vand.u32 2147483647, %v602
    %vm1650 = vcmp.eq.f32.partialorder %v1649, 8.507059e+37
    %v1651 = vand.u32 %v602, 2147483648
    %v1652 = vor.u32 1.1754944e-38, %v1651
    %v1653 = vsel %vm1650, %v1652, %v1648
    %v1654 = vmul.f32 1.0, %v1653
    %v1655 = vrcp.pop %v603
    %v1656 = vmul.f32 %v603, %v1655
    %v1657 = vsub.f32 1.0, %v1656
    %v1658 = vmul.f32 %v1655, %v1657
    %v1659 = vadd.f32 %v1655, %v1658
    %vm1660 = vweird.f32 %v603
    %vm1661 = vweird.f32 %v1655
    %vm1662 = vmor %vm1660, %vm1661
    %v1663 = vsel %vm1662, %v1655, %v1659
    %v1664 = vand.u32 2147483647, %v603
    %vm1665 = vcmp.eq.f32.partialorder %v1664, 8.507059e+37
    %v1666 = vand.u32 %v603, 2147483648
    %v1667 = vor.u32 1.1754944e-38, %v1666
    %v1668 = vsel %vm1665, %v1667, %v1663
    %v1669 = vmul.f32 1.0, %v1668
    %v1670 = vrcp.pop %v604
    %v1671 = vmul.f32 %v604, %v1670
    %v1672 = vsub.f32 1.0, %v1671
    %v1673 = vmul.f32 %v1670, %v1672
    %v1674 = vadd.f32 %v1670, %v1673
    %vm1675 = vweird.f32 %v604
    %vm1676 = vweird.f32 %v1670
    %vm1677 = vmor %vm1675, %vm1676
    %v1678 = vsel %vm1677, %v1670, %v1674
    %v1679 = vand.u32 2147483647, %v604
    %vm1680 = vcmp.eq.f32.partialorder %v1679, 8.507059e+37
    %v1681 = vand.u32 %v604, 2147483648
    %v1682 = vor.u32 1.1754944e-38, %v1681
    %v1683 = vsel %vm1680, %v1682, %v1678
    %v1684 = vmul.f32 1.0, %v1683
    %v1685 = vrcp.pop %v605
    %v1686 = vmul.f32 %v605, %v1685
    %v1687 = vsub.f32 1.0, %v1686
    %v1688 = vmul.f32 %v1685, %v1687
    %v1689 = vadd.f32 %v1685, %v1688
    %vm1690 = vweird.f32 %v605
    %vm1691 = vweird.f32 %v1685
    %vm1692 = vmor %vm1690, %vm1691
    %v1693 = vsel %vm1692, %v1685, %v1689
    %v1694 = vand.u32 2147483647, %v605
    %vm1695 = vcmp.eq.f32.partialorder %v1694, 8.507059e+37
    %v1696 = vand.u32 %v605, 2147483648
    %v1697 = vor.u32 1.1754944e-38, %v1696
    %v1698 = vsel %vm1695, %v1697, %v1693
    %v1699 = vmul.f32 1.0, %v1698
    %v1700 = vrcp.pop %v606
    %v1701 = vmul.f32 %v606, %v1700
    %v1702 = vsub.f32 1.0, %v1701
    %v1703 = vmul.f32 %v1700, %v1702
    %v1704 = vadd.f32 %v1700, %v1703
    %vm1705 = vweird.f32 %v606
    %vm1706 = vweird.f32 %v1700
    %vm1707 = vmor %vm1705, %vm1706
    %v1708 = vsel %vm1707, %v1700, %v1704
    %v1709 = vand.u32 2147483647, %v606
    %vm1710 = vcmp.eq.f32.partialorder %v1709, 8.507059e+37
    %v1711 = vand.u32 %v606, 2147483648
    %v1712 = vor.u32 1.1754944e-38, %v1711
    %v1713 = vsel %vm1710, %v1712, %v1708
    %v1714 = vmul.f32 1.0, %v1713
    %v1715 = vrcp.pop %v607
    %v1716 = vmul.f32 %v607, %v1715
    %v1717 = vsub.f32 1.0, %v1716
    %v1718 = vmul.f32 %v1715, %v1717
    %v1719 = vadd.f32 %v1715, %v1718
    %vm1720 = vweird.f32 %v607
    %vm1721 = vweird.f32 %v1715
    %vm1722 = vmor %vm1720, %vm1721
    %v1723 = vsel %vm1722, %v1715, %v1719
    %v1724 = vand.u32 2147483647, %v607
    %vm1725 = vcmp.eq.f32.partialorder %v1724, 8.507059e+37
    %v1726 = vand.u32 %v607, 2147483648
    %v1727 = vor.u32 1.1754944e-38, %v1726
    %v1728 = vsel %vm1725, %v1727, %v1723
    %v1729 = vmul.f32 1.0, %v1728
    %v1730 = vrcp.pop %v608
    %v1731 = vmul.f32 %v608, %v1730
    %v1732 = vsub.f32 1.0, %v1731
    %v1733 = vmul.f32 %v1730, %v1732
    %v1734 = vadd.f32 %v1730, %v1733
    %vm1735 = vweird.f32 %v608
    %vm1736 = vweird.f32 %v1730
    %vm1737 = vmor %vm1735, %vm1736
    %v1738 = vsel %vm1737, %v1730, %v1734
    %v1739 = vand.u32 2147483647, %v608
    %vm1740 = vcmp.eq.f32.partialorder %v1739, 8.507059e+37
    %v1741 = vand.u32 %v608, 2147483648
    %v1742 = vor.u32 1.1754944e-38, %v1741
    %v1743 = vsel %vm1740, %v1742, %v1738
    %v1744 = vmul.f32 1.0, %v1743
    %v1745 = vrcp.pop %v609
    %v1746 = vmul.f32 %v609, %v1745
    %v1747 = vsub.f32 1.0, %v1746
    %v1748 = vmul.f32 %v1745, %v1747
    %v1749 = vadd.f32 %v1745, %v1748
    %vm1750 = vweird.f32 %v609
    %vm1751 = vweird.f32 %v1745
    %vm1752 = vmor %vm1750, %vm1751
    %v1753 = vsel %vm1752, %v1745, %v1749
    %v1754 = vand.u32 2147483647, %v609
    %vm1755 = vcmp.eq.f32.partialorder %v1754, 8.507059e+37
    %v1756 = vand.u32 %v609, 2147483648
    %v1757 = vor.u32 1.1754944e-38, %v1756
    %v1758 = vsel %vm1755, %v1757, %v1753
    %v1759 = vmul.f32 1.0, %v1758
    %v1760 = vrcp.pop %v610
    %v1761 = vmul.f32 %v610, %v1760
    %v1762 = vsub.f32 1.0, %v1761
    %v1763 = vmul.f32 %v1760, %v1762
    %v1764 = vadd.f32 %v1760, %v1763
    %vm1765 = vweird.f32 %v610
    %vm1766 = vweird.f32 %v1760
    %vm1767 = vmor %vm1765, %vm1766
    %v1768 = vsel %vm1767, %v1760, %v1764
    %v1769 = vand.u32 2147483647, %v610
    %vm1770 = vcmp.eq.f32.partialorder %v1769, 8.507059e+37
    %v1771 = vand.u32 %v610, 2147483648
    %v1772 = vor.u32 1.1754944e-38, %v1771
    %v1773 = vsel %vm1770, %v1772, %v1768
    %v1774 = vmul.f32 1.0, %v1773
    %v1775 = vrcp.pop %v611
    %v1776 = vmul.f32 %v611, %v1775
    %v1777 = vsub.f32 1.0, %v1776
    %v1778 = vmul.f32 %v1775, %v1777
    %v1779 = vadd.f32 %v1775, %v1778
    %vm1780 = vweird.f32 %v611
    %vm1781 = vweird.f32 %v1775
    %vm1782 = vmor %vm1780, %vm1781
    %v1783 = vsel %vm1782, %v1775, %v1779
    %v1784 = vand.u32 2147483647, %v611
    %vm1785 = vcmp.eq.f32.partialorder %v1784, 8.507059e+37
    %v1786 = vand.u32 %v611, 2147483648
    %v1787 = vor.u32 1.1754944e-38, %v1786
    %v1788 = vsel %vm1785, %v1787, %v1783
    %v1789 = vmul.f32 1.0, %v1788
    %v1790 = vrcp.pop %v612
    %v1791 = vmul.f32 %v612, %v1790
    %v1792 = vsub.f32 1.0, %v1791
    %v1793 = vmul.f32 %v1790, %v1792
    %v1794 = vadd.f32 %v1790, %v1793
    %vm1795 = vweird.f32 %v612
    %vm1796 = vweird.f32 %v1790
    %vm1797 = vmor %vm1795, %vm1796
    %v1798 = vsel %vm1797, %v1790, %v1794
    %v1799 = vand.u32 2147483647, %v612
    %vm1800 = vcmp.eq.f32.partialorder %v1799, 8.507059e+37
    %v1801 = vand.u32 %v612, 2147483648
    %v1802 = vor.u32 1.1754944e-38, %v1801
    %v1803 = vsel %vm1800, %v1802, %v1798
    %v1804 = vmul.f32 1.0, %v1803
    %v1805 = vrcp.pop %v613
    %v1806 = vmul.f32 %v613, %v1805
    %v1807 = vsub.f32 1.0, %v1806
    %v1808 = vmul.f32 %v1805, %v1807
    %v1809 = vadd.f32 %v1805, %v1808
    %vm1810 = vweird.f32 %v613
    %vm1811 = vweird.f32 %v1805
    %vm1812 = vmor %vm1810, %vm1811
    %v1813 = vsel %vm1812, %v1805, %v1809
    %v1814 = vand.u32 2147483647, %v613
    %vm1815 = vcmp.eq.f32.partialorder %v1814, 8.507059e+37
    %v1816 = vand.u32 %v613, 2147483648
    %v1817 = vor.u32 1.1754944e-38, %v1816
    %v1818 = vsel %vm1815, %v1817, %v1813
    %v1819 = vmul.f32 1.0, %v1818
    %v1820 = vrcp.pop %v614
    %v1821 = vmul.f32 %v614, %v1820
    %v1822 = vsub.f32 1.0, %v1821
    %v1823 = vmul.f32 %v1820, %v1822
    %v1824 = vadd.f32 %v1820, %v1823
    %vm1825 = vweird.f32 %v614
    %vm1826 = vweird.f32 %v1820
    %vm1827 = vmor %vm1825, %vm1826
    %v1828 = vsel %vm1827, %v1820, %v1824
    %v1829 = vand.u32 2147483647, %v614
    %vm1830 = vcmp.eq.f32.partialorder %v1829, 8.507059e+37
    %v1831 = vand.u32 %v614, 2147483648
    %v1832 = vor.u32 1.1754944e-38, %v1831
    %v1833 = vsel %vm1830, %v1832, %v1828
    %v1834 = vmul.f32 1.0, %v1833
    %v1835 = vrcp.pop %v615
    %v1836 = vmul.f32 %v615, %v1835
    %v1837 = vsub.f32 1.0, %v1836
    %v1838 = vmul.f32 %v1835, %v1837
    %v1839 = vadd.f32 %v1835, %v1838
    %vm1840 = vweird.f32 %v615
    %vm1841 = vweird.f32 %v1835
    %vm1842 = vmor %vm1840, %vm1841
    %v1843 = vsel %vm1842, %v1835, %v1839
    %v1844 = vand.u32 2147483647, %v615
    %vm1845 = vcmp.eq.f32.partialorder %v1844, 8.507059e+37
    %v1846 = vand.u32 %v615, 2147483648
    %v1847 = vor.u32 1.1754944e-38, %v1846
    %v1848 = vsel %vm1845, %v1847, %v1843
    %v1849 = vmul.f32 1.0, %v1848
    %v1850 = vrcp.pop %v616
    %v1851 = vmul.f32 %v616, %v1850
    %v1852 = vsub.f32 1.0, %v1851
    %v1853 = vmul.f32 %v1850, %v1852
    %v1854 = vadd.f32 %v1850, %v1853
    %vm1855 = vweird.f32 %v616
    %vm1856 = vweird.f32 %v1850
    %vm1857 = vmor %vm1855, %vm1856
    %v1858 = vsel %vm1857, %v1850, %v1854
    %v1859 = vand.u32 2147483647, %v616
    %vm1860 = vcmp.eq.f32.partialorder %v1859, 8.507059e+37
    %v1861 = vand.u32 %v616, 2147483648
    %v1862 = vor.u32 1.1754944e-38, %v1861
    %v1863 = vsel %vm1860, %v1862, %v1858
    %v1864 = vmul.f32 1.0, %v1863
    %v1865 = vrcp.pop %v617
    %v1866 = vmul.f32 %v617, %v1865
    %v1867 = vsub.f32 1.0, %v1866
    %v1868 = vmul.f32 %v1865, %v1867
    %v1869 = vadd.f32 %v1865, %v1868
    %vm1870 = vweird.f32 %v617
    %vm1871 = vweird.f32 %v1865
    %vm1872 = vmor %vm1870, %vm1871
    %v1873 = vsel %vm1872, %v1865, %v1869
    %v1874 = vand.u32 2147483647, %v617
    %vm1875 = vcmp.eq.f32.partialorder %v1874, 8.507059e+37
    %v1876 = vand.u32 %v617, 2147483648
    %v1877 = vor.u32 1.1754944e-38, %v1876
    %v1878 = vsel %vm1875, %v1877, %v1873
    %v1879 = vmul.f32 1.0, %v1878
    %v1880 = vrcp.pop %v618
    %v1881 = vmul.f32 %v618, %v1880
    %v1882 = vsub.f32 1.0, %v1881
    %v1883 = vmul.f32 %v1880, %v1882
    %v1884 = vadd.f32 %v1880, %v1883
    %vm1885 = vweird.f32 %v618
    %vm1886 = vweird.f32 %v1880
    %vm1887 = vmor %vm1885, %vm1886
    %v1888 = vsel %vm1887, %v1880, %v1884
    %v1889 = vand.u32 2147483647, %v618
    %vm1890 = vcmp.eq.f32.partialorder %v1889, 8.507059e+37
    %v1891 = vand.u32 %v618, 2147483648
    %v1892 = vor.u32 1.1754944e-38, %v1891
    %v1893 = vsel %vm1890, %v1892, %v1888
    %v1894 = vmul.f32 1.0, %v1893
    %v1895 = vrcp.pop %v619
    %v1896 = vmul.f32 %v619, %v1895
    %v1897 = vsub.f32 1.0, %v1896
    %v1898 = vmul.f32 %v1895, %v1897
    %v1899 = vadd.f32 %v1895, %v1898
    %vm1900 = vweird.f32 %v619
    %vm1901 = vweird.f32 %v1895
    %vm1902 = vmor %vm1900, %vm1901
    %v1903 = vsel %vm1902, %v1895, %v1899
    %v1904 = vand.u32 2147483647, %v619
    %vm1905 = vcmp.eq.f32.partialorder %v1904, 8.507059e+37
    %v1906 = vand.u32 %v619, 2147483648
    %v1907 = vor.u32 1.1754944e-38, %v1906
    %v1908 = vsel %vm1905, %v1907, %v1903
    %v1909 = vmul.f32 1.0, %v1908
    %v1910 = vrcp.pop %v620
    %v1911 = vmul.f32 %v620, %v1910
    %v1912 = vsub.f32 1.0, %v1911
    %v1913 = vmul.f32 %v1910, %v1912
    %v1914 = vadd.f32 %v1910, %v1913
    %vm1915 = vweird.f32 %v620
    %vm1916 = vweird.f32 %v1910
    %vm1917 = vmor %vm1915, %vm1916
    %v1918 = vsel %vm1917, %v1910, %v1914
    %v1919 = vand.u32 2147483647, %v620
    %vm1920 = vcmp.eq.f32.partialorder %v1919, 8.507059e+37
    %v1921 = vand.u32 %v620, 2147483648
    %v1922 = vor.u32 1.1754944e-38, %v1921
    %v1923 = vsel %vm1920, %v1922, %v1918
    %v1924 = vmul.f32 1.0, %v1923
    %v1925 = vrcp.pop %v621
    %v1926 = vmul.f32 %v621, %v1925
    %v1927 = vsub.f32 1.0, %v1926
    %v1928 = vmul.f32 %v1925, %v1927
    %v1929 = vadd.f32 %v1925, %v1928
    %vm1930 = vweird.f32 %v621
    %vm1931 = vweird.f32 %v1925
    %vm1932 = vmor %vm1930, %vm1931
    %v1933 = vsel %vm1932, %v1925, %v1929
    %v1934 = vand.u32 2147483647, %v621
    %vm1935 = vcmp.eq.f32.partialorder %v1934, 8.507059e+37
    %v1936 = vand.u32 %v621, 2147483648
    %v1937 = vor.u32 1.1754944e-38, %v1936
    %v1938 = vsel %vm1935, %v1937, %v1933
    %v1939 = vmul.f32 1.0, %v1938
    %v1940 = vrcp.pop %v622
    %v1941 = vmul.f32 %v622, %v1940
    %v1942 = vsub.f32 1.0, %v1941
    %v1943 = vmul.f32 %v1940, %v1942
    %v1944 = vadd.f32 %v1940, %v1943
    %vm1945 = vweird.f32 %v622
    %vm1946 = vweird.f32 %v1940
    %vm1947 = vmor %vm1945, %vm1946
    %v1948 = vsel %vm1947, %v1940, %v1944
    %v1949 = vand.u32 2147483647, %v622
    %vm1950 = vcmp.eq.f32.partialorder %v1949, 8.507059e+37
    %v1951 = vand.u32 %v622, 2147483648
    %v1952 = vor.u32 1.1754944e-38, %v1951
    %v1953 = vsel %vm1950, %v1952, %v1948
    %v1954 = vmul.f32 1.0, %v1953
    %v1955 = vrcp.pop %v623
    %v1956 = vmul.f32 %v623, %v1955
    %v1957 = vsub.f32 1.0, %v1956
    %v1958 = vmul.f32 %v1955, %v1957
    %v1959 = vadd.f32 %v1955, %v1958
    %vm1960 = vweird.f32 %v623
    %vm1961 = vweird.f32 %v1955
    %vm1962 = vmor %vm1960, %vm1961
    %v1963 = vsel %vm1962, %v1955, %v1959
    %v1964 = vand.u32 2147483647, %v623
    %vm1965 = vcmp.eq.f32.partialorder %v1964, 8.507059e+37
    %v1966 = vand.u32 %v623, 2147483648
    %v1967 = vor.u32 1.1754944e-38, %v1966
    %v1968 = vsel %vm1965, %v1967, %v1963
    %v1969 = vmul.f32 1.0, %v1968
    %v1970 = vrcp.pop %v624
    %v1971 = vmul.f32 %v624, %v1970
    %v1972 = vsub.f32 1.0, %v1971
    %v1973 = vmul.f32 %v1970, %v1972
    %v1974 = vadd.f32 %v1970, %v1973
    %vm1975 = vweird.f32 %v624
    %vm1976 = vweird.f32 %v1970
    %vm1977 = vmor %vm1975, %vm1976
    %v1978 = vsel %vm1977, %v1970, %v1974
    %v1979 = vand.u32 2147483647, %v624
    %vm1980 = vcmp.eq.f32.partialorder %v1979, 8.507059e+37
    %v1981 = vand.u32 %v624, 2147483648
    %v1982 = vor.u32 1.1754944e-38, %v1981
    %v1983 = vsel %vm1980, %v1982, %v1978
    %v1984 = vmul.f32 1.0, %v1983
    %v1985 = vrcp.pop %v625
    %v1986 = vmul.f32 %v625, %v1985
    %v1987 = vsub.f32 1.0, %v1986
    %v1988 = vmul.f32 %v1985, %v1987
    %v1989 = vadd.f32 %v1985, %v1988
    %vm1990 = vweird.f32 %v625
    %vm1991 = vweird.f32 %v1985
    %vm1992 = vmor %vm1990, %vm1991
    %v1993 = vsel %vm1992, %v1985, %v1989
    %v1994 = vand.u32 2147483647, %v625
    %vm1995 = vcmp.eq.f32.partialorder %v1994, 8.507059e+37
    %v1996 = vand.u32 %v625, 2147483648
    %v1997 = vor.u32 1.1754944e-38, %v1996
    %v1998 = vsel %vm1995, %v1997, %v1993
    %v1999 = vmul.f32 1.0, %v1998
    %v2000 = vrcp.pop %v626
    %v2001 = vmul.f32 %v626, %v2000
    %v2002 = vsub.f32 1.0, %v2001
    %v2003 = vmul.f32 %v2000, %v2002
    %v2004 = vadd.f32 %v2000, %v2003
    %vm2005 = vweird.f32 %v626
    %vm2006 = vweird.f32 %v2000
    %vm2007 = vmor %vm2005, %vm2006
    %v2008 = vsel %vm2007, %v2000, %v2004
    %v2009 = vand.u32 2147483647, %v626
    %vm2010 = vcmp.eq.f32.partialorder %v2009, 8.507059e+37
    %v2011 = vand.u32 %v626, 2147483648
    %v2012 = vor.u32 1.1754944e-38, %v2011
    %v2013 = vsel %vm2010, %v2012, %v2008
    %v2014 = vmul.f32 1.0, %v2013
    %v2015 = vrcp.pop %v627
    %v2016 = vmul.f32 %v627, %v2015
    %v2017 = vsub.f32 1.0, %v2016
    %v2018 = vmul.f32 %v2015, %v2017
    %v2019 = vadd.f32 %v2015, %v2018
    %vm2020 = vweird.f32 %v627
    %vm2021 = vweird.f32 %v2015
    %vm2022 = vmor %vm2020, %vm2021
    %v2023 = vsel %vm2022, %v2015, %v2019
    %v2024 = vand.u32 2147483647, %v627
    %vm2025 = vcmp.eq.f32.partialorder %v2024, 8.507059e+37
    %v2026 = vand.u32 %v627, 2147483648
    %v2027 = vor.u32 1.1754944e-38, %v2026
    %v2028 = vsel %vm2025, %v2027, %v2023
    %v2029 = vmul.f32 1.0, %v2028
    %v2030 = vrcp.pop %v628
    %v2031 = vmul.f32 %v628, %v2030
    %v2032 = vsub.f32 1.0, %v2031
    %v2033 = vmul.f32 %v2030, %v2032
    %v2034 = vadd.f32 %v2030, %v2033
    %vm2035 = vweird.f32 %v628
    %vm2036 = vweird.f32 %v2030
    %vm2037 = vmor %vm2035, %vm2036
    %v2038 = vsel %vm2037, %v2030, %v2034
    %v2039 = vand.u32 2147483647, %v628
    %vm2040 = vcmp.eq.f32.partialorder %v2039, 8.507059e+37
    %v2041 = vand.u32 %v628, 2147483648
    %v2042 = vor.u32 1.1754944e-38, %v2041
    %v2043 = vsel %vm2040, %v2042, %v2038
    %v2044 = vmul.f32 1.0, %v2043
    %v2045 = vrcp.pop %v629
    %v2046 = vmul.f32 %v629, %v2045
    %v2047 = vsub.f32 1.0, %v2046
    %v2048 = vmul.f32 %v2045, %v2047
    %v2049 = vadd.f32 %v2045, %v2048
    %vm2050 = vweird.f32 %v629
    %vm2051 = vweird.f32 %v2045
    %vm2052 = vmor %vm2050, %vm2051
    %v2053 = vsel %vm2052, %v2045, %v2049
    %v2054 = vand.u32 2147483647, %v629
    %vm2055 = vcmp.eq.f32.partialorder %v2054, 8.507059e+37
    %v2056 = vand.u32 %v629, 2147483648
    %v2057 = vor.u32 1.1754944e-38, %v2056
    %v2058 = vsel %vm2055, %v2057, %v2053
    %v2059 = vmul.f32 1.0, %v2058
    %v2060 = vrcp.pop %v630
    %v2061 = vmul.f32 %v630, %v2060
    %v2062 = vsub.f32 1.0, %v2061
    %v2063 = vmul.f32 %v2060, %v2062
    %v2064 = vadd.f32 %v2060, %v2063
    %vm2065 = vweird.f32 %v630
    %vm2066 = vweird.f32 %v2060
    %vm2067 = vmor %vm2065, %vm2066
    %v2068 = vsel %vm2067, %v2060, %v2064
    %v2069 = vand.u32 2147483647, %v630
    %vm2070 = vcmp.eq.f32.partialorder %v2069, 8.507059e+37
    %v2071 = vand.u32 %v630, 2147483648
    %v2072 = vor.u32 1.1754944e-38, %v2071
    %v2073 = vsel %vm2070, %v2072, %v2068
    %v2074 = vmul.f32 1.0, %v2073
    %v2075 = vrcp.pop %v631
    %v2076 = vmul.f32 %v631, %v2075
    %v2077 = vsub.f32 1.0, %v2076
    %v2078 = vmul.f32 %v2075, %v2077
    %v2079 = vadd.f32 %v2075, %v2078
    %vm2080 = vweird.f32 %v631
    %vm2081 = vweird.f32 %v2075
    %vm2082 = vmor %vm2080, %vm2081
    %v2083 = vsel %vm2082, %v2075, %v2079
    %v2084 = vand.u32 2147483647, %v631
    %vm2085 = vcmp.eq.f32.partialorder %v2084, 8.507059e+37
    %v2086 = vand.u32 %v631, 2147483648
    %v2087 = vor.u32 1.1754944e-38, %v2086
    %v2088 = vsel %vm2085, %v2087, %v2083
    %v2089 = vmul.f32 1.0, %v2088
    %v2090 = vrcp.pop %v632
    %v2091 = vmul.f32 %v632, %v2090
    %v2092 = vsub.f32 1.0, %v2091
    %v2093 = vmul.f32 %v2090, %v2092
    %v2094 = vadd.f32 %v2090, %v2093
    %vm2095 = vweird.f32 %v632
    %vm2096 = vweird.f32 %v2090
    %vm2097 = vmor %vm2095, %vm2096
    %v2098 = vsel %vm2097, %v2090, %v2094
    %v2099 = vand.u32 2147483647, %v632
    %vm2100 = vcmp.eq.f32.partialorder %v2099, 8.507059e+37
    %v2101 = vand.u32 %v632, 2147483648
    %v2102 = vor.u32 1.1754944e-38, %v2101
    %v2103 = vsel %vm2100, %v2102, %v2098
    %v2104 = vmul.f32 1.0, %v2103
    %v2105 = vrcp.pop %v633
    %v2106 = vmul.f32 %v633, %v2105
    %v2107 = vsub.f32 1.0, %v2106
    %v2108 = vmul.f32 %v2105, %v2107
    %v2109 = vadd.f32 %v2105, %v2108
    %vm2110 = vweird.f32 %v633
    %vm2111 = vweird.f32 %v2105
    %vm2112 = vmor %vm2110, %vm2111
    %v2113 = vsel %vm2112, %v2105, %v2109
    %v2114 = vand.u32 2147483647, %v633
    %vm2115 = vcmp.eq.f32.partialorder %v2114, 8.507059e+37
    %v2116 = vand.u32 %v633, 2147483648
    %v2117 = vor.u32 1.1754944e-38, %v2116
    %v2118 = vsel %vm2115, %v2117, %v2113
    %v2119 = vmul.f32 1.0, %v2118
    %v2120 = vrcp.pop %v634
    %v2121 = vmul.f32 %v634, %v2120
    %v2122 = vsub.f32 1.0, %v2121
    %v2123 = vmul.f32 %v2120, %v2122
    %v2124 = vadd.f32 %v2120, %v2123
    %vm2125 = vweird.f32 %v634
    %vm2126 = vweird.f32 %v2120
    %vm2127 = vmor %vm2125, %vm2126
    %v2128 = vsel %vm2127, %v2120, %v2124
    %v2129 = vand.u32 2147483647, %v634
    %vm2130 = vcmp.eq.f32.partialorder %v2129, 8.507059e+37
    %v2131 = vand.u32 %v634, 2147483648
    %v2132 = vor.u32 1.1754944e-38, %v2131
    %v2133 = vsel %vm2130, %v2132, %v2128
    %v2134 = vmul.f32 1.0, %v2133
    %v2135 = vrcp.pop %v635
    %v2136 = vmul.f32 %v635, %v2135
    %v2137 = vsub.f32 1.0, %v2136
    %v2138 = vmul.f32 %v2135, %v2137
    %v2139 = vadd.f32 %v2135, %v2138
    %vm2140 = vweird.f32 %v635
    %vm2141 = vweird.f32 %v2135
    %vm2142 = vmor %vm2140, %vm2141
    %v2143 = vsel %vm2142, %v2135, %v2139
    %v2144 = vand.u32 2147483647, %v635
    %vm2145 = vcmp.eq.f32.partialorder %v2144, 8.507059e+37
    %v2146 = vand.u32 %v635, 2147483648
    %v2147 = vor.u32 1.1754944e-38, %v2146
    %v2148 = vsel %vm2145, %v2147, %v2143
    %v2149 = vmul.f32 1.0, %v2148
    %v2150 = vrcp.pop %v636
    %v2151 = vmul.f32 %v636, %v2150
    %v2152 = vsub.f32 1.0, %v2151
    %v2153 = vmul.f32 %v2150, %v2152
    %v2154 = vadd.f32 %v2150, %v2153
    %vm2155 = vweird.f32 %v636
    %vm2156 = vweird.f32 %v2150
    %vm2157 = vmor %vm2155, %vm2156
    %v2158 = vsel %vm2157, %v2150, %v2154
    %v2159 = vand.u32 2147483647, %v636
    %vm2160 = vcmp.eq.f32.partialorder %v2159, 8.507059e+37
    %v2161 = vand.u32 %v636, 2147483648
    %v2162 = vor.u32 1.1754944e-38, %v2161
    %v2163 = vsel %vm2160, %v2162, %v2158
    %v2164 = vmul.f32 1.0, %v2163
    %v2165 = vrcp.pop %v637
    %v2166 = vmul.f32 %v637, %v2165
    %v2167 = vsub.f32 1.0, %v2166
    %v2168 = vmul.f32 %v2165, %v2167
    %v2169 = vadd.f32 %v2165, %v2168
    %vm2170 = vweird.f32 %v637
    %vm2171 = vweird.f32 %v2165
    %vm2172 = vmor %vm2170, %vm2171
    %v2173 = vsel %vm2172, %v2165, %v2169
    %v2174 = vand.u32 2147483647, %v637
    %vm2175 = vcmp.eq.f32.partialorder %v2174, 8.507059e+37
    %v2176 = vand.u32 %v637, 2147483648
    %v2177 = vor.u32 1.1754944e-38, %v2176
    %v2178 = vsel %vm2175, %v2177, %v2173
    %v2179 = vmul.f32 1.0, %v2178
    %v2180 = vrcp.pop %v638
    %v2181 = vmul.f32 %v638, %v2180
    %v2182 = vsub.f32 1.0, %v2181
    %v2183 = vmul.f32 %v2180, %v2182
    %v2184 = vadd.f32 %v2180, %v2183
    %vm2185 = vweird.f32 %v638
    %vm2186 = vweird.f32 %v2180
    %vm2187 = vmor %vm2185, %vm2186
    %v2188 = vsel %vm2187, %v2180, %v2184
    %v2189 = vand.u32 2147483647, %v638
    %vm2190 = vcmp.eq.f32.partialorder %v2189, 8.507059e+37
    %v2191 = vand.u32 %v638, 2147483648
    %v2192 = vor.u32 1.1754944e-38, %v2191
    %v2193 = vsel %vm2190, %v2192, %v2188
    %v2194 = vmul.f32 1.0, %v2193
    %v2195 = vrcp.pop %v639
    %v2196 = vmul.f32 %v639, %v2195
    %v2197 = vsub.f32 1.0, %v2196
    %v2198 = vmul.f32 %v2195, %v2197
    %v2199 = vadd.f32 %v2195, %v2198
    %vm2200 = vweird.f32 %v639
    %vm2201 = vweird.f32 %v2195
    %vm2202 = vmor %vm2200, %vm2201
    %v2203 = vsel %vm2202, %v2195, %v2199
    %v2204 = vand.u32 2147483647, %v639
    %vm2205 = vcmp.eq.f32.partialorder %v2204, 8.507059e+37
    %v2206 = vand.u32 %v639, 2147483648
    %v2207 = vor.u32 1.1754944e-38, %v2206
    %v2208 = vsel %vm2205, %v2207, %v2203
    %v2209 = vmul.f32 1.0, %v2208
    %v2210 = vrcp.pop %v640
    %v2211 = vmul.f32 %v640, %v2210
    %v2212 = vsub.f32 1.0, %v2211
    %v2213 = vmul.f32 %v2210, %v2212
    %v2214 = vadd.f32 %v2210, %v2213
    %vm2215 = vweird.f32 %v640
    %vm2216 = vweird.f32 %v2210
    %vm2217 = vmor %vm2215, %vm2216
    %v2218 = vsel %vm2217, %v2210, %v2214
    %v2219 = vand.u32 2147483647, %v640
    %vm2220 = vcmp.eq.f32.partialorder %v2219, 8.507059e+37
    %v2221 = vand.u32 %v640, 2147483648
    %v2222 = vor.u32 1.1754944e-38, %v2221
    %v2223 = vsel %vm2220, %v2222, %v2218
    %v2224 = vmul.f32 1.0, %v2223
    %v2225 = vrcp.pop %v641
    %v2226 = vmul.f32 %v641, %v2225
    %v2227 = vsub.f32 1.0, %v2226
    %v2228 = vmul.f32 %v2225, %v2227
    %v2229 = vadd.f32 %v2225, %v2228
    %vm2230 = vweird.f32 %v641
    %vm2231 = vweird.f32 %v2225
    %vm2232 = vmor %vm2230, %vm2231
    %v2233 = vsel %vm2232, %v2225, %v2229
    %v2234 = vand.u32 2147483647, %v641
    %vm2235 = vcmp.eq.f32.partialorder %v2234, 8.507059e+37
    %v2236 = vand.u32 %v641, 2147483648
    %v2237 = vor.u32 1.1754944e-38, %v2236
    %v2238 = vsel %vm2235, %v2237, %v2233
    %v2239 = vmul.f32 1.0, %v2238
    %v2240 = vrcp.pop %v642
    %v2241 = vmul.f32 %v642, %v2240
    %v2242 = vsub.f32 1.0, %v2241
    %v2243 = vmul.f32 %v2240, %v2242
    %v2244 = vadd.f32 %v2240, %v2243
    %vm2245 = vweird.f32 %v642
    %vm2246 = vweird.f32 %v2240
    %vm2247 = vmor %vm2245, %vm2246
    %v2248 = vsel %vm2247, %v2240, %v2244
    %v2249 = vand.u32 2147483647, %v642
    %vm2250 = vcmp.eq.f32.partialorder %v2249, 8.507059e+37
    %v2251 = vand.u32 %v642, 2147483648
    %v2252 = vor.u32 1.1754944e-38, %v2251
    %v2253 = vsel %vm2250, %v2252, %v2248
    %v2254 = vmul.f32 1.0, %v2253
    %v2255 = vrcp.pop %v643
    %v2256 = vmul.f32 %v643, %v2255
    %v2257 = vsub.f32 1.0, %v2256
    %v2258 = vmul.f32 %v2255, %v2257
    %v2259 = vadd.f32 %v2255, %v2258
    %vm2260 = vweird.f32 %v643
    %vm2261 = vweird.f32 %v2255
    %vm2262 = vmor %vm2260, %vm2261
    %v2263 = vsel %vm2262, %v2255, %v2259
    %v2264 = vand.u32 2147483647, %v643
    %vm2265 = vcmp.eq.f32.partialorder %v2264, 8.507059e+37
    %v2266 = vand.u32 %v643, 2147483648
    %v2267 = vor.u32 1.1754944e-38, %v2266
    %v2268 = vsel %vm2265, %v2267, %v2263
    %v2269 = vmul.f32 1.0, %v2268
    %v2270 = vrcp.pop %v644
    %v2271 = vmul.f32 %v644, %v2270
    %v2272 = vsub.f32 1.0, %v2271
    %v2273 = vmul.f32 %v2270, %v2272
    %v2274 = vadd.f32 %v2270, %v2273
    %vm2275 = vweird.f32 %v644
    %vm2276 = vweird.f32 %v2270
    %vm2277 = vmor %vm2275, %vm2276
    %v2278 = vsel %vm2277, %v2270, %v2274
    %v2279 = vand.u32 2147483647, %v644
    %vm2280 = vcmp.eq.f32.partialorder %v2279, 8.507059e+37
    %v2281 = vand.u32 %v644, 2147483648
    %v2282 = vor.u32 1.1754944e-38, %v2281
    %v2283 = vsel %vm2280, %v2282, %v2278
    %v2284 = vmul.f32 1.0, %v2283
    %v2285 = vrcp.pop %v645
    %v2286 = vmul.f32 %v645, %v2285
    %v2287 = vsub.f32 1.0, %v2286
    %v2288 = vmul.f32 %v2285, %v2287
    %v2289 = vadd.f32 %v2285, %v2288
    %vm2290 = vweird.f32 %v645
    %vm2291 = vweird.f32 %v2285
    %vm2292 = vmor %vm2290, %vm2291
    %v2293 = vsel %vm2292, %v2285, %v2289
    %v2294 = vand.u32 2147483647, %v645
    %vm2295 = vcmp.eq.f32.partialorder %v2294, 8.507059e+37
    %v2296 = vand.u32 %v645, 2147483648
    %v2297 = vor.u32 1.1754944e-38, %v2296
    %v2298 = vsel %vm2295, %v2297, %v2293
    %v2299 = vmul.f32 1.0, %v2298
    %v2300 = vrcp.pop %v646
    %v2301 = vmul.f32 %v646, %v2300
    %v2302 = vsub.f32 1.0, %v2301
    %v2303 = vmul.f32 %v2300, %v2302
    %v2304 = vadd.f32 %v2300, %v2303
    %vm2305 = vweird.f32 %v646
    %vm2306 = vweird.f32 %v2300
    %vm2307 = vmor %vm2305, %vm2306
    %v2308 = vsel %vm2307, %v2300, %v2304
    %v2309 = vand.u32 2147483647, %v646
    %vm2310 = vcmp.eq.f32.partialorder %v2309, 8.507059e+37
    %v2311 = vand.u32 %v646, 2147483648
    %v2312 = vor.u32 1.1754944e-38, %v2311
    %v2313 = vsel %vm2310, %v2312, %v2308
    %v2314 = vmul.f32 1.0, %v2313
    %v2315 = vrcp.pop %v647
    %v2316 = vmul.f32 %v647, %v2315
    %v2317 = vsub.f32 1.0, %v2316
    %v2318 = vmul.f32 %v2315, %v2317
    %v2319 = vadd.f32 %v2315, %v2318
    %vm2320 = vweird.f32 %v647
    %vm2321 = vweird.f32 %v2315
    %vm2322 = vmor %vm2320, %vm2321
    %v2323 = vsel %vm2322, %v2315, %v2319
    %v2324 = vand.u32 2147483647, %v647
    %vm2325 = vcmp.eq.f32.partialorder %v2324, 8.507059e+37
    %v2326 = vand.u32 %v647, 2147483648
    %v2327 = vor.u32 1.1754944e-38, %v2326
    %v2328 = vsel %vm2325, %v2327, %v2323
    %v2329 = vmul.f32 1.0, %v2328
    %v2330 = vrcp.pop %v648
    %v2331 = vmul.f32 %v648, %v2330
    %v2332 = vsub.f32 1.0, %v2331
    %v2333 = vmul.f32 %v2330, %v2332
    %v2334 = vadd.f32 %v2330, %v2333
    %vm2335 = vweird.f32 %v648
    %vm2336 = vweird.f32 %v2330
    %vm2337 = vmor %vm2335, %vm2336
    %v2338 = vsel %vm2337, %v2330, %v2334
    %v2339 = vand.u32 2147483647, %v648
    %vm2340 = vcmp.eq.f32.partialorder %v2339, 8.507059e+37
    %v2341 = vand.u32 %v648, 2147483648
    %v2342 = vor.u32 1.1754944e-38, %v2341
    %v2343 = vsel %vm2340, %v2342, %v2338
    %v2344 = vmul.f32 1.0, %v2343
    %v2345 = vrcp.pop %v649
    %v2346 = vmul.f32 %v649, %v2345
    %v2347 = vsub.f32 1.0, %v2346
    %v2348 = vmul.f32 %v2345, %v2347
    %v2349 = vadd.f32 %v2345, %v2348
    %vm2350 = vweird.f32 %v649
    %vm2351 = vweird.f32 %v2345
    %vm2352 = vmor %vm2350, %vm2351
    %v2353 = vsel %vm2352, %v2345, %v2349
    %v2354 = vand.u32 2147483647, %v649
    %vm2355 = vcmp.eq.f32.partialorder %v2354, 8.507059e+37
    %v2356 = vand.u32 %v649, 2147483648
    %v2357 = vor.u32 1.1754944e-38, %v2356
    %v2358 = vsel %vm2355, %v2357, %v2353
    %v2359 = vmul.f32 1.0, %v2358
    %v2360 = vrcp.pop %v650
    %v2361 = vmul.f32 %v650, %v2360
    %v2362 = vsub.f32 1.0, %v2361
    %v2363 = vmul.f32 %v2360, %v2362
    %v2364 = vadd.f32 %v2360, %v2363
    %vm2365 = vweird.f32 %v650
    %vm2366 = vweird.f32 %v2360
    %vm2367 = vmor %vm2365, %vm2366
    %v2368 = vsel %vm2367, %v2360, %v2364
    %v2369 = vand.u32 2147483647, %v650
    %vm2370 = vcmp.eq.f32.partialorder %v2369, 8.507059e+37
    %v2371 = vand.u32 %v650, 2147483648
    %v2372 = vor.u32 1.1754944e-38, %v2371
    %v2373 = vsel %vm2370, %v2372, %v2368
    %v2374 = vmul.f32 1.0, %v2373
    %v2375 = vrcp.pop %v651
    %v2376 = vmul.f32 %v651, %v2375
    %v2377 = vsub.f32 1.0, %v2376
    %v2378 = vmul.f32 %v2375, %v2377
    %v2379 = vadd.f32 %v2375, %v2378
    %vm2380 = vweird.f32 %v651
    %vm2381 = vweird.f32 %v2375
    %vm2382 = vmor %vm2380, %vm2381
    %v2383 = vsel %vm2382, %v2375, %v2379
    %v2384 = vand.u32 2147483647, %v651
    %vm2385 = vcmp.eq.f32.partialorder %v2384, 8.507059e+37
    %v2386 = vand.u32 %v651, 2147483648
    %v2387 = vor.u32 1.1754944e-38, %v2386
    %v2388 = vsel %vm2385, %v2387, %v2383
    %v2389 = vmul.f32 1.0, %v2388
    %v2390 = vrcp.pop %v652
    %v2391 = vmul.f32 %v652, %v2390
    %v2392 = vsub.f32 1.0, %v2391
    %v2393 = vmul.f32 %v2390, %v2392
    %v2394 = vadd.f32 %v2390, %v2393
    %vm2395 = vweird.f32 %v652
    %vm2396 = vweird.f32 %v2390
    %vm2397 = vmor %vm2395, %vm2396
    %v2398 = vsel %vm2397, %v2390, %v2394
    %v2399 = vand.u32 2147483647, %v652
    %vm2400 = vcmp.eq.f32.partialorder %v2399, 8.507059e+37
    %v2401 = vand.u32 %v652, 2147483648
    %v2402 = vor.u32 1.1754944e-38, %v2401
    %v2403 = vsel %vm2400, %v2402, %v2398
    %v2404 = vmul.f32 1.0, %v2403
    %v2405 = vrcp.pop %v653
    %v2406 = vmul.f32 %v653, %v2405
    %v2407 = vsub.f32 1.0, %v2406
    %v2408 = vmul.f32 %v2405, %v2407
    %v2409 = vadd.f32 %v2405, %v2408
    %vm2410 = vweird.f32 %v653
    %vm2411 = vweird.f32 %v2405
    %vm2412 = vmor %vm2410, %vm2411
    %v2413 = vsel %vm2412, %v2405, %v2409
    %v2414 = vand.u32 2147483647, %v653
    %vm2415 = vcmp.eq.f32.partialorder %v2414, 8.507059e+37
    %v2416 = vand.u32 %v653, 2147483648
    %v2417 = vor.u32 1.1754944e-38, %v2416
    %v2418 = vsel %vm2415, %v2417, %v2413
    %v2419 = vmul.f32 1.0, %v2418
    %v2420 = vrcp.pop %v654
    %v2421 = vmul.f32 %v654, %v2420
    %v2422 = vsub.f32 1.0, %v2421
    %v2423 = vmul.f32 %v2420, %v2422
    %v2424 = vadd.f32 %v2420, %v2423
    %vm2425 = vweird.f32 %v654
    %vm2426 = vweird.f32 %v2420
    %vm2427 = vmor %vm2425, %vm2426
    %v2428 = vsel %vm2427, %v2420, %v2424
    %v2429 = vand.u32 2147483647, %v654
    %vm2430 = vcmp.eq.f32.partialorder %v2429, 8.507059e+37
    %v2431 = vand.u32 %v654, 2147483648
    %v2432 = vor.u32 1.1754944e-38, %v2431
    %v2433 = vsel %vm2430, %v2432, %v2428
    %v2434 = vmul.f32 1.0, %v2433
    %v2435 = vrcp.pop %v655
    %v2436 = vmul.f32 %v655, %v2435
    %v2437 = vsub.f32 1.0, %v2436
    %v2438 = vmul.f32 %v2435, %v2437
    %v2439 = vadd.f32 %v2435, %v2438
    %vm2440 = vweird.f32 %v655
    %vm2441 = vweird.f32 %v2435
    %vm2442 = vmor %vm2440, %vm2441
    %v2443 = vsel %vm2442, %v2435, %v2439
    %v2444 = vand.u32 2147483647, %v655
    %vm2445 = vcmp.eq.f32.partialorder %v2444, 8.507059e+37
    %v2446 = vand.u32 %v655, 2147483648
    %v2447 = vor.u32 1.1754944e-38, %v2446
    %v2448 = vsel %vm2445, %v2447, %v2443
    %v2449 = vmul.f32 1.0, %v2448
    %v2450 = vrcp.pop %v656
    %v2451 = vmul.f32 %v656, %v2450
    %v2452 = vsub.f32 1.0, %v2451
    %v2453 = vmul.f32 %v2450, %v2452
    %v2454 = vadd.f32 %v2450, %v2453
    %vm2455 = vweird.f32 %v656
    %vm2456 = vweird.f32 %v2450
    %vm2457 = vmor %vm2455, %vm2456
    %v2458 = vsel %vm2457, %v2450, %v2454
    %v2459 = vand.u32 2147483647, %v656
    %vm2460 = vcmp.eq.f32.partialorder %v2459, 8.507059e+37
    %v2461 = vand.u32 %v656, 2147483648
    %v2462 = vor.u32 1.1754944e-38, %v2461
    %v2463 = vsel %vm2460, %v2462, %v2458
    %v2464 = vmul.f32 1.0, %v2463
    %v2465 = vrcp.pop %v657
    %v2466 = vmul.f32 %v657, %v2465
    %v2467 = vsub.f32 1.0, %v2466
    %v2468 = vmul.f32 %v2465, %v2467
    %v2469 = vadd.f32 %v2465, %v2468
    %vm2470 = vweird.f32 %v657
    %vm2471 = vweird.f32 %v2465
    %vm2472 = vmor %vm2470, %vm2471
    %v2473 = vsel %vm2472, %v2465, %v2469
    %v2474 = vand.u32 2147483647, %v657
    %vm2475 = vcmp.eq.f32.partialorder %v2474, 8.507059e+37
    %v2476 = vand.u32 %v657, 2147483648
    %v2477 = vor.u32 1.1754944e-38, %v2476
    %v2478 = vsel %vm2475, %v2477, %v2473
    %v2479 = vmul.f32 1.0, %v2478
    %v2480 = vrcp.pop %v658
    %v2481 = vmul.f32 %v658, %v2480
    %v2482 = vsub.f32 1.0, %v2481
    %v2483 = vmul.f32 %v2480, %v2482
    %v2484 = vadd.f32 %v2480, %v2483
    %vm2485 = vweird.f32 %v658
    %vm2486 = vweird.f32 %v2480
    %vm2487 = vmor %vm2485, %vm2486
    %v2488 = vsel %vm2487, %v2480, %v2484
    %v2489 = vand.u32 2147483647, %v658
    %vm2490 = vcmp.eq.f32.partialorder %v2489, 8.507059e+37
    %v2491 = vand.u32 %v658, 2147483648
    %v2492 = vor.u32 1.1754944e-38, %v2491
    %v2493 = vsel %vm2490, %v2492, %v2488
    %v2494 = vmul.f32 1.0, %v2493
    %v2495 = vrcp.pop %v659
    %v2496 = vmul.f32 %v659, %v2495
    %v2497 = vsub.f32 1.0, %v2496
    %v2498 = vmul.f32 %v2495, %v2497
    %v2499 = vadd.f32 %v2495, %v2498
    %vm2500 = vweird.f32 %v659
    %vm2501 = vweird.f32 %v2495
    %vm2502 = vmor %vm2500, %vm2501
    %v2503 = vsel %vm2502, %v2495, %v2499
    %v2504 = vand.u32 2147483647, %v659
    %vm2505 = vcmp.eq.f32.partialorder %v2504, 8.507059e+37
    %v2506 = vand.u32 %v659, 2147483648
    %v2507 = vor.u32 1.1754944e-38, %v2506
    %v2508 = vsel %vm2505, %v2507, %v2503
    %v2509 = vmul.f32 1.0, %v2508
    %v2510 = vrcp.pop %v660
    %v2511 = vmul.f32 %v660, %v2510
    %v2512 = vsub.f32 1.0, %v2511
    %v2513 = vmul.f32 %v2510, %v2512
    %v2514 = vadd.f32 %v2510, %v2513
    %vm2515 = vweird.f32 %v660
    %vm2516 = vweird.f32 %v2510
    %vm2517 = vmor %vm2515, %vm2516
    %v2518 = vsel %vm2517, %v2510, %v2514
    %v2519 = vand.u32 2147483647, %v660
    %vm2520 = vcmp.eq.f32.partialorder %v2519, 8.507059e+37
    %v2521 = vand.u32 %v660, 2147483648
    %v2522 = vor.u32 1.1754944e-38, %v2521
    %v2523 = vsel %vm2520, %v2522, %v2518
    %v2524 = vmul.f32 1.0, %v2523
    %v2525 = vrcp.pop %v661
    %v2526 = vmul.f32 %v661, %v2525
    %v2527 = vsub.f32 1.0, %v2526
    %v2528 = vmul.f32 %v2525, %v2527
    %v2529 = vadd.f32 %v2525, %v2528
    %vm2530 = vweird.f32 %v661
    %vm2531 = vweird.f32 %v2525
    %vm2532 = vmor %vm2530, %vm2531
    %v2533 = vsel %vm2532, %v2525, %v2529
    %v2534 = vand.u32 2147483647, %v661
    %vm2535 = vcmp.eq.f32.partialorder %v2534, 8.507059e+37
    %v2536 = vand.u32 %v661, 2147483648
    %v2537 = vor.u32 1.1754944e-38, %v2536
    %v2538 = vsel %vm2535, %v2537, %v2533
    %v2539 = vmul.f32 1.0, %v2538
    %v2540 = vrcp.pop %v662
    %v2541 = vmul.f32 %v662, %v2540
    %v2542 = vsub.f32 1.0, %v2541
    %v2543 = vmul.f32 %v2540, %v2542
    %v2544 = vadd.f32 %v2540, %v2543
    %vm2545 = vweird.f32 %v662
    %vm2546 = vweird.f32 %v2540
    %vm2547 = vmor %vm2545, %vm2546
    %v2548 = vsel %vm2547, %v2540, %v2544
    %v2549 = vand.u32 2147483647, %v662
    %vm2550 = vcmp.eq.f32.partialorder %v2549, 8.507059e+37
    %v2551 = vand.u32 %v662, 2147483648
    %v2552 = vor.u32 1.1754944e-38, %v2551
    %v2553 = vsel %vm2550, %v2552, %v2548
    %v2554 = vmul.f32 1.0, %v2553
    %v2555 = vrcp.pop %v663
    %v2556 = vmul.f32 %v663, %v2555
    %v2557 = vsub.f32 1.0, %v2556
    %v2558 = vmul.f32 %v2555, %v2557
    %v2559 = vadd.f32 %v2555, %v2558
    %vm2560 = vweird.f32 %v663
    %vm2561 = vweird.f32 %v2555
    %vm2562 = vmor %vm2560, %vm2561
    %v2563 = vsel %vm2562, %v2555, %v2559
    %v2564 = vand.u32 2147483647, %v663
    %vm2565 = vcmp.eq.f32.partialorder %v2564, 8.507059e+37
    %v2566 = vand.u32 %v663, 2147483648
    %v2567 = vor.u32 1.1754944e-38, %v2566
    %v2568 = vsel %vm2565, %v2567, %v2563
    %v2569 = vmul.f32 1.0, %v2568
    %v2570 = vrcp.pop %v664
    %v2571 = vmul.f32 %v664, %v2570
    %v2572 = vsub.f32 1.0, %v2571
    %v2573 = vmul.f32 %v2570, %v2572
    %v2574 = vadd.f32 %v2570, %v2573
    %vm2575 = vweird.f32 %v664
    %vm2576 = vweird.f32 %v2570
    %vm2577 = vmor %vm2575, %vm2576
    %v2578 = vsel %vm2577, %v2570, %v2574
    %v2579 = vand.u32 2147483647, %v664
    %vm2580 = vcmp.eq.f32.partialorder %v2579, 8.507059e+37
    %v2581 = vand.u32 %v664, 2147483648
    %v2582 = vor.u32 1.1754944e-38, %v2581
    %v2583 = vsel %vm2580, %v2582, %v2578
    %v2584 = vmul.f32 1.0, %v2583
    %v2585 = vmul.f32 %v679, 2.5
    %v2586 = vmul.f32 %v694, 2.5
    %v2587 = vmul.f32 %v709, 2.5
    %v2588 = vmul.f32 %v724, 2.5
    %v2589 = vmul.f32 %v739, 2.5
    %v2590 = vmul.f32 %v754, 2.5
    %v2591 = vmul.f32 %v769, 2.5
    %v2592 = vmul.f32 %v784, 2.5
    %v2593 = vmul.f32 %v799, 2.5
    %v2594 = vmul.f32 %v814, 2.5
    %v2595 = vmul.f32 %v829, 2.5
    %v2596 = vmul.f32 %v844, 2.5
    %v2597 = vmul.f32 %v859, 2.5
    %v2598 = vmul.f32 %v874, 2.5
    %v2599 = vmul.f32 %v889, 2.5
    %v2600 = vmul.f32 %v904, 2.5
    %v2601 = vmul.f32 %v919, 2.5
    %v2602 = vmul.f32 %v934, 2.5
    %v2603 = vmul.f32 %v949, 2.5
    %v2604 = vmul.f32 %v964, 2.5
    %v2605 = vmul.f32 %v979, 2.5
    %v2606 = vmul.f32 %v994, 2.5
    %v2607 = vmul.f32 %v1009, 2.5
    %v2608 = vmul.f32 %v1024, 2.5
    %v2609 = vmul.f32 %v1039, 2.5
    %v2610 = vmul.f32 %v1054, 2.5
    %v2611 = vmul.f32 %v1069, 2.5
    %v2612 = vmul.f32 %v1084, 2.5
    %v2613 = vmul.f32 %v1099, 2.5
    %v2614 = vmul.f32 %v1114, 2.5
    %v2615 = vmul.f32 %v1129, 2.5
    %v2616 = vmul.f32 %v1144, 2.5
    %v2617 = vmul.f32 %v1159, 2.5
    %v2618 = vmul.f32 %v1174, 2.5
    %v2619 = vmul.f32 %v1189, 2.5
    %v2620 = vmul.f32 %v1204, 2.5
    %v2621 = vmul.f32 %v1219, 2.5
    %v2622 = vmul.f32 %v1234, 2.5
    %v2623 = vmul.f32 %v1249, 2.5
    %v2624 = vmul.f32 %v1264, 2.5
    %v2625 = vmul.f32 %v1279, 2.5
    %v2626 = vmul.f32 %v1294, 2.5
    %v2627 = vmul.f32 %v1309, 2.5
    %v2628 = vmul.f32 %v1324, 2.5
    %v2629 = vmul.f32 %v1339, 2.5
    %v2630 = vmul.f32 %v1354, 2.5
    %v2631 = vmul.f32 %v1369, 2.5
    %v2632 = vmul.f32 %v1384, 2.5
    %v2633 = vmul.f32 %v1399, 2.5
    %v2634 = vmul.f32 %v1414, 2.5
    %v2635 = vmul.f32 %v1429, 2.5
    %v2636 = vmul.f32 %v1444, 2.5
    %v2637 = vmul.f32 %v1459, 2.5
    %v2638 = vmul.f32 %v1474, 2.5
    %v2639 = vmul.f32 %v1489, 2.5
    %v2640 = vmul.f32 %v1504, 2.5
    %v2641 = vmul.f32 %v1519, 2.5
    %v2642 = vmul.f32 %v1534, 2.5
    %v2643 = vmul.f32 %v1549, 2.5
    %v2644 = vmul.f32 %v1564, 2.5
    %v2645 = vmul.f32 %v1579, 2.5
    %v2646 = vmul.f32 %v1594, 2.5
    %v2647 = vmul.f32 %v1609, 2.5
    %v2648 = vmul.f32 %v1624, 2.5
    %v2649 = vmul.f32 %v1639, 2.5
    %v2650 = vmul.f32 %v1654, 2.5
    %v2651 = vmul.f32 %v1669, 2.5
    %v2652 = vmul.f32 %v1684, 2.5
    %v2653 = vmul.f32 %v1699, 2.5
    %v2654 = vmul.f32 %v1714, 2.5
    %v2655 = vmul.f32 %v1729, 2.5
    %v2656 = vmul.f32 %v1744, 2.5
    %v2657 = vmul.f32 %v1759, 2.5
    %v2658 = vmul.f32 %v1774, 2.5
    %v2659 = vmul.f32 %v1789, 2.5
    %v2660 = vmul.f32 %v1804, 2.5
    %v2661 = vmul.f32 %v1819, 2.5
    %v2662 = vmul.f32 %v1834, 2.5
    %v2663 = vmul.f32 %v1849, 2.5
    %v2664 = vmul.f32 %v1864, 2.5
    %v2665 = vmul.f32 %v1879, 2.5
    %v2666 = vmul.f32 %v1894, 2.5
    %v2667 = vmul.f32 %v1909, 2.5
    %v2668 = vmul.f32 %v1924, 2.5
    %v2669 = vmul.f32 %v1939, 2.5
    %v2670 = vmul.f32 %v1954, 2.5
    %v2671 = vmul.f32 %v1969, 2.5
    %v2672 = vmul.f32 %v1984, 2.5
    %v2673 = vmul.f32 %v1999, 2.5
    %v2674 = vmul.f32 %v2014, 2.5
    %v2675 = vmul.f32 %v2029, 2.5
    %v2676 = vmul.f32 %v2044, 2.5
    %v2677 = vmul.f32 %v2059, 2.5
    %v2678 = vmul.f32 %v2074, 2.5
    %v2679 = vmul.f32 %v2089, 2.5
    %v2680 = vmul.f32 %v2104, 2.5
    %v2681 = vmul.f32 %v2119, 2.5
    %v2682 = vmul.f32 %v2134, 2.5
    %v2683 = vmul.f32 %v2149, 2.5
    %v2684 = vmul.f32 %v2164, 2.5
    %v2685 = vmul.f32 %v2179, 2.5
    %v2686 = vmul.f32 %v2194, 2.5
    %v2687 = vmul.f32 %v2209, 2.5
    %v2688 = vmul.f32 %v2224, 2.5
    %v2689 = vmul.f32 %v2239, 2.5
    %v2690 = vmul.f32 %v2254, 2.5
    %v2691 = vmul.f32 %v2269, 2.5
    %v2692 = vmul.f32 %v2284, 2.5
    %v2693 = vmul.f32 %v2299, 2.5
    %v2694 = vmul.f32 %v2314, 2.5
    %v2695 = vmul.f32 %v2329, 2.5
    %v2696 = vmul.f32 %v2344, 2.5
    %v2697 = vmul.f32 %v2359, 2.5
    %v2698 = vmul.f32 %v2374, 2.5
    %v2699 = vmul.f32 %v2389, 2.5
    %v2700 = vmul.f32 %v2404, 2.5
    %v2701 = vmul.f32 %v2419, 2.5
    %v2702 = vmul.f32 %v2434, 2.5
    %v2703 = vmul.f32 %v2449, 2.5
    %v2704 = vmul.f32 %v2464, 2.5
    %v2705 = vmul.f32 %v2479, 2.5
    %v2706 = vmul.f32 %v2494, 2.5
    %v2707 = vmul.f32 %v2509, 2.5
    %v2708 = vmul.f32 %v2524, 2.5
    %v2709 = vmul.f32 %v2539, 2.5
    %v2710 = vmul.f32 %v2554, 2.5
    %v2711 = vmul.f32 %v2569, 2.5
    %v2712 = vmul.f32 %v2584, 2.5
    %2713 = vst [vmem:[#allocation5] sm:$0xff] %v2585
    %2714 = vst [vmem:[#allocation5 + $0x8] sm:$0xff] %v2586
    %2715 = vst [vmem:[#allocation5 + $0x10] sm:$0xff] %v2587
    %2716 = vst [vmem:[#allocation5 + $0x18] sm:$0xff] %v2588
    %2717 = vst [vmem:[#allocation5 + $0x20] sm:$0xff] %v2589
    %2718 = vst [vmem:[#allocation5 + $0x28] sm:$0xff] %v2590
    %2719 = vst [vmem:[#allocation5 + $0x30] sm:$0xff] %v2591
    %2720 = vst [vmem:[#allocation5 + $0x38] sm:$0xff] %v2592
    %2721 = vst [vmem:[#allocation5 + $0x40] sm:$0xff] %v2593
    %2722 = vst [vmem:[#allocation5 + $0x48] sm:$0xff] %v2594
    %2723 = vst [vmem:[#allocation5 + $0x50] sm:$0xff] %v2595
    %2724 = vst [vmem:[#allocation5 + $0x58] sm:$0xff] %v2596
    %2725 = vst [vmem:[#allocation5 + $0x60] sm:$0xff] %v2597
    %2726 = vst [vmem:[#allocation5 + $0x68] sm:$0xff] %v2598
    %2727 = vst [vmem:[#allocation5 + $0x70] sm:$0xff] %v2599
    %2728 = vst [vmem:[#allocation5 + $0x78] sm:$0xff] %v2600
    %2729 = vst [vmem:[#allocation5 + $0x80] sm:$0xff] %v2601
    %2730 = vst [vmem:[#allocation5 + $0x88] sm:$0xff] %v2602
    %2731 = vst [vmem:[#allocation5 + $0x90] sm:$0xff] %v2603
    %2732 = vst [vmem:[#allocation5 + $0x98] sm:$0xff] %v2604
    %2733 = vst [vmem:[#allocation5 + $0xa0] sm:$0xff] %v2605
    %2734 = vst [vmem:[#allocation5 + $0xa8] sm:$0xff] %v2606
    %2735 = vst [vmem:[#allocation5 + $0xb0] sm:$0xff] %v2607
    %2736 = vst [vmem:[#allocation5 + $0xb8] sm:$0xff] %v2608
    %2737 = vst [vmem:[#allocation5 + $0xc0] sm:$0xff] %v2609
    %2738 = vst [vmem:[#allocation5 + $0xc8] sm:$0xff] %v2610
    %2739 = vst [vmem:[#allocation5 + $0xd0] sm:$0xff] %v2611
    %2740 = vst [vmem:[#allocation5 + $0xd8] sm:$0xff] %v2612
    %2741 = vst [vmem:[#allocation5 + $0xe0] sm:$0xff] %v2613
    %2742 = vst [vmem:[#allocation5 + $0xe8] sm:$0xff] %v2614
    %2743 = vst [vmem:[#allocation5 + $0xf0] sm:$0xff] %v2615
    %2744 = vst [vmem:[#allocation5 + $0xf8] sm:$0xff] %v2616
    %2745 = vst [vmem:[#allocation5 + $0x100] sm:$0xff] %v2617
    %2746 = vst [vmem:[#allocation5 + $0x108] sm:$0xff] %v2618
    %2747 = vst [vmem:[#allocation5 + $0x110] sm:$0xff] %v2619
    %2748 = vst [vmem:[#allocation5 + $0x118] sm:$0xff] %v2620
    %2749 = vst [vmem:[#allocation5 + $0x120] sm:$0xff] %v2621
    %2750 = vst [vmem:[#allocation5 + $0x128] sm:$0xff] %v2622
    %2751 = vst [vmem:[#allocation5 + $0x130] sm:$0xff] %v2623
    %2752 = vst [vmem:[#allocation5 + $0x138] sm:$0xff] %v2624
    %2753 = vst [vmem:[#allocation5 + $0x140] sm:$0xff] %v2625
    %2754 = vst [vmem:[#allocation5 + $0x148] sm:$0xff] %v2626
    %2755 = vst [vmem:[#allocation5 + $0x150] sm:$0xff] %v2627
    %2756 = vst [vmem:[#allocation5 + $0x158] sm:$0xff] %v2628
    %2757 = vst [vmem:[#allocation5 + $0x160] sm:$0xff] %v2629
    %2758 = vst [vmem:[#allocation5 + $0x168] sm:$0xff] %v2630
    %2759 = vst [vmem:[#allocation5 + $0x170] sm:$0xff] %v2631
    %2760 = vst [vmem:[#allocation5 + $0x178] sm:$0xff] %v2632
    %2761 = vst [vmem:[#allocation5 + $0x180] sm:$0xff] %v2633
    %2762 = vst [vmem:[#allocation5 + $0x188] sm:$0xff] %v2634
    %2763 = vst [vmem:[#allocation5 + $0x190] sm:$0xff] %v2635
    %2764 = vst [vmem:[#allocation5 + $0x198] sm:$0xff] %v2636
    %2765 = vst [vmem:[#allocation5 + $0x1a0] sm:$0xff] %v2637
    %2766 = vst [vmem:[#allocation5 + $0x1a8] sm:$0xff] %v2638
    %2767 = vst [vmem:[#allocation5 + $0x1b0] sm:$0xff] %v2639
    %2768 = vst [vmem:[#allocation5 + $0x1b8] sm:$0xff] %v2640
    %2769 = vst [vmem:[#allocation5 + $0x1c0] sm:$0xff] %v2641
    %2770 = vst [vmem:[#allocation5 + $0x1c8] sm:$0xff] %v2642
    %2771 = vst [vmem:[#allocation5 + $0x1d0] sm:$0xff] %v2643
    %2772 = vst [vmem:[#allocation5 + $0x1d8] sm:$0xff] %v2644
    %2773 = vst [vmem:[#allocation5 + $0x1e0] sm:$0xff] %v2645
    %2774 = vst [vmem:[#allocation5 + $0x1e8] sm:$0xff] %v2646
    %2775 = vst [vmem:[#allocation5 + $0x1f0] sm:$0xff] %v2647
    %2776 = vst [vmem:[#allocation5 + $0x1f8] sm:$0xff] %v2648
    %2777 = vst [vmem:[#allocation5 + $0x200] sm:$0xff] %v2649
    %2778 = vst [vmem:[#allocation5 + $0x208] sm:$0xff] %v2650
    %2779 = vst [vmem:[#allocation5 + $0x210] sm:$0xff] %v2651
    %2780 = vst [vmem:[#allocation5 + $0x218] sm:$0xff] %v2652
    %2781 = vst [vmem:[#allocation5 + $0x220] sm:$0xff] %v2653
    %2782 = vst [vmem:[#allocation5 + $0x228] sm:$0xff] %v2654
    %2783 = vst [vmem:[#allocation5 + $0x230] sm:$0xff] %v2655
    %2784 = vst [vmem:[#allocation5 + $0x238] sm:$0xff] %v2656
    %2785 = vst [vmem:[#allocation5 + $0x240] sm:$0xff] %v2657
    %2786 = vst [vmem:[#allocation5 + $0x248] sm:$0xff] %v2658
    %2787 = vst [vmem:[#allocation5 + $0x250] sm:$0xff] %v2659
    %2788 = vst [vmem:[#allocation5 + $0x258] sm:$0xff] %v2660
    %2789 = vst [vmem:[#allocation5 + $0x260] sm:$0xff] %v2661
    %2790 = vst [vmem:[#allocation5 + $0x268] sm:$0xff] %v2662
    %2791 = vst [vmem:[#allocation5 + $0x270] sm:$0xff] %v2663
    %2792 = vst [vmem:[#allocation5 + $0x278] sm:$0xff] %v2664
    %2793 = vst [vmem:[#allocation5 + $0x280] sm:$0xff] %v2665
    %2794 = vst [vmem:[#allocation5 + $0x288] sm:$0xff] %v2666
    %2795 = vst [vmem:[#allocation5 + $0x290] sm:$0xff] %v2667
    %2796 = vst [vmem:[#allocation5 + $0x298] sm:$0xff] %v2668
    %2797 = vst [vmem:[#allocation5 + $0x2a0] sm:$0xff] %v2669
    %2798 = vst [vmem:[#allocation5 + $0x2a8] sm:$0xff] %v2670
    %2799 = vst [vmem:[#allocation5 + $0x2b0] sm:$0xff] %v2671
    %2800 = vst [vmem:[#allocation5 + $0x2b8] sm:$0xff] %v2672
    %2801 = vst [vmem:[#allocation5 + $0x2c0] sm:$0xff] %v2673
    %2802 = vst [vmem:[#allocation5 + $0x2c8] sm:$0xff] %v2674
    %2803 = vst [vmem:[#allocation5 + $0x2d0] sm:$0xff] %v2675
    %2804 = vst [vmem:[#allocation5 + $0x2d8] sm:$0xff] %v2676
    %2805 = vst [vmem:[#allocation5 + $0x2e0] sm:$0xff] %v2677
    %2806 = vst [vmem:[#allocation5 + $0x2e8] sm:$0xff] %v2678
    %2807 = vst [vmem:[#allocation5 + $0x2f0] sm:$0xff] %v2679
    %2808 = vst [vmem:[#allocation5 + $0x2f8] sm:$0xff] %v2680
    %2809 = vst [vmem:[#allocation5 + $0x300] sm:$0xff] %v2681
    %2810 = vst [vmem:[#allocation5 + $0x308] sm:$0xff] %v2682
    %2811 = vst [vmem:[#allocation5 + $0x310] sm:$0xff] %v2683
    %2812 = vst [vmem:[#allocation5 + $0x318] sm:$0xff] %v2684
    %2813 = vst [vmem:[#allocation5 + $0x320] sm:$0xff] %v2685
    %2814 = vst [vmem:[#allocation5 + $0x328] sm:$0xff] %v2686
    %2815 = vst [vmem:[#allocation5 + $0x330] sm:$0xff] %v2687
    %2816 = vst [vmem:[#allocation5 + $0x338] sm:$0xff] %v2688
    %2817 = vst [vmem:[#allocation5 + $0x340] sm:$0xff] %v2689
    %2818 = vst [vmem:[#allocation5 + $0x348] sm:$0xff] %v2690
    %2819 = vst [vmem:[#allocation5 + $0x350] sm:$0xff] %v2691
    %2820 = vst [vmem:[#allocation5 + $0x358] sm:$0xff] %v2692
    %2821 = vst [vmem:[#allocation5 + $0x360] sm:$0xff] %v2693
    %2822 = vst [vmem:[#allocation5 + $0x368] sm:$0xff] %v2694
    %2823 = vst [vmem:[#allocation5 + $0x370] sm:$0xff] %v2695
    %2824 = vst [vmem:[#allocation5 + $0x378] sm:$0xff] %v2696
    %2825 = vst [vmem:[#allocation5 + $0x380] sm:$0xff] %v2697
    %2826 = vst [vmem:[#allocation5 + $0x388] sm:$0xff] %v2698
    %2827 = vst [vmem:[#allocation5 + $0x390] sm:$0xff] %v2699
    %2828 = vst [vmem:[#allocation5 + $0x398] sm:$0xff] %v2700
    %2829 = vst [vmem:[#allocation5 + $0x3a0] sm:$0xff] %v2701
    %2830 = vst [vmem:[#allocation5 + $0x3a8] sm:$0xff] %v2702
    %2831 = vst [vmem:[#allocation5 + $0x3b0] sm:$0xff] %v2703
    %2832 = vst [vmem:[#allocation5 + $0x3b8] sm:$0xff] %v2704
    %2833 = vst [vmem:[#allocation5 + $0x3c0] sm:$0xff] %v2705
    %2834 = vst [vmem:[#allocation5 + $0x3c8] sm:$0xff] %v2706
    %2835 = vst [vmem:[#allocation5 + $0x3d0] sm:$0xff] %v2707
    %2836 = vst [vmem:[#allocation5 + $0x3d8] sm:$0xff] %v2708
    %2837 = vst [vmem:[#allocation5 + $0x3e0] sm:$0xff] %v2709
    %2838 = vst [vmem:[#allocation5 + $0x3e8] sm:$0xff] %v2710
    %2839 = vst [vmem:[#allocation5 + $0x3f0] sm:$0xff] %v2711
    %2840 = vst [vmem:[#allocation5 + $0x3f8] sm:$0xff] %v2712
    // Predicated region
    $region10: #{tpu_custom_call.1} parent=1 // pred_check
      _
    $region11: #{tpu_custom_call.1} parent=1 // pred_check_branch
      %2842 = sbr.rel (0) target = $region13
    $region12: #{tpu_custom_call.1} parent=1 // pred_region
      %2844 = vsyncadd [#allocation4], 0
      %s2845 = sshll.u32 [#allocation5], 4
      %s2846 = int_to_ptr.vmem [resolvable:$true] %s2845
      %s2847 = sshll.u32 %s1, 4
      %s2848 = int_to_ptr.hbm [resolvable:$true] %s2847
      %2853 = dma.vmem_to_hbm [thread:$0]  %s2846, 16384, %s2848, [#allocation4], 1024, 1024, 64
    $region13: #{tpu_custom_call.1} parent=1 // pred_fallthru
      _
    // Predicated region
    $region14: #{tpu_custom_call.1} parent=1 // pred_check
      _
    $region15: #{tpu_custom_call.1} parent=1 // pred_check_branch
      %2855 = sbr.rel (0) target = $region17
    $region16: #{tpu_custom_call.1} parent=1 // pred_region
      %2857 = dma.done [#allocation4], 16384
    $region17: #{tpu_custom_call.1} parent=1 // pred_fallthru
      _
    %2858 = vsyncpa [#allocation3], 1
    %2859 = vsyncpa [#allocation4], 1

</llo_original>
